<compile_context>
chip_gen: v6e
topology: v6e:2x2x1
jax: 0.10.0
libtpu: 0.0.40
codegen_flags: <defaults>
</compile_context>

<pallas_src>
import functools

import jax
import jax.numpy as jnp
from jax import lax
from jax.experimental import pallas as pl
from jax.experimental.pallas import tpu as pltpu


def _fire_kernel(H, W,
                 x_ref, mask_ref, wsq_ref, bsq_ref, w1_ref, b1_ref,
                 w3_ref, b3_ref, out_ref, spad_ref, col_ref):
    """One batch image per grid step.

    x_ref    : (1, (H+2)*(W+2), Cin)  zero-padded input, flattened, bf16
    mask_ref : ((H+2)*(W+2), 1)       1.0 on interior pixels, 0.0 on the halo
    wsq_ref  : (Cin, Csq)             squeeze 1x1 weights (BN folded, bf16)
    w1_ref   : (Csq, Ce1)             expand1 1x1 weights (BN folded, bf16)
    w3_ref   : (9*Csq, Ce3)           expand3 3x3 weights, im2col/tap-major
    out_ref  : (1, H*(W+2), Ce1+Ce3)  fused lane-dense output (f32)
    spad_ref : ((H+3)*(W+2), Csq)     padded squeeze activation (VMEM, f32)
    col_ref  : (H*(W+2), 9*Csq)       im2col tile (VMEM, f32)
    """
    Wp2 = W + 2
    HWp = (H + 2) * Wp2          # padded-grid rows (squeeze domain)
    HWo = H * Wp2                # output rows (each W+2 wide; last 2 cols junk)
    Csq = wsq_ref.shape[1]
    Ce1 = w1_ref.shape[1]
    mm_dtype = w3_ref.dtype      # matmul operand dtype (bf16)

    # ---- squeeze 1x1 (+folded BN) + ReLU over the zero-padded grid ----------
    s = jnp.dot(x_ref[0], wsq_ref[...], preferred_element_type=jnp.float32)
    s = jnp.maximum(s + bsq_ref[...], 0.0)
    # One broadcasted multiply zeroes the 1-px halo (relu(bias) != 0 there).
    # Replaces the 9 per-tap compare/and/select masks of the naive version.
    s = s * mask_ref[...]
    spad_ref[0:HWp, :] = s.astype(spad_ref.dtype)
    # Tail rows are only ever read by the discarded junk output columns; keep
    # them deterministic. Tiny (W+2, Csq) store - not a whole-buffer zero fill.
    spad_ref[HWp:, :] = jnp.zeros((spad_ref.shape[0] - HWp, Csq),
                                  spad_ref.dtype)

    # ---- im2col: 9 shifted taps side-by-side along the lane dim -------------
    # Row stride of the padded grid is W+2, so a horizontal shift never wraps
    # into the neighbouring image row -> no per-tap masking needed.
    for t in range(9):
        ky, kx = t // 3, t % 3
        off = ky * Wp2 + kx                       # static sublane offset
        col_ref[:, t * Csq:(t + 1) * Csq] = spad_ref[off:off + HWo, :]

    # ---- expand1 1x1: its input is exactly the centre tap -------------------
    center = col_ref[:, 4 * Csq:5 * Csq].astype(mm_dtype)
    y1 = jnp.dot(center, w1_ref[...], preferred_element_type=jnp.float32)
    y1 = jnp.maximum(y1 + b1_ref[...], 0.0)

    # ---- expand3 3x3 as a single big-K matmul (K = 9*Csq) -------------------
    col = col_ref[...].astype(mm_dtype)
    y3 = jnp.dot(col, w3_ref[...], preferred_element_type=jnp.float32)
    y3 = jnp.maximum(y3 + b3_ref[...], 0.0)

    # ---- fused, lane-dense output: [expand1 | expand3] ----------------------
    # (for real SqueezeNet channel counts Ce1+Ce3 is a multiple of 128; pad the
    #  fused width to 128 in the kernel-facing layout on v5e if it is not)
    out_ref[0, :, 0:Ce1] = y1.astype(out_ref.dtype)
    out_ref[0, :, Ce1:] = y3.astype(out_ref.dtype)


def fire_module_pallas(x_nchw, params, *, compute_dtype=jnp.bfloat16,
                       out_dtype=jnp.float32):
    """FireModule forward. Input/output are NCHW (PyTorch convention)."""
    wsq, bsq, w1, b1, w3, b3 = params            # w3: (9, Csq, Ce3)
    N, Cin, H, W = x_nchw.shape
    Hp2, Wp2 = H + 2, W + 2
    HWp = Hp2 * Wp2
    HWo = H * Wp2
    Csq = wsq.shape[1]
    Ce1 = w1.shape[1]
    Ce3 = w3.shape[-1]
    Cout = Ce1 + Ce3

    # glue: NCHW -> NHWC, 1-px zero halo, flatten padded grid; cast to bf16
    # (halves activation DMA; pad/transpose/cast fuse into one XLA op).
    x_pad = jnp.pad(jnp.transpose(x_nchw, (0, 2, 3, 1)),
                    ((0, 0), (1, 1), (1, 1), (0, 0)))
    x_flat = x_pad.reshape(N, HWp, Cin).astype(compute_dtype)

    # interior mask (1.0 inside the image, 0.0 on the halo), computed once.
    py = jnp.arange(Hp2)[:, None]
    px = jnp.arange(Wp2)[None, :]
    interior = (py >= 1) & (py <= H) & (px >= 1) & (px <= W)
    mask = interior.astype(jnp.float32).reshape(HWp, 1)

    wsq_c = wsq.astype(compute_dtype)
    w1_c = w1.astype(compute_dtype)
    w3_c = w3.reshape(9 * Csq, Ce3).astype(compute_dtype)   # im2col layout
    bsq2 = bsq.reshape(1, Csq).astype(jnp.float32)
    b12 = b1.reshape(1, Ce1).astype(jnp.float32)
    b32 = b3.reshape(1, Ce3).astype(jnp.float32)

    kernel = functools.partial(_fire_kernel, H, W)

    out = pl.pallas_call(
        kernel,
        out_shape=jax.ShapeDtypeStruct((N, HWo, Cout), out_dtype),
        grid_spec=pltpu.PrefetchScalarGridSpec(
            num_scalar_prefetch=0,
            grid=(N,),
            in_specs=[
                pl.BlockSpec((1, HWp, Cin), lambda n: (n, 0, 0)),
                pl.BlockSpec((HWp, 1), lambda n: (0, 0)),
                pl.BlockSpec((Cin, Csq), lambda n: (0, 0)),
                pl.BlockSpec((1, Csq), lambda n: (0, 0)),
                pl.BlockSpec((Csq, Ce1), lambda n: (0, 0)),
                pl.BlockSpec((1, Ce1), lambda n: (0, 0)),
                pl.BlockSpec((9 * Csq, Ce3), lambda n: (0, 0)),
                pl.BlockSpec((1, Ce3), lambda n: (0, 0)),
            ],
            out_specs=pl.BlockSpec((1, HWo, Cout), lambda n: (n, 0, 0)),
            scratch_shapes=[
                pltpu.VMEM(((H + 3) * Wp2, Csq), jnp.float32),  # padded squeeze act
                pltpu.VMEM((HWo, 9 * Csq), jnp.float32),        # im2col tile
            ],
        ),
        compiler_params=pltpu.CompilerParams(
            dimension_semantics=("parallel",),      # images are independent
            vmem_limit_bytes=32 << 20),
    )(x_flat, mask, wsq_c, bsq2, w1_c, b12, w3_c, b32)

    # glue: drop the 2 junk columns per padded-width row, back to NCHW.
    # Channel order [expand1 | expand3] == torch.cat dim=1.
    y = out.reshape(N, H, Wp2, Cout)[:, :, :W, :]
    return jnp.transpose(y, (0, 3, 1, 2))


def make_params(key, in_channels, sq_channels, ex1_channels, ex3_channels):
    """Deterministic Conv+BN params with BN folded into (weight, bias)."""
    def conv_bn(k, kh, kw, cin, cout):
        k1, k2, k3, k4, k5 = jax.random.split(k, 5)
        w = jax.random.normal(k1, (kh, kw, cin, cout), jnp.float32) * 0.3
        gamma = jax.random.uniform(k2, (cout,), jnp.float32, 0.5, 1.5)
        beta = jax.random.normal(k3, (cout,), jnp.float32) * 0.1
        mean = jax.random.normal(k4, (cout,), jnp.float32) * 0.1
        var = jax.random.uniform(k5, (cout,), jnp.float32, 0.5, 1.5)
        scale = gamma / jnp.sqrt(var + 1e-5)
        return w * scale, beta - mean * scale

    ks, k1, k3 = jax.random.split(key, 3)
    wsq, bsq = conv_bn(ks, 1, 1, in_channels, sq_channels)
    w1, b1 = conv_bn(k1, 1, 1, sq_channels, ex1_channels)
    w3, b3 = conv_bn(k3, 3, 3, sq_channels, ex3_channels)
    return (wsq.reshape(in_channels, sq_channels), bsq,
            w1.reshape(sq_channels, ex1_channels), b1,
            w3.reshape(9, sq_channels, ex3_channels), b3)


def fire_reference(x_nchw, params):
    """Pure-JAX (f32) reference of the FireModule forward (for validation)."""
    wsq, bsq, w1, b1, w3, b3 = params
    x = jnp.transpose(x_nchw, (0, 2, 3, 1))                  # NHWC
    s = jnp.maximum(jnp.einsum('nhwc,cd->nhwd', x, wsq,
                               precision=lax.Precision.HIGHEST) + bsq, 0.0)
    y1 = jnp.maximum(jnp.einsum('nhwc,cd->nhwd', s, w1,
                                precision=lax.Precision.HIGHEST) + b1, 0.0)
    csq, ce3 = w3.shape[1], w3.shape[2]
    w3_hwio = w3.reshape(3, 3, csq, ce3)
    y3 = lax.conv_general_dilated(
        s, w3_hwio, (1, 1), 'SAME',
        dimension_numbers=('NHWC', 'HWIO', 'NHWC'),
        precision=lax.Precision.HIGHEST) + b3
    y3 = jnp.maximum(y3, 0.0)
    y = jnp.concatenate([y1, y3], axis=-1)
    return jnp.transpose(y, (0, 3, 1, 2))


if __name__ == "__main__":
    key = jax.random.PRNGKey(0)
    kx, kp = jax.random.split(key)

    N, Cin, H, W = 2, 8, 16, 16
    SQ, EX1, EX3 = 8, 16, 16

    x = jax.random.normal(kx, (N, Cin, H, W), jnp.float32)
    params = make_params(kp, Cin, SQ, EX1, EX3)

    out = jax.block_until_ready(fire_module_pallas(x, params))
    ref = fire_reference(x, params)

    assert out.shape == (N, EX1 + EX3, H, W), out.shape
    # bf16 matmul operands with f32 accumulation vs an all-f32 reference.
    if not jnp.allclose(out, ref, rtol=5e-2, atol=5e-2):
        max_err = float(jnp.max(jnp.abs(out - ref)))
        raise SystemExit(f"mismatch vs reference, max abs err = {max_err}")

    print("KERNEL_OK")
</pallas_src>

<mosaic_0001>
module attributes {stable_mosaic.version = 11 : i64} {
  func.func @_fire_kernel(%arg0: i32, %arg1: memref<1x324x8xbf16, #tpu.memory_space<vmem>>, %arg2: memref<324x1xf32, #tpu.memory_space<vmem>>, %arg3: memref<8x8xbf16, #tpu.memory_space<vmem>>, %arg4: memref<1x8xf32, #tpu.memory_space<vmem>>, %arg5: memref<8x16xbf16, #tpu.memory_space<vmem>>, %arg6: memref<1x16xf32, #tpu.memory_space<vmem>>, %arg7: memref<72x16xbf16, #tpu.memory_space<vmem>>, %arg8: memref<1x16xf32, #tpu.memory_space<vmem>>, %arg9: memref<1x288x32xf32, #tpu.memory_space<vmem>>, %arg10: memref<342x8xf32, #tpu.memory_space<vmem>>, %arg11: memref<288x72xf32, #tpu.memory_space<vmem>>) attributes {dimension_semantics = [#tpu.dimension_semantics<parallel>], iteration_bounds = array<i64: 2>, scalar_prefetch = 0 : i64, scratch_operands = 2 : i64, tpu.core_type = #tpu.core_type<tc>, window_params = [{transform_indices = @transform_0, window_bounds = array<i64: 1, 324, 8>}, {pipeline_mode = #tpu.pipeline_mode<synchronous>, transform_indices = @transform_1, window_bounds = array<i64: 324, 1>}, {pipeline_mode = #tpu.pipeline_mode<synchronous>, transform_indices = @transform_2, window_bounds = array<i64: 8, 8>}, {pipeline_mode = #tpu.pipeline_mode<synchronous>, transform_indices = @transform_3, window_bounds = array<i64: 1, 8>}, {pipeline_mode = #tpu.pipeline_mode<synchronous>, transform_indices = @transform_4, window_bounds = array<i64: 8, 16>}, {pipeline_mode = #tpu.pipeline_mode<synchronous>, transform_indices = @transform_5, window_bounds = array<i64: 1, 16>}, {pipeline_mode = #tpu.pipeline_mode<synchronous>, transform_indices = @transform_6, window_bounds = array<i64: 72, 16>}, {pipeline_mode = #tpu.pipeline_mode<synchronous>, transform_indices = @transform_7, window_bounds = array<i64: 1, 16>}, {transform_indices = @transform_8, window_bounds = array<i64: 1, 288, 32>}]} {
    %c0 = arith.constant 0 : index
    %c0_0 = arith.constant 0 : index
    %c0_1 = arith.constant 0 : index
    %0 = vector.load %arg1[%c0, %c0_0, %c0_1] : memref<1x324x8xbf16, #tpu.memory_space<vmem>>, vector<1x324x8xbf16>
    %1 = vector.shape_cast %0 : vector<1x324x8xbf16> to vector<324x8xbf16>
    %c0_2 = arith.constant 0 : index
    %c0_3 = arith.constant 0 : index
    %2 = vector.load %arg3[%c0_2, %c0_3] : memref<8x8xbf16, #tpu.memory_space<vmem>>, vector<8x8xbf16>
    %cst = arith.constant dense<0.000000e+00> : vector<324x8xf32>
    %3 = tpu.matmul %1, %2, %cst {dimension_numbers = #tpu.dot_dimension_numbers<[1], [0], [0], [1], [0, 0, 1, 1], [], []>} : vector<324x8xbf16>, vector<8x8xbf16>, vector<324x8xf32> -> vector<324x8xf32>
    %c0_4 = arith.constant 0 : index
    %c0_5 = arith.constant 0 : index
    %4 = vector.load %arg4[%c0_4, %c0_5] : memref<1x8xf32, #tpu.memory_space<vmem>>, vector<1x8xf32>
    %5 = vector.broadcast %4 : vector<1x8xf32> to vector<324x8xf32>
    %6 = arith.addf %3, %5 : vector<324x8xf32>
    %cst_6 = arith.constant 0.000000e+00 : f32
    %7 = vector.broadcast %cst_6 : f32 to vector<324x8xf32>
    %8 = arith.maximumf %6, %7 : vector<324x8xf32>
    %c0_7 = arith.constant 0 : index
    %c0_8 = arith.constant 0 : index
    %9 = vector.load %arg2[%c0_7, %c0_8] : memref<324x1xf32, #tpu.memory_space<vmem>>, vector<324x1xf32>
    %10 = vector.broadcast %9 : vector<324x1xf32> to vector<324x8xf32>
    %11 = arith.mulf %8, %10 : vector<324x8xf32>
    %c0_9 = arith.constant 0 : index
    %c0_10 = arith.constant 0 : index
    %12 = vector.load %arg10[%c0_9, %c0_10] : memref<342x8xf32, #tpu.memory_space<vmem>>, vector<324x8xf32>
    tpu.vector_store %arg10[%c0_9, %c0_10], %11 {strides = array<i32>} : memref<342x8xf32, #tpu.memory_space<vmem>>, vector<324x8xf32>,
    %cst_11 = arith.constant 0.000000e+00 : f32
    %13 = vector.broadcast %cst_11 : f32 to vector<18x8xf32>
    %c324 = arith.constant 324 : index
    %c0_12 = arith.constant 0 : index
    %14 = vector.load %arg10[%c324, %c0_12] : memref<342x8xf32, #tpu.memory_space<vmem>>, vector<18x8xf32>
    tpu.vector_store %arg10[%c324, %c0_12], %13 {strides = array<i32>} : memref<342x8xf32, #tpu.memory_space<vmem>>, vector<18x8xf32>,
    %c0_13 = arith.constant 0 : index
    %c0_14 = arith.constant 0 : index
    %15 = vector.load %arg10[%c0_13, %c0_14] : memref<342x8xf32, #tpu.memory_space<vmem>>, vector<288x8xf32>
    %c0_15 = arith.constant 0 : index
    %c0_16 = arith.constant 0 : index
    %16 = vector.load %arg11[%c0_15, %c0_16] : memref<288x72xf32, #tpu.memory_space<vmem>>, vector<288x8xf32>
    tpu.vector_store %arg11[%c0_15, %c0_16], %15 {strides = array<i32>} : memref<288x72xf32, #tpu.memory_space<vmem>>, vector<288x8xf32>,
    %c1 = arith.constant 1 : index
    %c0_17 = arith.constant 0 : index
    %17 = vector.load %arg10[%c1, %c0_17] : memref<342x8xf32, #tpu.memory_space<vmem>>, vector<288x8xf32>
    %c0_18 = arith.constant 0 : index
    %c8 = arith.constant 8 : index
    %18 = vector.load %arg11[%c0_18, %c8] : memref<288x72xf32, #tpu.memory_space<vmem>>, vector<288x8xf32>
    tpu.vector_store %arg11[%c0_18, %c8], %17 {strides = array<i32>} : memref<288x72xf32, #tpu.memory_space<vmem>>, vector<288x8xf32>,
    %c2 = arith.constant 2 : index
    %c0_19 = arith.constant 0 : index
    %19 = vector.load %arg10[%c2, %c0_19] : memref<342x8xf32, #tpu.memory_space<vmem>>, vector<288x8xf32>
    %c0_20 = arith.constant 0 : index
    %c16 = arith.constant 16 : index
    %20 = vector.load %arg11[%c0_20, %c16] : memref<288x72xf32, #tpu.memory_space<vmem>>, vector<288x8xf32>
    tpu.vector_store %arg11[%c0_20, %c16], %19 {strides = array<i32>} : memref<288x72xf32, #tpu.memory_space<vmem>>, vector<288x8xf32>,
    %c18 = arith.constant 18 : index
    %c0_21 = arith.constant 0 : index
    %21 = vector.load %arg10[%c18, %c0_21] : memref<342x8xf32, #tpu.memory_space<vmem>>, vector<288x8xf32>
    %c0_22 = arith.constant 0 : index
    %c24 = arith.constant 24 : index
    %22 = vector.load %arg11[%c0_22, %c24] : memref<288x72xf32, #tpu.memory_space<vmem>>, vector<288x8xf32>
    tpu.vector_store %arg11[%c0_22, %c24], %21 {strides = array<i32>} : memref<288x72xf32, #tpu.memory_space<vmem>>, vector<288x8xf32>,
    %c19 = arith.constant 19 : index
    %c0_23 = arith.constant 0 : index
    %23 = vector.load %arg10[%c19, %c0_23] : memref<342x8xf32, #tpu.memory_space<vmem>>, vector<288x8xf32>
    %c0_24 = arith.constant 0 : index
    %c32 = arith.constant 32 : index
    %24 = vector.load %arg11[%c0_24, %c32] : memref<288x72xf32, #tpu.memory_space<vmem>>, vector<288x8xf32>
    tpu.vector_store %arg11[%c0_24, %c32], %23 {strides = array<i32>} : memref<288x72xf32, #tpu.memory_space<vmem>>, vector<288x8xf32>,
    %c20 = arith.constant 20 : index
    %c0_25 = arith.constant 0 : index
    %25 = vector.load %arg10[%c20, %c0_25] : memref<342x8xf32, #tpu.memory_space<vmem>>, vector<288x8xf32>
    %c0_26 = arith.constant 0 : index
    %c40 = arith.constant 40 : index
    %26 = vector.load %arg11[%c0_26, %c40] : memref<288x72xf32, #tpu.memory_space<vmem>>, vector<288x8xf32>
    tpu.vector_store %arg11[%c0_26, %c40], %25 {strides = array<i32>} : memref<288x72xf32, #tpu.memory_space<vmem>>, vector<288x8xf32>,
    %c36 = arith.constant 36 : index
    %c0_27 = arith.constant 0 : index
    %27 = vector.load %arg10[%c36, %c0_27] : memref<342x8xf32, #tpu.memory_space<vmem>>, vector<288x8xf32>
    %c0_28 = arith.constant 0 : index
    %c48 = arith.constant 48 : index
    %28 = vector.load %arg11[%c0_28, %c48] : memref<288x72xf32, #tpu.memory_space<vmem>>, vector<288x8xf32>
    tpu.vector_store %arg11[%c0_28, %c48], %27 {strides = array<i32>} : memref<288x72xf32, #tpu.memory_space<vmem>>, vector<288x8xf32>,
    %c37 = arith.constant 37 : index
    %c0_29 = arith.constant 0 : index
    %29 = vector.load %arg10[%c37, %c0_29] : memref<342x8xf32, #tpu.memory_space<vmem>>, vector<288x8xf32>
    %c0_30 = arith.constant 0 : index
    %c56 = arith.constant 56 : index
    %30 = vector.load %arg11[%c0_30, %c56] : memref<288x72xf32, #tpu.memory_space<vmem>>, vector<288x8xf32>
    tpu.vector_store %arg11[%c0_30, %c56], %29 {strides = array<i32>} : memref<288x72xf32, #tpu.memory_space<vmem>>, vector<288x8xf32>,
    %c38 = arith.constant 38 : index
    %c0_31 = arith.constant 0 : index
    %31 = vector.load %arg10[%c38, %c0_31] : memref<342x8xf32, #tpu.memory_space<vmem>>, vector<288x8xf32>
    %c0_32 = arith.constant 0 : index
    %c64 = arith.constant 64 : index
    %32 = vector.load %arg11[%c0_32, %c64] : memref<288x72xf32, #tpu.memory_space<vmem>>, vector<288x8xf32>
    tpu.vector_store %arg11[%c0_32, %c64], %31 {strides = array<i32>} : memref<288x72xf32, #tpu.memory_space<vmem>>, vector<288x8xf32>,
    %c0_33 = arith.constant 0 : index
    %c32_34 = arith.constant 32 : index
    %33 = vector.load %arg11[%c0_33, %c32_34] : memref<288x72xf32, #tpu.memory_space<vmem>>, vector<288x8xf32>
    %34 = arith.truncf %33 : vector<288x8xf32> to vector<288x8xbf16>
    %c0_35 = arith.constant 0 : index
    %c0_36 = arith.constant 0 : index
    %35 = vector.load %arg5[%c0_35, %c0_36] : memref<8x16xbf16, #tpu.memory_space<vmem>>, vector<8x16xbf16>
    %cst_37 = arith.constant dense<0.000000e+00> : vector<288x16xf32>
    %36 = tpu.matmul %34, %35, %cst_37 {dimension_numbers = #tpu.dot_dimension_numbers<[1], [0], [0], [1], [0, 0, 1, 1], [], []>} : vector<288x8xbf16>, vector<8x16xbf16>, vector<288x16xf32> -> vector<288x16xf32>
    %c0_38 = arith.constant 0 : index
    %c0_39 = arith.constant 0 : index
    %37 = vector.load %arg6[%c0_38, %c0_39] : memref<1x16xf32, #tpu.memory_space<vmem>>, vector<1x16xf32>
    %38 = vector.broadcast %37 : vector<1x16xf32> to vector<288x16xf32>
    %39 = arith.addf %36, %38 : vector<288x16xf32>
    %cst_40 = arith.constant 0.000000e+00 : f32
    %40 = vector.broadcast %cst_40 : f32 to vector<288x16xf32>
    %41 = arith.maximumf %39, %40 : vector<288x16xf32>
    %c0_41 = arith.constant 0 : index
    %c0_42 = arith.constant 0 : index
    %42 = vector.load %arg11[%c0_41, %c0_42] : memref<288x72xf32, #tpu.memory_space<vmem>>, vector<288x72xf32>
    %43 = arith.truncf %42 : vector<288x72xf32> to vector<288x72xbf16>
    %c0_43 = arith.constant 0 : index
    %c0_44 = arith.constant 0 : index
    %44 = vector.load %arg7[%c0_43, %c0_44] : memref<72x16xbf16, #tpu.memory_space<vmem>>, vector<72x16xbf16>
    %cst_45 = arith.constant dense<0.000000e+00> : vector<288x16xf32>
    %45 = tpu.matmul %43, %44, %cst_45 {dimension_numbers = #tpu.dot_dimension_numbers<[1], [0], [0], [1], [0, 0, 1, 1], [], []>} : vector<288x72xbf16>, vector<72x16xbf16>, vector<288x16xf32> -> vector<288x16xf32>
    %c0_46 = arith.constant 0 : index
    %c0_47 = arith.constant 0 : index
    %46 = vector.load %arg8[%c0_46, %c0_47] : memref<1x16xf32, #tpu.memory_space<vmem>>, vector<1x16xf32>
    %47 = vector.broadcast %46 : vector<1x16xf32> to vector<288x16xf32>
    %48 = arith.addf %45, %47 : vector<288x16xf32>
    %cst_48 = arith.constant 0.000000e+00 : f32
    %49 = vector.broadcast %cst_48 : f32 to vector<288x16xf32>
    %50 = arith.maximumf %48, %49 : vector<288x16xf32>
    %c0_49 = arith.constant 0 : index
    %c0_50 = arith.constant 0 : index
    %c0_51 = arith.constant 0 : index
    %51 = vector.load %arg9[%c0_49, %c0_50, %c0_51] : memref<1x288x32xf32, #tpu.memory_space<vmem>>, vector<1x288x16xf32>
    %52 = vector.shape_cast %51 : vector<1x288x16xf32> to vector<288x16xf32>
    %53 = vector.shape_cast %41 : vector<288x16xf32> to vector<1x288x16xf32>
    tpu.vector_store %arg9[%c0_49, %c0_50, %c0_51], %53 {strides = array<i32>} : memref<1x288x32xf32, #tpu.memory_space<vmem>>, vector<1x288x16xf32>,
    %c0_52 = arith.constant 0 : index
    %c0_53 = arith.constant 0 : index
    %c16_54 = arith.constant 16 : index
    %54 = vector.load %arg9[%c0_52, %c0_53, %c16_54] : memref<1x288x32xf32, #tpu.memory_space<vmem>>, vector<1x288x16xf32>
    %55 = vector.shape_cast %54 : vector<1x288x16xf32> to vector<288x16xf32>
    %56 = vector.shape_cast %50 : vector<288x16xf32> to vector<1x288x16xf32>
    tpu.vector_store %arg9[%c0_52, %c0_53, %c16_54], %56 {strides = array<i32>} : memref<1x288x32xf32, #tpu.memory_space<vmem>>, vector<1x288x16xf32>,
    return
  }
  func.func @transform_0(%arg0: i32) -> (i32, i32, i32) {
    %c0_i32 = arith.constant 0 : i32
    %c0_i32_0 = arith.constant 0 : i32
    %c0_i32_1 = arith.constant 0 : i32
    return %arg0, %c0_i32, %c0_i32_0 : i32, i32, i32
  }
  func.func @transform_1(%arg0: i32) -> (i32, i32) {
    %c0_i32 = arith.constant 0 : i32
    %c0_i32_0 = arith.constant 0 : i32
    %c0_i32_1 = arith.constant 0 : i32
    return %c0_i32, %c0_i32_0 : i32, i32
  }
  func.func @transform_2(%arg0: i32) -> (i32, i32) {
    %c0_i32 = arith.constant 0 : i32
    %c0_i32_0 = arith.constant 0 : i32
    %c0_i32_1 = arith.constant 0 : i32
    return %c0_i32, %c0_i32_0 : i32, i32
  }
  func.func @transform_3(%arg0: i32) -> (i32, i32) {
    %c0_i32 = arith.constant 0 : i32
    %c0_i32_0 = arith.constant 0 : i32
    %c0_i32_1 = arith.constant 0 : i32
    return %c0_i32, %c0_i32_0 : i32, i32
  }
  func.func @transform_4(%arg0: i32) -> (i32, i32) {
    %c0_i32 = arith.constant 0 : i32
    %c0_i32_0 = arith.constant 0 : i32
    %c0_i32_1 = arith.constant 0 : i32
    return %c0_i32, %c0_i32_0 : i32, i32
  }
  func.func @transform_5(%arg0: i32) -> (i32, i32) {
    %c0_i32 = arith.constant 0 : i32
    %c0_i32_0 = arith.constant 0 : i32
    %c0_i32_1 = arith.constant 0 : i32
    return %c0_i32, %c0_i32_0 : i32, i32
  }
  func.func @transform_6(%arg0: i32) -> (i32, i32) {
    %c0_i32 = arith.constant 0 : i32
    %c0_i32_0 = arith.constant 0 : i32
    %c0_i32_1 = arith.constant 0 : i32
    return %c0_i32, %c0_i32_0 : i32, i32
  }
  func.func @transform_7(%arg0: i32) -> (i32, i32) {
    %c0_i32 = arith.constant 0 : i32
    %c0_i32_0 = arith.constant 0 : i32
    %c0_i32_1 = arith.constant 0 : i32
    return %c0_i32, %c0_i32_0 : i32, i32
  }
  func.func @transform_8(%arg0: i32) -> (i32, i32, i32) {
    %c0_i32 = arith.constant 0 : i32
    %c0_i32_0 = arith.constant 0 : i32
    %c0_i32_1 = arith.constant 0 : i32
    return %arg0, %c0_i32, %c0_i32_0 : i32, i32, i32
  }
}

</mosaic_0001>

<llo_original>
// kernel: tpu_custom_call.1
$region0: #{tpu_custom_call.1}
  #allocation0 [shape = 'u32[]', space=smem, size = 0x4, offset = 0x4, fixed_abs, tag = 'smem constant byte address 0x4 - core index']
  #allocation1 [shape = 'u32[144,128]{1,0:T(1,128)}', space=vmem, size = 0x12000, scoped, tag = 'internal scratch']
  #allocation2 [shape = 'f32[342,8]{1,0:T(8,128)}', space=vmem, size = 0x2b000, scoped, tag = 'scratch operand']
  #allocation3 [shape = 'f32[288,72]{1,0:T(8,128)}', space=vmem, size = 0x24000, scoped, tag = 'scratch operand']
  %s0 = inlined_call_operand.vmem [shape: bf16[2,324,8], index: 0, kind: input, shape index: {}]
  %s1 = inlined_call_operand.vmem [shape: f32[324,1], index: 1, kind: input, shape index: {}]
  %s2 = inlined_call_operand.vmem [shape: bf16[8,8], index: 2, kind: input, shape index: {}]
  %s3 = inlined_call_operand.vmem [shape: f32[1,8], index: 3, kind: input, shape index: {}]
  %s4 = inlined_call_operand.vmem [shape: bf16[8,16], index: 4, kind: input, shape index: {}]
  %s5 = inlined_call_operand.vmem [shape: f32[1,16], index: 5, kind: input, shape index: {}]
  %s6 = inlined_call_operand.vmem [shape: bf16[72,16], index: 6, kind: input, shape index: {}]
  %s7 = inlined_call_operand.vmem [shape: f32[1,16], index: 7, kind: input, shape index: {}]
  %s8 = inlined_call_operand.vmem [shape: f32[2,288,32], index: 8, kind: output, shape index: {}]
  %s9 = sld [smem:[#allocation0]]
  $region65: #{tpu_custom_call.1} parent=0
    _
  %s11 = ssub.s32 1, %s9
  %s12 = scalar_select 0, %s11, %s9
  loop: start=0, step=1, limit=4
  $region2: #{tpu_custom_call.1} parent=0 // loop_pre_header
    _
  $region3: #{tpu_custom_call.1} parent=0 // loop_header
    %s14 = sphi 0, %s18
    %p15 = scmp.ge.s32.totalorder %s14, 4
    %s24 = sphi 0, %s26
    %s27 = sphi 0, %s24
    %s28 = sphi 0, %s27
    %s44 = sphi 0, %s28
    %s48 = sphi 0, %s48
    %s50 = sphi 0, %s48
    %s51 = sphi 0, %s50
    %s65 = sphi 0, %s51
    %s69 = sphi 0, %s69
    %s71 = sphi 0, %s69
    %s72 = sphi 0, %s71
    %s86 = sphi 0, %s72
    %s90 = sphi 0, %s90
    %s92 = sphi 0, %s90
    %s93 = sphi 0, %s92
    %s107 = sphi 0, %s93
    %s111 = sphi 0, %s111
    %s113 = sphi 0, %s111
    %s114 = sphi 0, %s113
    %s128 = sphi 0, %s114
    %s132 = sphi 0, %s132
    %s134 = sphi 0, %s132
    %s135 = sphi 0, %s134
    %s149 = sphi 0, %s135
    %s153 = sphi 0, %s153
    %s155 = sphi 0, %s153
    %s156 = sphi 0, %s155
    %s170 = sphi 0, %s156
    %s174 = sphi 0, %s174
    %s176 = sphi 0, %s174
    %s177 = sphi 0, %s176
    %s191 = sphi 0, %s177
    %s197 = sphi 0, %s199
    %s200 = sphi 0, %s197
    %s201 = sphi 0, %s200
    %s217 = sphi 0, %s201
  $region4: #{tpu_custom_call.1} parent=0 // loop_header_branch
    %17 = sbr.rel (%p15) target = $region8
  $region5: #{tpu_custom_call.1} parent=0 // loop_body
    %s19 = ssub.s32 %s14, 1
    %s20 = ssub.s32 %s14, 2
    %s21 = sadd.s32 %s14, 1
    %s22 = ssub.s32 %s14, %s21
    %p23 = scmp.eq.s32.totalorder %s22, 0
    %s25 = sadd.s32 %s24, 1
    %s26 = scalar_select %p23, %s24, %s25
    %p29 = pneg %p23
    %p30 = scmp.eq.s32.totalorder %s14, 1
    %p31 = por %p29, %p30
    %p32 = scmp.ne.s32.totalorder %s24, %s27
    %p33 = scmp.eq.s32.totalorder %s14, 0
    %p34 = por %p32, %p33
    %p35 = scmp.ne.s32.totalorder %s24, %s27
    %p36 = scmp.eq.s32.totalorder %s19, 1
    %p37 = por %p35, %p36
    %p38 = scmp.ne.s32.totalorder %s27, %s28
    %p39 = scmp.eq.s32.totalorder %s19, 0
    %p40 = por %p38, %p39
    %p41 = scmp.ne.s32.totalorder %s27, %s28
    %p42 = scmp.eq.s32.totalorder %s20, 1
    %p43 = por %p41, %p42
    %p45 = scmp.ne.s32.totalorder %s28, %s44
    %p46 = scmp.eq.s32.totalorder %s20, 0
    %p47 = por %p45, %p46
    %s49 = sadd.s32 %s48, 1
    %p52 = scmp.eq.s32.totalorder %s14, 1
    %p53 = scmp.ne.s32.totalorder %s48, %s50
    %p54 = scmp.eq.s32.totalorder %s14, 0
    %p55 = por %p53, %p54
    %p56 = scmp.ne.s32.totalorder %s48, %s50
    %p57 = scmp.eq.s32.totalorder %s19, 1
    %p58 = por %p56, %p57
    %p59 = scmp.ne.s32.totalorder %s50, %s51
    %p60 = scmp.eq.s32.totalorder %s19, 0
    %p61 = por %p59, %p60
    %p62 = scmp.ne.s32.totalorder %s50, %s51
    %p63 = scmp.eq.s32.totalorder %s20, 1
    %p64 = por %p62, %p63
    %p66 = scmp.ne.s32.totalorder %s51, %s65
    %p67 = scmp.eq.s32.totalorder %s20, 0
    %p68 = por %p66, %p67
    %s70 = sadd.s32 %s69, 1
    %p73 = scmp.eq.s32.totalorder %s14, 1
    %p74 = scmp.ne.s32.totalorder %s69, %s71
    %p75 = scmp.eq.s32.totalorder %s14, 0
    %p76 = por %p74, %p75
    %p77 = scmp.ne.s32.totalorder %s69, %s71
    %p78 = scmp.eq.s32.totalorder %s19, 1
    %p79 = por %p77, %p78
    %p80 = scmp.ne.s32.totalorder %s71, %s72
    %p81 = scmp.eq.s32.totalorder %s19, 0
    %p82 = por %p80, %p81
    %p83 = scmp.ne.s32.totalorder %s71, %s72
    %p84 = scmp.eq.s32.totalorder %s20, 1
    %p85 = por %p83, %p84
    %p87 = scmp.ne.s32.totalorder %s72, %s86
    %p88 = scmp.eq.s32.totalorder %s20, 0
    %p89 = por %p87, %p88
    %s91 = sadd.s32 %s90, 1
    %p94 = scmp.eq.s32.totalorder %s14, 1
    %p95 = scmp.ne.s32.totalorder %s90, %s92
    %p96 = scmp.eq.s32.totalorder %s14, 0
    %p97 = por %p95, %p96
    %p98 = scmp.ne.s32.totalorder %s90, %s92
    %p99 = scmp.eq.s32.totalorder %s19, 1
    %p100 = por %p98, %p99
    %p101 = scmp.ne.s32.totalorder %s92, %s93
    %p102 = scmp.eq.s32.totalorder %s19, 0
    %p103 = por %p101, %p102
    %p104 = scmp.ne.s32.totalorder %s92, %s93
    %p105 = scmp.eq.s32.totalorder %s20, 1
    %p106 = por %p104, %p105
    %p108 = scmp.ne.s32.totalorder %s93, %s107
    %p109 = scmp.eq.s32.totalorder %s20, 0
    %p110 = por %p108, %p109
    %s112 = sadd.s32 %s111, 1
    %p115 = scmp.eq.s32.totalorder %s14, 1
    %p116 = scmp.ne.s32.totalorder %s111, %s113
    %p117 = scmp.eq.s32.totalorder %s14, 0
    %p118 = por %p116, %p117
    %p119 = scmp.ne.s32.totalorder %s111, %s113
    %p120 = scmp.eq.s32.totalorder %s19, 1
    %p121 = por %p119, %p120
    %p122 = scmp.ne.s32.totalorder %s113, %s114
    %p123 = scmp.eq.s32.totalorder %s19, 0
    %p124 = por %p122, %p123
    %p125 = scmp.ne.s32.totalorder %s113, %s114
    %p126 = scmp.eq.s32.totalorder %s20, 1
    %p127 = por %p125, %p126
    %p129 = scmp.ne.s32.totalorder %s114, %s128
    %p130 = scmp.eq.s32.totalorder %s20, 0
    %p131 = por %p129, %p130
    %s133 = sadd.s32 %s132, 1
    %p136 = scmp.eq.s32.totalorder %s14, 1
    %p137 = scmp.ne.s32.totalorder %s132, %s134
    %p138 = scmp.eq.s32.totalorder %s14, 0
    %p139 = por %p137, %p138
    %p140 = scmp.ne.s32.totalorder %s132, %s134
    %p141 = scmp.eq.s32.totalorder %s19, 1
    %p142 = por %p140, %p141
    %p143 = scmp.ne.s32.totalorder %s134, %s135
    %p144 = scmp.eq.s32.totalorder %s19, 0
    %p145 = por %p143, %p144
    %p146 = scmp.ne.s32.totalorder %s134, %s135
    %p147 = scmp.eq.s32.totalorder %s20, 1
    %p148 = por %p146, %p147
    %p150 = scmp.ne.s32.totalorder %s135, %s149
    %p151 = scmp.eq.s32.totalorder %s20, 0
    %p152 = por %p150, %p151
    %s154 = sadd.s32 %s153, 1
    %p157 = scmp.eq.s32.totalorder %s14, 1
    %p158 = scmp.ne.s32.totalorder %s153, %s155
    %p159 = scmp.eq.s32.totalorder %s14, 0
    %p160 = por %p158, %p159
    %p161 = scmp.ne.s32.totalorder %s153, %s155
    %p162 = scmp.eq.s32.totalorder %s19, 1
    %p163 = por %p161, %p162
    %p164 = scmp.ne.s32.totalorder %s155, %s156
    %p165 = scmp.eq.s32.totalorder %s19, 0
    %p166 = por %p164, %p165
    %p167 = scmp.ne.s32.totalorder %s155, %s156
    %p168 = scmp.eq.s32.totalorder %s20, 1
    %p169 = por %p167, %p168
    %p171 = scmp.ne.s32.totalorder %s156, %s170
    %p172 = scmp.eq.s32.totalorder %s20, 0
    %p173 = por %p171, %p172
    %s175 = sadd.s32 %s174, 1
    %p178 = scmp.eq.s32.totalorder %s14, 1
    %p179 = scmp.ne.s32.totalorder %s174, %s176
    %p180 = scmp.eq.s32.totalorder %s14, 0
    %p181 = por %p179, %p180
    %p182 = scmp.ne.s32.totalorder %s174, %s176
    %p183 = scmp.eq.s32.totalorder %s19, 1
    %p184 = por %p182, %p183
    %p185 = scmp.ne.s32.totalorder %s176, %s177
    %p186 = scmp.eq.s32.totalorder %s19, 0
    %p187 = por %p185, %p186
    %p188 = scmp.ne.s32.totalorder %s176, %s177
    %p189 = scmp.eq.s32.totalorder %s20, 1
    %p190 = por %p188, %p189
    %p192 = scmp.ne.s32.totalorder %s177, %s191
    %p193 = scmp.eq.s32.totalorder %s20, 0
    %p194 = por %p192, %p193
    %s195 = ssub.s32 %s14, %s21
    %p196 = scmp.eq.s32.totalorder %s195, 0
    %s198 = sadd.s32 %s197, 1
    %s199 = scalar_select %p196, %s197, %s198
    %p202 = pneg %p196
    %p203 = scmp.eq.s32.totalorder %s14, 1
    %p204 = por %p202, %p203
    %p205 = scmp.ne.s32.totalorder %s197, %s200
    %p206 = scmp.eq.s32.totalorder %s14, 0
    %p207 = por %p205, %p206
    %p208 = scmp.ne.s32.totalorder %s197, %s200
    %p209 = scmp.eq.s32.totalorder %s19, 1
    %p210 = por %p208, %p209
    %p211 = scmp.ne.s32.totalorder %s200, %s201
    %p212 = scmp.eq.s32.totalorder %s19, 0
    %p213 = por %p211, %p212
    %p214 = scmp.ne.s32.totalorder %s200, %s201
    %p215 = scmp.eq.s32.totalorder %s20, 1
    %p216 = por %p214, %p215
    %p218 = scmp.ne.s32.totalorder %s201, %s217
    %p219 = scmp.eq.s32.totalorder %s20, 0
    %p220 = por %p218, %p219
    %p221 = scmp.le.s32.totalorder 1, %s14
    %p222 = scmp.lt.s32.totalorder %s14, 3
    %p223 = pnand %p221, %p222
    %p224 = pneg %p223
    // Predicated region
    $region9: #{tpu_custom_call.1} parent=5 // pred_check
      _
    $region10: #{tpu_custom_call.1} parent=5 // pred_check_branch
      %226 = sbr.rel (%p223) target = $region12
    $region11: #{tpu_custom_call.1} parent=5 // pred_region
      %s227 = ssub.s32 %s14, 1
      // Predicated region
      $region13: #{tpu_custom_call.1} parent=11 // pred_check
        %p228 = pneg %p61
      $region14: #{tpu_custom_call.1} parent=11 // pred_check_branch
        %230 = sbr.rel (%p228) target = $region16
      $region15: #{tpu_custom_call.1} parent=11 // pred_region
        _
      $region16: #{tpu_custom_call.1} parent=11 // pred_fallthru
        _
      // Predicated region
      $region17: #{tpu_custom_call.1} parent=11 // pred_check
        %p231 = pneg %p82
      $region18: #{tpu_custom_call.1} parent=11 // pred_check_branch
        %233 = sbr.rel (%p231) target = $region20
      $region19: #{tpu_custom_call.1} parent=11 // pred_region
        _
      $region20: #{tpu_custom_call.1} parent=11 // pred_fallthru
        _
      // Predicated region
      $region21: #{tpu_custom_call.1} parent=11 // pred_check
        %p234 = pneg %p103
      $region22: #{tpu_custom_call.1} parent=11 // pred_check_branch
        %236 = sbr.rel (%p234) target = $region24
      $region23: #{tpu_custom_call.1} parent=11 // pred_region
        _
      $region24: #{tpu_custom_call.1} parent=11 // pred_fallthru
        _
      // Predicated region
      $region25: #{tpu_custom_call.1} parent=11 // pred_check
        %p237 = pneg %p124
      $region26: #{tpu_custom_call.1} parent=11 // pred_check_branch
        %239 = sbr.rel (%p237) target = $region28
      $region27: #{tpu_custom_call.1} parent=11 // pred_region
        _
      $region28: #{tpu_custom_call.1} parent=11 // pred_fallthru
        _
      // Predicated region
      $region29: #{tpu_custom_call.1} parent=11 // pred_check
        %p240 = pneg %p145
      $region30: #{tpu_custom_call.1} parent=11 // pred_check_branch
        %242 = sbr.rel (%p240) target = $region32
      $region31: #{tpu_custom_call.1} parent=11 // pred_region
        _
      $region32: #{tpu_custom_call.1} parent=11 // pred_fallthru
        _
      // Predicated region
      $region33: #{tpu_custom_call.1} parent=11 // pred_check
        %p243 = pneg %p166
      $region34: #{tpu_custom_call.1} parent=11 // pred_check_branch
        %245 = sbr.rel (%p243) target = $region36
      $region35: #{tpu_custom_call.1} parent=11 // pred_region
        _
      $region36: #{tpu_custom_call.1} parent=11 // pred_fallthru
        _
      // Predicated region
      $region37: #{tpu_custom_call.1} parent=11 // pred_check
        %p246 = pneg %p187
      $region38: #{tpu_custom_call.1} parent=11 // pred_check_branch
        %248 = sbr.rel (%p246) target = $region40
      $region39: #{tpu_custom_call.1} parent=11 // pred_region
        _
      $region40: #{tpu_custom_call.1} parent=11 // pred_fallthru
        _
    $region12: #{tpu_custom_call.1} parent=5 // pred_fallthru
      _
    %p249 = scmp.lt.s32.totalorder %s14, 2
    // Predicated region
    $region41: #{tpu_custom_call.1} parent=5 // pred_check
      %p250 = pneg %p249
    $region42: #{tpu_custom_call.1} parent=5 // pred_check_branch
      %252 = sbr.rel (%p250) target = $region44
    $region43: #{tpu_custom_call.1} parent=5 // pred_region
      // Predicated region
      $region45: #{tpu_custom_call.1} parent=43 // pred_check
        %p253 = pneg %p34
      $region46: #{tpu_custom_call.1} parent=43 // pred_check_branch
        %255 = sbr.rel (%p253) target = $region48
      $region47: #{tpu_custom_call.1} parent=43 // pred_region
        %p256 = scmp.lt.s32.totalorder %s14, 1
        %s257 = scalar_select %p256, %s14, 1
        %s258 = smul.addr %s257, 41
        %s259 = smul.addr %s258, 4
        %s260 = scalar_lea.vmem %s0, %s259
      $region48: #{tpu_custom_call.1} parent=43 // pred_fallthru
        _
    $region44: #{tpu_custom_call.1} parent=5 // pred_fallthru
      _
    %p261 = scmp.le.s32.totalorder 1, %s14
    %p262 = scmp.lt.s32.totalorder %s14, 3
    %p263 = pnand %p261, %p262
    %p264 = pneg %p263
    // Predicated region
    $region49: #{tpu_custom_call.1} parent=5 // pred_check
      _
    $region50: #{tpu_custom_call.1} parent=5 // pred_check_branch
      %266 = sbr.rel (%p263) target = $region52
    $region51: #{tpu_custom_call.1} parent=5 // pred_region
      %s267 = ssub.s32 %s14, 1
      %p268 = scmp.lt.s32.totalorder %s19, 1
      %s269 = scalar_select %p268, %s19, 1
      %s270 = smul.addr %s269, 41
      %s271 = smul.addr %s270, 4
      %s272 = scalar_lea.vmem %s0, %s271
      %p273 = pneg %p40
      %p274 = pneg %p37
      %p275 = pneg %p61
      %p276 = pneg %p58
      %p277 = pneg %p82
      %p278 = pneg %p79
      %p279 = pneg %p103
      %p280 = pneg %p100
      %p281 = pneg %p124
      %p282 = pneg %p121
      %p283 = pneg %p145
      %p284 = pneg %p142
      %p285 = pneg %p166
      %p286 = pneg %p163
      %p287 = pneg %p187
      %p288 = pneg %p184
      %p289 = pneg %p213
      %p290 = pneg %p210
      %p291 = scmp.lt.s32.totalorder %s19, 1
      %s292 = scalar_select %p291, %s19, 1
      %s293 = smul.addr %s292, 36
      %s294 = smul.addr %s293, 8
      %s295 = scalar_lea.vmem %s8, %s294
      %p296 = scmp.lt.s32.totalorder %s19, 1
      %s297 = scalar_select %p296, %s19, 1
      %s298 = smul.addr %s297, 41
      %s299 = smul.addr %s298, 4
      %s300 = scalar_lea.vmem %s0, %s299
      %p301 = scmp.lt.s32.totalorder %s19, 1
      %s302 = scalar_select %p301, %s19, 1
      %s303 = smul.addr %s302, 36
      %s304 = smul.addr %s303, 8
      %s305 = scalar_lea.vmem %s8, %s304
      %v307 = vld [vmem:[%s300] sm:$0xf]
      %v308 = vld [vmem:[%s300 + $0x4] sm:$0xf]
      %v309 = vld [vmem:[%s300 + $0x8] sm:$0xf]
      %v310 = vld [vmem:[%s300 + $0xc] sm:$0xf]
      %v311 = vld [vmem:[%s300 + $0x10] sm:$0xf]
      %v312 = vld [vmem:[%s300 + $0x14] sm:$0xf]
      %v313 = vld [vmem:[%s300 + $0x18] sm:$0xf]
      %v314 = vld [vmem:[%s300 + $0x1c] sm:$0xf]
      %v315 = vld [vmem:[%s300 + $0x20] sm:$0xf]
      %v316 = vld [vmem:[%s300 + $0x24] sm:$0xf]
      %v317 = vld [vmem:[%s300 + $0x28] sm:$0xf]
      %v318 = vld [vmem:[%s300 + $0x2c] sm:$0xf]
      %v319 = vld [vmem:[%s300 + $0x30] sm:$0xf]
      %v320 = vld [vmem:[%s300 + $0x34] sm:$0xf]
      %v321 = vld [vmem:[%s300 + $0x38] sm:$0xf]
      %v322 = vld [vmem:[%s300 + $0x3c] sm:$0xf]
      %v323 = vld [vmem:[%s300 + $0x40] sm:$0xf]
      %v324 = vld [vmem:[%s300 + $0x44] sm:$0xf]
      %v325 = vld [vmem:[%s300 + $0x48] sm:$0xf]
      %v326 = vld [vmem:[%s300 + $0x4c] sm:$0xf]
      %v327 = vld [vmem:[%s300 + $0x50] sm:$0xf]
      %v328 = vld [vmem:[%s300 + $0x54] sm:$0xf]
      %v329 = vld [vmem:[%s300 + $0x58] sm:$0xf]
      %v330 = vld [vmem:[%s300 + $0x5c] sm:$0xf]
      %v331 = vld [vmem:[%s300 + $0x60] sm:$0xf]
      %v332 = vld [vmem:[%s300 + $0x64] sm:$0xf]
      %v333 = vld [vmem:[%s300 + $0x68] sm:$0xf]
      %v334 = vld [vmem:[%s300 + $0x6c] sm:$0xf]
      %v335 = vld [vmem:[%s300 + $0x70] sm:$0xf]
      %v336 = vld [vmem:[%s300 + $0x74] sm:$0xf]
      %v337 = vld [vmem:[%s300 + $0x78] sm:$0xf]
      %v338 = vld [vmem:[%s300 + $0x7c] sm:$0xf]
      %v339 = vld [vmem:[%s300 + $0x80] sm:$0xf]
      %v340 = vld [vmem:[%s300 + $0x84] sm:$0xf]
      %v341 = vld [vmem:[%s300 + $0x88] sm:$0xf]
      %v342 = vld [vmem:[%s300 + $0x8c] sm:$0xf]
      %v343 = vld [vmem:[%s300 + $0x90] sm:$0xf]
      %v344 = vld [vmem:[%s300 + $0x94] sm:$0xf]
      %v345 = vld [vmem:[%s300 + $0x98] sm:$0xf]
      %v346 = vld [vmem:[%s300 + $0x9c] sm:$0xf]
      %v347 = vld [vmem:[%s300 + $0xa0] sm:$0x3]
      %v348 = vld [vmem:[%s2] sm:$0xf]
      %v349 = vld [vmem:[%s3] sm:$0x1]
      %v351 = vlaneseq
      %v352 = vshrl.u32 %v351, 7
      %v353 = vsub.s32 0, %v352
      %v354 = vrot.slane %v349, %v353
      %v397 = vunpack.c.l.b16 %v307
      %v398 = vunpack.c.l.b16 %v308
      %v399 = vunpack.c.l.b16 %v309
      %v400 = vunpack.c.l.b16 %v310
      %v401 = vunpack.c.l.b16 %v311
      %v402 = vunpack.c.l.b16 %v312
      %v403 = vunpack.c.l.b16 %v313
      %v404 = vunpack.c.l.b16 %v314
      %v405 = vunpack.c.l.b16 %v315
      %v406 = vunpack.c.l.b16 %v316
      %v407 = vunpack.c.l.b16 %v317
      %v408 = vunpack.c.l.b16 %v318
      %v409 = vunpack.c.l.b16 %v319
      %v410 = vunpack.c.l.b16 %v320
      %v411 = vunpack.c.l.b16 %v321
      %v412 = vunpack.c.l.b16 %v322
      %v413 = vunpack.c.l.b16 %v323
      %v414 = vunpack.c.l.b16 %v324
      %v415 = vunpack.c.l.b16 %v325
      %v416 = vunpack.c.l.b16 %v326
      %v417 = vunpack.c.l.b16 %v327
      %v418 = vunpack.c.l.b16 %v328
      %v419 = vunpack.c.l.b16 %v329
      %v420 = vunpack.c.l.b16 %v330
      %v421 = vunpack.c.l.b16 %v331
      %v422 = vunpack.c.l.b16 %v332
      %v423 = vunpack.c.l.b16 %v333
      %v424 = vunpack.c.l.b16 %v334
      %v425 = vunpack.c.l.b16 %v335
      %v426 = vunpack.c.l.b16 %v336
      %v427 = vunpack.c.l.b16 %v337
      %v428 = vunpack.c.l.b16 %v338
      %v429 = vunpack.c.l.b16 %v339
      %v430 = vunpack.c.l.b16 %v340
      %v431 = vunpack.c.l.b16 %v341
      %v432 = vunpack.c.l.b16 %v342
      %v433 = vunpack.c.l.b16 %v343
      %v434 = vunpack.c.l.b16 %v344
      %v435 = vunpack.c.l.b16 %v345
      %v436 = vunpack.c.l.b16 %v346
      %v437 = vunpack.c.l.b16 %v347
      %v438 = vpack.c.b16 %v398, %v397
      %v439 = vpack.c.b16 %v400, %v399
      %v440 = vpack.c.b16 %v402, %v401
      %v441 = vpack.c.b16 %v404, %v403
      %v442 = vpack.c.b16 %v406, %v405
      %v443 = vpack.c.b16 %v408, %v407
      %v444 = vpack.c.b16 %v410, %v409
      %v445 = vpack.c.b16 %v412, %v411
      %v446 = vpack.c.b16 %v414, %v413
      %v447 = vpack.c.b16 %v416, %v415
      %v448 = vpack.c.b16 %v418, %v417
      %v449 = vpack.c.b16 %v420, %v419
      %v450 = vpack.c.b16 %v422, %v421
      %v451 = vpack.c.b16 %v424, %v423
      %v452 = vpack.c.b16 %v426, %v425
      %v453 = vpack.c.b16 %v428, %v427
      %v454 = vpack.c.b16 %v430, %v429
      %v455 = vpack.c.b16 %v432, %v431
      %v456 = vpack.c.b16 %v434, %v433
      %v457 = vpack.c.b16 %v436, %v435
      %v458 = vpack.c.b16 %v437, %v437
      %vm459 = vcmask 64512
      %v461 = vsel %vm459, %v438, 0
      %v464 = vsel %vm459, %v439, 0
      %v467 = vsel %vm459, %v440, 0
      %v470 = vsel %vm459, %v441, 0
      %v473 = vsel %vm459, %v442, 0
      %v476 = vsel %vm459, %v443, 0
      %v479 = vsel %vm459, %v444, 0
      %v482 = vsel %vm459, %v445, 0
      %v485 = vsel %vm459, %v446, 0
      %v488 = vsel %vm459, %v447, 0
      %v491 = vsel %vm459, %v448, 0
      %v494 = vsel %vm459, %v449, 0
      %v497 = vsel %vm459, %v450, 0
      %v500 = vsel %vm459, %v451, 0
      %v503 = vsel %vm459, %v452, 0
      %v506 = vsel %vm459, %v453, 0
      %v509 = vsel %vm459, %v454, 0
      %v512 = vsel %vm459, %v455, 0
      %v515 = vsel %vm459, %v456, 0
      %v518 = vsel %vm459, %v457, 0
      %v521 = vsel %vm459, %v458, 0
      %vm523 = vcmask 1043456
      %v525 = vsel %vm523, %v348, 0
      %527 = vmatprep.subr.bf16.mxu0 0
      %528 = vmatpush1.bf16.msra.mxu0 0
      %529 = vmatprep.subr.bf16.mxu0 0
      %530 = vmatpush1.bf16.msra.mxu0 0
      %531 = vmatprep.subr.bf16.mxu0 0
      %532 = vmatpush1.bf16.msra.mxu0 0
      %533 = vmatprep.subr.bf16.mxu0 0
      %534 = vmatpush1.bf16.msra.mxu0 0
      %535 = vmatprep.subr.bf16.mxu0 0
      %536 = vmatpush1.bf16.msra.mxu0 0
      %537 = vmatprep.subr.bf16.mxu0 0
      %538 = vmatpush1.bf16.msra.mxu0 0
      %539 = vmatprep.subr.bf16.mxu0 0
      %540 = vmatpush1.bf16.msra.mxu0 0
      %541 = vmatprep.subr.bf16.mxu0 0
      %542 = vmatpush1.bf16.msra.mxu0 %v525
      %543 = vmatprep.subr.bf16.mxu0 0
      %544 = vmatpush2.bf16.msra.mxu0 0
      %545 = vmatprep.subr.bf16.mxu0 0
      %546 = vmatpush2.bf16.msra.mxu0 0
      %547 = vmatprep.subr.bf16.mxu0 0
      %548 = vmatpush2.bf16.msra.mxu0 0
      %549 = vmatprep.subr.bf16.mxu0 0
      %550 = vmatpush2.bf16.msra.mxu0 0
      %551 = vmatprep.subr.bf16.mxu0 0
      %552 = vmatpush2.bf16.msra.mxu0 0
      %553 = vmatprep.subr.bf16.mxu0 0
      %554 = vmatpush2.bf16.msra.mxu0 0
      %555 = vmatprep.subr.bf16.mxu0 0
      %556 = vmatpush2.bf16.msra.mxu0 0
      %557 = vmatprep.subr.bf16.mxu0 0
      %558 = vmatpush2.bf16.msra.mxu0 0
      %559 = vmatprep.mubr.bf16.mxu0 0
      %560 = vmatmul.mubr.bf16.gmra.mxu0 %v461
      %v561 = vpop.f32.mrf.mxu0
      %v562 = vadd.f32 %v354, %v561
      %v563 = vpop.f32.mrf.mxu0
      %v564 = vpop.f32.mrf.mxu0
      %v565 = vadd.f32 %v354, %v564
      %v566 = vpop.f32.mrf.mxu0
      %567 = vmatprep.mubr.bf16.mxu0 0
      %568 = vmatmul.mubr.bf16.gmra.mxu0 %v464
      %v569 = vpop.f32.mrf.mxu0
      %v570 = vadd.f32 %v354, %v569
      %v571 = vpop.f32.mrf.mxu0
      %v572 = vpop.f32.mrf.mxu0
      %v573 = vadd.f32 %v354, %v572
      %v574 = vpop.f32.mrf.mxu0
      %575 = vmatprep.mubr.bf16.mxu0 0
      %576 = vmatmul.mubr.bf16.gmra.mxu0 %v467
      %v577 = vpop.f32.mrf.mxu0
      %v578 = vadd.f32 %v354, %v577
      %v579 = vpop.f32.mrf.mxu0
      %v580 = vpop.f32.mrf.mxu0
      %v581 = vadd.f32 %v354, %v580
      %v582 = vpop.f32.mrf.mxu0
      %583 = vmatprep.mubr.bf16.mxu0 0
      %584 = vmatmul.mubr.bf16.gmra.mxu0 %v470
      %v585 = vpop.f32.mrf.mxu0
      %v586 = vadd.f32 %v354, %v585
      %v587 = vpop.f32.mrf.mxu0
      %v588 = vpop.f32.mrf.mxu0
      %v589 = vadd.f32 %v354, %v588
      %v590 = vpop.f32.mrf.mxu0
      %591 = vmatprep.mubr.bf16.mxu0 0
      %592 = vmatmul.mubr.bf16.gmra.mxu0 %v473
      %v593 = vpop.f32.mrf.mxu0
      %v594 = vadd.f32 %v354, %v593
      %v595 = vpop.f32.mrf.mxu0
      %v596 = vpop.f32.mrf.mxu0
      %v597 = vadd.f32 %v354, %v596
      %v598 = vpop.f32.mrf.mxu0
      %599 = vmatprep.mubr.bf16.mxu0 0
      %600 = vmatmul.mubr.bf16.gmra.mxu0 %v476
      %v601 = vpop.f32.mrf.mxu0
      %v602 = vadd.f32 %v354, %v601
      %v603 = vpop.f32.mrf.mxu0
      %v604 = vpop.f32.mrf.mxu0
      %v605 = vadd.f32 %v354, %v604
      %v606 = vpop.f32.mrf.mxu0
      %607 = vmatprep.mubr.bf16.mxu0 0
      %608 = vmatmul.mubr.bf16.gmra.mxu0 %v479
      %v609 = vpop.f32.mrf.mxu0
      %v610 = vadd.f32 %v354, %v609
      %v611 = vpop.f32.mrf.mxu0
      %v612 = vpop.f32.mrf.mxu0
      %v613 = vadd.f32 %v354, %v612
      %v614 = vpop.f32.mrf.mxu0
      %615 = vmatprep.mubr.bf16.mxu0 0
      %616 = vmatmul.mubr.bf16.gmra.mxu0 %v482
      %v617 = vpop.f32.mrf.mxu0
      %v618 = vadd.f32 %v354, %v617
      %v619 = vpop.f32.mrf.mxu0
      %v620 = vpop.f32.mrf.mxu0
      %v621 = vadd.f32 %v354, %v620
      %v622 = vpop.f32.mrf.mxu0
      %623 = vmatprep.mubr.bf16.mxu0 0
      %624 = vmatmul.mubr.bf16.gmra.mxu0 %v485
      %v625 = vpop.f32.mrf.mxu0
      %v626 = vadd.f32 %v354, %v625
      %v627 = vpop.f32.mrf.mxu0
      %v628 = vpop.f32.mrf.mxu0
      %v629 = vadd.f32 %v354, %v628
      %v630 = vpop.f32.mrf.mxu0
      %631 = vmatprep.mubr.bf16.mxu0 0
      %632 = vmatmul.mubr.bf16.gmra.mxu0 %v488
      %v633 = vpop.f32.mrf.mxu0
      %v634 = vadd.f32 %v354, %v633
      %v635 = vpop.f32.mrf.mxu0
      %v636 = vpop.f32.mrf.mxu0
      %v637 = vadd.f32 %v354, %v636
      %v638 = vpop.f32.mrf.mxu0
      %639 = vmatprep.mubr.bf16.mxu0 0
      %640 = vmatmul.mubr.bf16.gmra.mxu0 %v491
      %v641 = vpop.f32.mrf.mxu0
      %v642 = vadd.f32 %v354, %v641
      %v643 = vpop.f32.mrf.mxu0
      %v644 = vpop.f32.mrf.mxu0
      %v645 = vadd.f32 %v354, %v644
      %v646 = vpop.f32.mrf.mxu0
      %647 = vmatprep.mubr.bf16.mxu0 0
      %648 = vmatmul.mubr.bf16.gmra.mxu0 %v494
      %v649 = vpop.f32.mrf.mxu0
      %v650 = vadd.f32 %v354, %v649
      %v651 = vpop.f32.mrf.mxu0
      %v652 = vpop.f32.mrf.mxu0
      %v653 = vadd.f32 %v354, %v652
      %v654 = vpop.f32.mrf.mxu0
      %655 = vmatprep.mubr.bf16.mxu0 0
      %656 = vmatmul.mubr.bf16.gmra.mxu0 %v497
      %v657 = vpop.f32.mrf.mxu0
      %v658 = vadd.f32 %v354, %v657
      %v659 = vpop.f32.mrf.mxu0
      %v660 = vpop.f32.mrf.mxu0
      %v661 = vadd.f32 %v354, %v660
      %v662 = vpop.f32.mrf.mxu0
      %663 = vmatprep.mubr.bf16.mxu0 0
      %664 = vmatmul.mubr.bf16.gmra.mxu0 %v500
      %v665 = vpop.f32.mrf.mxu0
      %v666 = vadd.f32 %v354, %v665
      %v667 = vpop.f32.mrf.mxu0
      %v668 = vpop.f32.mrf.mxu0
      %v669 = vadd.f32 %v354, %v668
      %v670 = vpop.f32.mrf.mxu0
      %671 = vmatprep.mubr.bf16.mxu0 0
      %672 = vmatmul.mubr.bf16.gmra.mxu0 %v503
      %v673 = vpop.f32.mrf.mxu0
      %v674 = vadd.f32 %v354, %v673
      %v675 = vpop.f32.mrf.mxu0
      %v676 = vpop.f32.mrf.mxu0
      %v677 = vadd.f32 %v354, %v676
      %v678 = vpop.f32.mrf.mxu0
      %679 = vmatprep.mubr.bf16.mxu0 0
      %680 = vmatmul.mubr.bf16.gmra.mxu0 %v506
      %v681 = vpop.f32.mrf.mxu0
      %v682 = vadd.f32 %v354, %v681
      %v683 = vpop.f32.mrf.mxu0
      %v684 = vpop.f32.mrf.mxu0
      %v685 = vadd.f32 %v354, %v684
      %v686 = vpop.f32.mrf.mxu0
      %687 = vmatprep.mubr.bf16.mxu0 0
      %688 = vmatmul.mubr.bf16.gmra.mxu0 %v509
      %v689 = vpop.f32.mrf.mxu0
      %v690 = vadd.f32 %v354, %v689
      %v691 = vpop.f32.mrf.mxu0
      %v692 = vpop.f32.mrf.mxu0
      %v693 = vadd.f32 %v354, %v692
      %v694 = vpop.f32.mrf.mxu0
      %695 = vmatprep.mubr.bf16.mxu0 0
      %696 = vmatmul.mubr.bf16.gmra.mxu0 %v512
      %v697 = vpop.f32.mrf.mxu0
      %v698 = vadd.f32 %v354, %v697
      %v699 = vpop.f32.mrf.mxu0
      %v700 = vpop.f32.mrf.mxu0
      %v701 = vadd.f32 %v354, %v700
      %v702 = vpop.f32.mrf.mxu0
      %703 = vmatprep.mubr.bf16.mxu0 0
      %704 = vmatmul.mubr.bf16.gmra.mxu0 %v515
      %v705 = vpop.f32.mrf.mxu0
      %v706 = vadd.f32 %v354, %v705
      %v707 = vpop.f32.mrf.mxu0
      %v708 = vpop.f32.mrf.mxu0
      %v709 = vadd.f32 %v354, %v708
      %v710 = vpop.f32.mrf.mxu0
      %711 = vmatprep.mubr.bf16.mxu0 0
      %712 = vmatmul.mubr.bf16.gmra.mxu0 %v518
      %v713 = vpop.f32.mrf.mxu0
      %v714 = vadd.f32 %v354, %v713
      %v715 = vpop.f32.mrf.mxu0
      %v716 = vpop.f32.mrf.mxu0
      %v717 = vadd.f32 %v354, %v716
      %v718 = vpop.f32.mrf.mxu0
      %719 = vmatprep.mubr.bf16.mxu0 0
      %720 = vmatmul.mubr.bf16.gmra.mxu0 %v521
      %v721 = vpop.f32.mrf.mxu0
      %v722 = vadd.f32 %v354, %v721
      %v723 = vpop.f32.mrf.mxu0
      %v724 = vpop.f32.mrf.mxu0
      %v725 = vpop.f32.mrf.mxu0
      %726 = vdwg.mxu0
      %v727 = vmax.f32 %v562, 0.0
      %v728 = vmax.f32 %v565, 0.0
      %v729 = vmax.f32 %v570, 0.0
      %v730 = vmax.f32 %v573, 0.0
      %v731 = vmax.f32 %v578, 0.0
      %v732 = vmax.f32 %v581, 0.0
      %v733 = vmax.f32 %v586, 0.0
      %v734 = vmax.f32 %v589, 0.0
      %v735 = vmax.f32 %v594, 0.0
      %v736 = vmax.f32 %v597, 0.0
      %v737 = vmax.f32 %v602, 0.0
      %v738 = vmax.f32 %v605, 0.0
      %v739 = vmax.f32 %v610, 0.0
      %v740 = vmax.f32 %v613, 0.0
      %v741 = vmax.f32 %v618, 0.0
      %v742 = vmax.f32 %v621, 0.0
      %v743 = vmax.f32 %v626, 0.0
      %v744 = vmax.f32 %v629, 0.0
      %v745 = vmax.f32 %v634, 0.0
      %v746 = vmax.f32 %v637, 0.0
      %v747 = vmax.f32 %v642, 0.0
      %v748 = vmax.f32 %v645, 0.0
      %v749 = vmax.f32 %v650, 0.0
      %v750 = vmax.f32 %v653, 0.0
      %v751 = vmax.f32 %v658, 0.0
      %v752 = vmax.f32 %v661, 0.0
      %v753 = vmax.f32 %v666, 0.0
      %v754 = vmax.f32 %v669, 0.0
      %v755 = vmax.f32 %v674, 0.0
      %v756 = vmax.f32 %v677, 0.0
      %v757 = vmax.f32 %v682, 0.0
      %v758 = vmax.f32 %v685, 0.0
      %v759 = vmax.f32 %v690, 0.0
      %v760 = vmax.f32 %v693, 0.0
      %v761 = vmax.f32 %v698, 0.0
      %v762 = vmax.f32 %v701, 0.0
      %v763 = vmax.f32 %v706, 0.0
      %v764 = vmax.f32 %v709, 0.0
      %v765 = vmax.f32 %v714, 0.0
      %v766 = vmax.f32 %v717, 0.0
      %v767 = vmax.f32 %v722, 0.0
      %v768 = vld [vmem:[%s1] sm:$0xff]
      %v769 = vld [vmem:[%s1 + $0x8] sm:$0xff]
      %v770 = vld [vmem:[%s1 + $0x10] sm:$0xff]
      %v771 = vld [vmem:[%s1 + $0x18] sm:$0xff]
      %v772 = vld [vmem:[%s1 + $0x20] sm:$0xff]
      %v773 = vld [vmem:[%s1 + $0x28] sm:$0xff]
      %v774 = vld [vmem:[%s1 + $0x30] sm:$0xff]
      %v775 = vld [vmem:[%s1 + $0x38] sm:$0xff]
      %v776 = vld [vmem:[%s1 + $0x40] sm:$0xff]
      %v777 = vld [vmem:[%s1 + $0x48] sm:$0xff]
      %v778 = vld [vmem:[%s1 + $0x50] sm:$0xff]
      %v779 = vld [vmem:[%s1 + $0x58] sm:$0xff]
      %v780 = vld [vmem:[%s1 + $0x60] sm:$0xff]
      %v781 = vld [vmem:[%s1 + $0x68] sm:$0xff]
      %v782 = vld [vmem:[%s1 + $0x70] sm:$0xff]
      %v783 = vld [vmem:[%s1 + $0x78] sm:$0xff]
      %v784 = vld [vmem:[%s1 + $0x80] sm:$0xff]
      %v785 = vld [vmem:[%s1 + $0x88] sm:$0xff]
      %v786 = vld [vmem:[%s1 + $0x90] sm:$0xff]
      %v787 = vld [vmem:[%s1 + $0x98] sm:$0xff]
      %v788 = vld [vmem:[%s1 + $0xa0] sm:$0xff]
      %v789 = vld [vmem:[%s1 + $0xa8] sm:$0xff]
      %v790 = vld [vmem:[%s1 + $0xb0] sm:$0xff]
      %v791 = vld [vmem:[%s1 + $0xb8] sm:$0xff]
      %v792 = vld [vmem:[%s1 + $0xc0] sm:$0xff]
      %v793 = vld [vmem:[%s1 + $0xc8] sm:$0xff]
      %v794 = vld [vmem:[%s1 + $0xd0] sm:$0xff]
      %v795 = vld [vmem:[%s1 + $0xd8] sm:$0xff]
      %v796 = vld [vmem:[%s1 + $0xe0] sm:$0xff]
      %v797 = vld [vmem:[%s1 + $0xe8] sm:$0xff]
      %v798 = vld [vmem:[%s1 + $0xf0] sm:$0xff]
      %v799 = vld [vmem:[%s1 + $0xf8] sm:$0xff]
      %v800 = vld [vmem:[%s1 + $0x100] sm:$0xff]
      %v801 = vld [vmem:[%s1 + $0x108] sm:$0xff]
      %v802 = vld [vmem:[%s1 + $0x110] sm:$0xff]
      %v803 = vld [vmem:[%s1 + $0x118] sm:$0xff]
      %v804 = vld [vmem:[%s1 + $0x120] sm:$0xff]
      %v805 = vld [vmem:[%s1 + $0x128] sm:$0xff]
      %v806 = vld [vmem:[%s1 + $0x130] sm:$0xff]
      %v807 = vld [vmem:[%s1 + $0x138] sm:$0xff]
      %v808 = vld [vmem:[%s1 + $0x140] sm:$0xf]
      %810 = vset.pattern.permute.xlu0 0
      %811 = vperm.xlu0 %810, %v768
      %v812 = vpop.permute.xlu0 %811
      %815 = vset.pattern.permute.xlu0 0
      %816 = vperm.xlu0 %815, %v769
      %v817 = vpop.permute.xlu0 %816
      %820 = vset.pattern.permute.xlu0 0
      %821 = vperm.xlu0 %820, %v770
      %v822 = vpop.permute.xlu0 %821
      %825 = vset.pattern.permute.xlu0 0
      %826 = vperm.xlu0 %825, %v771
      %v827 = vpop.permute.xlu0 %826
      %830 = vset.pattern.permute.xlu0 0
      %831 = vperm.xlu0 %830, %v772
      %v832 = vpop.permute.xlu0 %831
      %835 = vset.pattern.permute.xlu0 0
      %836 = vperm.xlu0 %835, %v773
      %v837 = vpop.permute.xlu0 %836
      %840 = vset.pattern.permute.xlu0 0
      %841 = vperm.xlu0 %840, %v774
      %v842 = vpop.permute.xlu0 %841
      %845 = vset.pattern.permute.xlu0 0
      %846 = vperm.xlu0 %845, %v775
      %v847 = vpop.permute.xlu0 %846
      %850 = vset.pattern.permute.xlu0 0
      %851 = vperm.xlu0 %850, %v776
      %v852 = vpop.permute.xlu0 %851
      %855 = vset.pattern.permute.xlu0 0
      %856 = vperm.xlu0 %855, %v777
      %v857 = vpop.permute.xlu0 %856
      %860 = vset.pattern.permute.xlu0 0
      %861 = vperm.xlu0 %860, %v778
      %v862 = vpop.permute.xlu0 %861
      %865 = vset.pattern.permute.xlu0 0
      %866 = vperm.xlu0 %865, %v779
      %v867 = vpop.permute.xlu0 %866
      %870 = vset.pattern.permute.xlu0 0
      %871 = vperm.xlu0 %870, %v780
      %v872 = vpop.permute.xlu0 %871
      %875 = vset.pattern.permute.xlu0 0
      %876 = vperm.xlu0 %875, %v781
      %v877 = vpop.permute.xlu0 %876
      %880 = vset.pattern.permute.xlu0 0
      %881 = vperm.xlu0 %880, %v782
      %v882 = vpop.permute.xlu0 %881
      %885 = vset.pattern.permute.xlu0 0
      %886 = vperm.xlu0 %885, %v783
      %v887 = vpop.permute.xlu0 %886
      %890 = vset.pattern.permute.xlu0 0
      %891 = vperm.xlu0 %890, %v784
      %v892 = vpop.permute.xlu0 %891
      %895 = vset.pattern.permute.xlu0 0
      %896 = vperm.xlu0 %895, %v785
      %v897 = vpop.permute.xlu0 %896
      %900 = vset.pattern.permute.xlu0 0
      %901 = vperm.xlu0 %900, %v786
      %v902 = vpop.permute.xlu0 %901
      %905 = vset.pattern.permute.xlu0 0
      %906 = vperm.xlu0 %905, %v787
      %v907 = vpop.permute.xlu0 %906
      %910 = vset.pattern.permute.xlu0 0
      %911 = vperm.xlu0 %910, %v788
      %v912 = vpop.permute.xlu0 %911
      %915 = vset.pattern.permute.xlu0 0
      %916 = vperm.xlu0 %915, %v789
      %v917 = vpop.permute.xlu0 %916
      %920 = vset.pattern.permute.xlu0 0
      %921 = vperm.xlu0 %920, %v790
      %v922 = vpop.permute.xlu0 %921
      %925 = vset.pattern.permute.xlu0 0
      %926 = vperm.xlu0 %925, %v791
      %v927 = vpop.permute.xlu0 %926
      %930 = vset.pattern.permute.xlu0 0
      %931 = vperm.xlu0 %930, %v792
      %v932 = vpop.permute.xlu0 %931
      %935 = vset.pattern.permute.xlu0 0
      %936 = vperm.xlu0 %935, %v793
      %v937 = vpop.permute.xlu0 %936
      %940 = vset.pattern.permute.xlu0 0
      %941 = vperm.xlu0 %940, %v794
      %v942 = vpop.permute.xlu0 %941
      %945 = vset.pattern.permute.xlu0 0
      %946 = vperm.xlu0 %945, %v795
      %v947 = vpop.permute.xlu0 %946
      %950 = vset.pattern.permute.xlu0 0
      %951 = vperm.xlu0 %950, %v796
      %v952 = vpop.permute.xlu0 %951
      %955 = vset.pattern.permute.xlu0 0
      %956 = vperm.xlu0 %955, %v797
      %v957 = vpop.permute.xlu0 %956
      %960 = vset.pattern.permute.xlu0 0
      %961 = vperm.xlu0 %960, %v798
      %v962 = vpop.permute.xlu0 %961
      %965 = vset.pattern.permute.xlu0 0
      %966 = vperm.xlu0 %965, %v799
      %v967 = vpop.permute.xlu0 %966
      %970 = vset.pattern.permute.xlu0 0
      %971 = vperm.xlu0 %970, %v800
      %v972 = vpop.permute.xlu0 %971
      %975 = vset.pattern.permute.xlu0 0
      %976 = vperm.xlu0 %975, %v801
      %v977 = vpop.permute.xlu0 %976
      %980 = vset.pattern.permute.xlu0 0
      %981 = vperm.xlu0 %980, %v802
      %v982 = vpop.permute.xlu0 %981
      %985 = vset.pattern.permute.xlu0 0
      %986 = vperm.xlu0 %985, %v803
      %v987 = vpop.permute.xlu0 %986
      %990 = vset.pattern.permute.xlu0 0
      %991 = vperm.xlu0 %990, %v804
      %v992 = vpop.permute.xlu0 %991
      %995 = vset.pattern.permute.xlu0 0
      %996 = vperm.xlu0 %995, %v805
      %v997 = vpop.permute.xlu0 %996
      %1000 = vset.pattern.permute.xlu0 0
      %1001 = vperm.xlu0 %1000, %v806
      %v1002 = vpop.permute.xlu0 %1001
      %1005 = vset.pattern.permute.xlu0 0
      %1006 = vperm.xlu0 %1005, %v807
      %v1007 = vpop.permute.xlu0 %1006
      %1010 = vset.pattern.permute.xlu0 0
      %1011 = vperm.xlu0 %1010, %v808
      %v1012 = vpop.permute.xlu0 %1011
      %v1014 = vmul.f32 %v727, %v812
      %v1015 = vmul.f32 %v728, %v817
      %v1016 = vmul.f32 %v729, %v822
      %v1017 = vmul.f32 %v730, %v827
      %v1018 = vmul.f32 %v731, %v832
      %v1019 = vmul.f32 %v732, %v837
      %v1020 = vmul.f32 %v733, %v842
      %v1021 = vmul.f32 %v734, %v847
      %v1022 = vmul.f32 %v735, %v852
      %v1023 = vmul.f32 %v736, %v857
      %v1024 = vmul.f32 %v737, %v862
      %v1025 = vmul.f32 %v738, %v867
      %v1026 = vmul.f32 %v739, %v872
      %v1027 = vmul.f32 %v740, %v877
      %v1028 = vmul.f32 %v741, %v882
      %v1029 = vmul.f32 %v742, %v887
      %v1030 = vmul.f32 %v743, %v892
      %v1031 = vmul.f32 %v744, %v897
      %v1032 = vmul.f32 %v745, %v902
      %v1033 = vmul.f32 %v746, %v907
      %v1034 = vmul.f32 %v747, %v912
      %v1035 = vmul.f32 %v748, %v917
      %v1036 = vmul.f32 %v749, %v922
      %v1037 = vmul.f32 %v750, %v927
      %v1038 = vmul.f32 %v751, %v932
      %v1039 = vmul.f32 %v752, %v937
      %v1040 = vmul.f32 %v753, %v942
      %v1041 = vmul.f32 %v754, %v947
      %v1042 = vmul.f32 %v755, %v952
      %v1043 = vmul.f32 %v756, %v957
      %v1044 = vmul.f32 %v757, %v962
      %v1045 = vmul.f32 %v758, %v967
      %v1046 = vmul.f32 %v759, %v972
      %v1047 = vmul.f32 %v760, %v977
      %v1048 = vmul.f32 %v761, %v982
      %v1049 = vmul.f32 %v762, %v987
      %v1050 = vmul.f32 %v763, %v992
      %v1051 = vmul.f32 %v764, %v997
      %v1052 = vmul.f32 %v765, %v1002
      %v1053 = vmul.f32 %v766, %v1007
      %v1054 = vmul.f32 %v767, %v1012
      %1055 = vst.msk [vmem:[#allocation2] sm:$0xff] %vm459, %v1014
      %1056 = vst.msk [vmem:[#allocation2 + $0x8] sm:$0xff] %vm459, %v1015
      %1057 = vst.msk [vmem:[#allocation2 + $0x10] sm:$0xff] %vm459, %v1016
      %1058 = vst.msk [vmem:[#allocation2 + $0x18] sm:$0xff] %vm459, %v1017
      %1059 = vst.msk [vmem:[#allocation2 + $0x20] sm:$0xff] %vm459, %v1018
      %1060 = vst.msk [vmem:[#allocation2 + $0x28] sm:$0xff] %vm459, %v1019
      %1061 = vst.msk [vmem:[#allocation2 + $0x30] sm:$0xff] %vm459, %v1020
      %1062 = vst.msk [vmem:[#allocation2 + $0x38] sm:$0xff] %vm459, %v1021
      %1063 = vst.msk [vmem:[#allocation2 + $0x40] sm:$0xff] %vm459, %v1022
      %1064 = vst.msk [vmem:[#allocation2 + $0x48] sm:$0xff] %vm459, %v1023
      %1065 = vst.msk [vmem:[#allocation2 + $0x50] sm:$0xff] %vm459, %v1024
      %1066 = vst.msk [vmem:[#allocation2 + $0x58] sm:$0xff] %vm459, %v1025
      %1067 = vst.msk [vmem:[#allocation2 + $0x60] sm:$0xff] %vm459, %v1026
      %1068 = vst.msk [vmem:[#allocation2 + $0x68] sm:$0xff] %vm459, %v1027
      %1069 = vst.msk [vmem:[#allocation2 + $0x70] sm:$0xff] %vm459, %v1028
      %1070 = vst.msk [vmem:[#allocation2 + $0x78] sm:$0xff] %vm459, %v1029
      %1071 = vst.msk [vmem:[#allocation2 + $0x80] sm:$0xff] %vm459, %v1030
      %1072 = vst.msk [vmem:[#allocation2 + $0x88] sm:$0xff] %vm459, %v1031
      %1073 = vst.msk [vmem:[#allocation2 + $0x90] sm:$0xff] %vm459, %v1032
      %1074 = vst.msk [vmem:[#allocation2 + $0x98] sm:$0xff] %vm459, %v1033
      %1075 = vst.msk [vmem:[#allocation2 + $0xa0] sm:$0xff] %vm459, %v1034
      %1076 = vst.msk [vmem:[#allocation2 + $0xa8] sm:$0xff] %vm459, %v1035
      %1077 = vst.msk [vmem:[#allocation2 + $0xb0] sm:$0xff] %vm459, %v1036
      %1078 = vst.msk [vmem:[#allocation2 + $0xb8] sm:$0xff] %vm459, %v1037
      %1079 = vst.msk [vmem:[#allocation2 + $0xc0] sm:$0xff] %vm459, %v1038
      %1080 = vst.msk [vmem:[#allocation2 + $0xc8] sm:$0xff] %vm459, %v1039
      %1081 = vst.msk [vmem:[#allocation2 + $0xd0] sm:$0xff] %vm459, %v1040
      %1082 = vst.msk [vmem:[#allocation2 + $0xd8] sm:$0xff] %vm459, %v1041
      %1083 = vst.msk [vmem:[#allocation2 + $0xe0] sm:$0xff] %vm459, %v1042
      %1084 = vst.msk [vmem:[#allocation2 + $0xe8] sm:$0xff] %vm459, %v1043
      %1085 = vst.msk [vmem:[#allocation2 + $0xf0] sm:$0xff] %vm459, %v1044
      %1086 = vst.msk [vmem:[#allocation2 + $0xf8] sm:$0xff] %vm459, %v1045
      %1087 = vst.msk [vmem:[#allocation2 + $0x100] sm:$0xff] %vm459, %v1046
      %1088 = vst.msk [vmem:[#allocation2 + $0x108] sm:$0xff] %vm459, %v1047
      %1089 = vst.msk [vmem:[#allocation2 + $0x110] sm:$0xff] %vm459, %v1048
      %1090 = vst.msk [vmem:[#allocation2 + $0x118] sm:$0xff] %vm459, %v1049
      %1091 = vst.msk [vmem:[#allocation2 + $0x120] sm:$0xff] %vm459, %v1050
      %1092 = vst.msk [vmem:[#allocation2 + $0x128] sm:$0xff] %vm459, %v1051
      %1093 = vst.msk [vmem:[#allocation2 + $0x130] sm:$0xff] %vm459, %v1052
      %1094 = vst.msk [vmem:[#allocation2 + $0x138] sm:$0xff] %vm459, %v1053
      %vm1095 = vcmask 60416
      %1096 = vst.msk [vmem:[#allocation2 + $0x140] sm:$0xf] %vm1095, %v1054
      %1097 = vst.msk [vmem:[#allocation2 + $0x144] sm:$0xff] %vm459, 0.0
      %1098 = vst.msk [vmem:[#allocation2 + $0x14c] sm:$0xff] %vm459, 0.0
      %vm1099 = vcmask 58368
      %1100 = vst.msk [vmem:[#allocation2 + $0x154] sm:$0x3] %vm1099, 0.0
      %v1101 = vld [vmem:[#allocation2] sm:$0xff]
      %v1102 = vld [vmem:[#allocation2 + $0x8] sm:$0xff]
      %v1103 = vld [vmem:[#allocation2 + $0x10] sm:$0xff]
      %v1104 = vld [vmem:[#allocation2 + $0x18] sm:$0xff]
      %v1105 = vld [vmem:[#allocation2 + $0x20] sm:$0xff]
      %v1106 = vld [vmem:[#allocation2 + $0x28] sm:$0xff]
      %v1107 = vld [vmem:[#allocation2 + $0x30] sm:$0xff]
      %v1108 = vld [vmem:[#allocation2 + $0x38] sm:$0xff]
      %v1109 = vld [vmem:[#allocation2 + $0x40] sm:$0xff]
      %v1110 = vld [vmem:[#allocation2 + $0x48] sm:$0xff]
      %v1111 = vld [vmem:[#allocation2 + $0x50] sm:$0xff]
      %v1112 = vld [vmem:[#allocation2 + $0x58] sm:$0xff]
      %v1113 = vld [vmem:[#allocation2 + $0x60] sm:$0xff]
      %v1114 = vld [vmem:[#allocation2 + $0x68] sm:$0xff]
      %v1115 = vld [vmem:[#allocation2 + $0x70] sm:$0xff]
      %v1116 = vld [vmem:[#allocation2 + $0x78] sm:$0xff]
      %v1117 = vld [vmem:[#allocation2 + $0x80] sm:$0xff]
      %v1118 = vld [vmem:[#allocation2 + $0x88] sm:$0xff]
      %v1119 = vld [vmem:[#allocation2 + $0x90] sm:$0xff]
      %v1120 = vld [vmem:[#allocation2 + $0x98] sm:$0xff]
      %v1121 = vld [vmem:[#allocation2 + $0xa0] sm:$0xff]
      %v1122 = vld [vmem:[#allocation2 + $0xa8] sm:$0xff]
      %v1123 = vld [vmem:[#allocation2 + $0xb0] sm:$0xff]
      %v1124 = vld [vmem:[#allocation2 + $0xb8] sm:$0xff]
      %v1125 = vld [vmem:[#allocation2 + $0xc0] sm:$0xff]
      %v1126 = vld [vmem:[#allocation2 + $0xc8] sm:$0xff]
      %v1127 = vld [vmem:[#allocation2 + $0xd0] sm:$0xff]
      %v1128 = vld [vmem:[#allocation2 + $0xd8] sm:$0xff]
      %v1129 = vld [vmem:[#allocation2 + $0xe0] sm:$0xff]
      %v1130 = vld [vmem:[#allocation2 + $0xe8] sm:$0xff]
      %v1131 = vld [vmem:[#allocation2 + $0xf0] sm:$0xff]
      %v1132 = vld [vmem:[#allocation2 + $0xf8] sm:$0xff]
      %v1133 = vld [vmem:[#allocation2 + $0x100] sm:$0xff]
      %v1134 = vld [vmem:[#allocation2 + $0x108] sm:$0xff]
      %v1135 = vld [vmem:[#allocation2 + $0x110] sm:$0xff]
      %v1136 = vld [vmem:[#allocation2 + $0x118] sm:$0xff]
      %1137 = vst.msk [vmem:[#allocation3] sm:$0xff] %vm459, %v1101
      %1138 = vst.msk [vmem:[#allocation3 + $0x8] sm:$0xff] %vm459, %v1102
      %1139 = vst.msk [vmem:[#allocation3 + $0x10] sm:$0xff] %vm459, %v1103
      %1140 = vst.msk [vmem:[#allocation3 + $0x18] sm:$0xff] %vm459, %v1104
      %1141 = vst.msk [vmem:[#allocation3 + $0x20] sm:$0xff] %vm459, %v1105
      %1142 = vst.msk [vmem:[#allocation3 + $0x28] sm:$0xff] %vm459, %v1106
      %1143 = vst.msk [vmem:[#allocation3 + $0x30] sm:$0xff] %vm459, %v1107
      %1144 = vst.msk [vmem:[#allocation3 + $0x38] sm:$0xff] %vm459, %v1108
      %1145 = vst.msk [vmem:[#allocation3 + $0x40] sm:$0xff] %vm459, %v1109
      %1146 = vst.msk [vmem:[#allocation3 + $0x48] sm:$0xff] %vm459, %v1110
      %1147 = vst.msk [vmem:[#allocation3 + $0x50] sm:$0xff] %vm459, %v1111
      %1148 = vst.msk [vmem:[#allocation3 + $0x58] sm:$0xff] %vm459, %v1112
      %1149 = vst.msk [vmem:[#allocation3 + $0x60] sm:$0xff] %vm459, %v1113
      %1150 = vst.msk [vmem:[#allocation3 + $0x68] sm:$0xff] %vm459, %v1114
      %1151 = vst.msk [vmem:[#allocation3 + $0x70] sm:$0xff] %vm459, %v1115
      %1152 = vst.msk [vmem:[#allocation3 + $0x78] sm:$0xff] %vm459, %v1116
      %1153 = vst.msk [vmem:[#allocation3 + $0x80] sm:$0xff] %vm459, %v1117
      %1154 = vst.msk [vmem:[#allocation3 + $0x88] sm:$0xff] %vm459, %v1118
      %1155 = vst.msk [vmem:[#allocation3 + $0x90] sm:$0xff] %vm459, %v1119
      %1156 = vst.msk [vmem:[#allocation3 + $0x98] sm:$0xff] %vm459, %v1120
      %1157 = vst.msk [vmem:[#allocation3 + $0xa0] sm:$0xff] %vm459, %v1121
      %1158 = vst.msk [vmem:[#allocation3 + $0xa8] sm:$0xff] %vm459, %v1122
      %1159 = vst.msk [vmem:[#allocation3 + $0xb0] sm:$0xff] %vm459, %v1123
      %1160 = vst.msk [vmem:[#allocation3 + $0xb8] sm:$0xff] %vm459, %v1124
      %1161 = vst.msk [vmem:[#allocation3 + $0xc0] sm:$0xff] %vm459, %v1125
      %1162 = vst.msk [vmem:[#allocation3 + $0xc8] sm:$0xff] %vm459, %v1126
      %1163 = vst.msk [vmem:[#allocation3 + $0xd0] sm:$0xff] %vm459, %v1127
      %1164 = vst.msk [vmem:[#allocation3 + $0xd8] sm:$0xff] %vm459, %v1128
      %1165 = vst.msk [vmem:[#allocation3 + $0xe0] sm:$0xff] %vm459, %v1129
      %1166 = vst.msk [vmem:[#allocation3 + $0xe8] sm:$0xff] %vm459, %v1130
      %1167 = vst.msk [vmem:[#allocation3 + $0xf0] sm:$0xff] %vm459, %v1131
      %1168 = vst.msk [vmem:[#allocation3 + $0xf8] sm:$0xff] %vm459, %v1132
      %1169 = vst.msk [vmem:[#allocation3 + $0x100] sm:$0xff] %vm459, %v1133
      %1170 = vst.msk [vmem:[#allocation3 + $0x108] sm:$0xff] %vm459, %v1134
      %1171 = vst.msk [vmem:[#allocation3 + $0x110] sm:$0xff] %vm459, %v1135
      %1172 = vst.msk [vmem:[#allocation3 + $0x118] sm:$0xff] %vm459, %v1136
      %v1173 = vld [vmem:[#allocation2 + $0x1] sm:$0xff]
      %v1174 = vld [vmem:[#allocation2 + $0x9] sm:$0xff]
      %v1175 = vld [vmem:[#allocation2 + $0x11] sm:$0xff]
      %v1176 = vld [vmem:[#allocation2 + $0x19] sm:$0xff]
      %v1177 = vld [vmem:[#allocation2 + $0x21] sm:$0xff]
      %v1178 = vld [vmem:[#allocation2 + $0x29] sm:$0xff]
      %v1179 = vld [vmem:[#allocation2 + $0x31] sm:$0xff]
      %v1180 = vld [vmem:[#allocation2 + $0x39] sm:$0xff]
      %v1181 = vld [vmem:[#allocation2 + $0x41] sm:$0xff]
      %v1182 = vld [vmem:[#allocation2 + $0x49] sm:$0xff]
      %v1183 = vld [vmem:[#allocation2 + $0x51] sm:$0xff]
      %v1184 = vld [vmem:[#allocation2 + $0x59] sm:$0xff]
      %v1185 = vld [vmem:[#allocation2 + $0x61] sm:$0xff]
      %v1186 = vld [vmem:[#allocation2 + $0x69] sm:$0xff]
      %v1187 = vld [vmem:[#allocation2 + $0x71] sm:$0xff]
      %v1188 = vld [vmem:[#allocation2 + $0x79] sm:$0xff]
      %v1189 = vld [vmem:[#allocation2 + $0x81] sm:$0xff]
      %v1190 = vld [vmem:[#allocation2 + $0x89] sm:$0xff]
      %v1191 = vld [vmem:[#allocation2 + $0x91] sm:$0xff]
      %v1192 = vld [vmem:[#allocation2 + $0x99] sm:$0xff]
      %v1193 = vld [vmem:[#allocation2 + $0xa1] sm:$0xff]
      %v1194 = vld [vmem:[#allocation2 + $0xa9] sm:$0xff]
      %v1195 = vld [vmem:[#allocation2 + $0xb1] sm:$0xff]
      %v1196 = vld [vmem:[#allocation2 + $0xb9] sm:$0xff]
      %v1197 = vld [vmem:[#allocation2 + $0xc1] sm:$0xff]
      %v1198 = vld [vmem:[#allocation2 + $0xc9] sm:$0xff]
      %v1199 = vld [vmem:[#allocation2 + $0xd1] sm:$0xff]
      %v1200 = vld [vmem:[#allocation2 + $0xd9] sm:$0xff]
      %v1201 = vld [vmem:[#allocation2 + $0xe1] sm:$0xff]
      %v1202 = vld [vmem:[#allocation2 + $0xe9] sm:$0xff]
      %v1203 = vld [vmem:[#allocation2 + $0xf1] sm:$0xff]
      %v1204 = vld [vmem:[#allocation2 + $0xf9] sm:$0xff]
      %v1205 = vld [vmem:[#allocation2 + $0x101] sm:$0xff]
      %v1206 = vld [vmem:[#allocation2 + $0x109] sm:$0xff]
      %v1207 = vld [vmem:[#allocation2 + $0x111] sm:$0xff]
      %v1208 = vld [vmem:[#allocation2 + $0x119] sm:$0xff]
      %1245 = vrot.lane.b32.xlu0 %v1173, 8
      %v1246 = vpop.permute.xlu0 %1245
      %1247 = vrot.lane.b32.xlu0 %v1174, 8
      %v1248 = vpop.permute.xlu0 %1247
      %1249 = vrot.lane.b32.xlu0 %v1175, 8
      %v1250 = vpop.permute.xlu0 %1249
      %1251 = vrot.lane.b32.xlu0 %v1176, 8
      %v1252 = vpop.permute.xlu0 %1251
      %1253 = vrot.lane.b32.xlu0 %v1177, 8
      %v1254 = vpop.permute.xlu0 %1253
      %1255 = vrot.lane.b32.xlu0 %v1178, 8
      %v1256 = vpop.permute.xlu0 %1255
      %1257 = vrot.lane.b32.xlu0 %v1179, 8
      %v1258 = vpop.permute.xlu0 %1257
      %1259 = vrot.lane.b32.xlu0 %v1180, 8
      %v1260 = vpop.permute.xlu0 %1259
      %1261 = vrot.lane.b32.xlu0 %v1181, 8
      %v1262 = vpop.permute.xlu0 %1261
      %1263 = vrot.lane.b32.xlu0 %v1182, 8
      %v1264 = vpop.permute.xlu0 %1263
      %1265 = vrot.lane.b32.xlu0 %v1183, 8
      %v1266 = vpop.permute.xlu0 %1265
      %1267 = vrot.lane.b32.xlu0 %v1184, 8
      %v1268 = vpop.permute.xlu0 %1267
      %1269 = vrot.lane.b32.xlu0 %v1185, 8
      %v1270 = vpop.permute.xlu0 %1269
      %1271 = vrot.lane.b32.xlu0 %v1186, 8
      %v1272 = vpop.permute.xlu0 %1271
      %1273 = vrot.lane.b32.xlu0 %v1187, 8
      %v1274 = vpop.permute.xlu0 %1273
      %1275 = vrot.lane.b32.xlu0 %v1188, 8
      %v1276 = vpop.permute.xlu0 %1275
      %1277 = vrot.lane.b32.xlu0 %v1189, 8
      %v1278 = vpop.permute.xlu0 %1277
      %1279 = vrot.lane.b32.xlu0 %v1190, 8
      %v1280 = vpop.permute.xlu0 %1279
      %1281 = vrot.lane.b32.xlu0 %v1191, 8
      %v1282 = vpop.permute.xlu0 %1281
      %1283 = vrot.lane.b32.xlu0 %v1192, 8
      %v1284 = vpop.permute.xlu0 %1283
      %1285 = vrot.lane.b32.xlu0 %v1193, 8
      %v1286 = vpop.permute.xlu0 %1285
      %1287 = vrot.lane.b32.xlu0 %v1194, 8
      %v1288 = vpop.permute.xlu0 %1287
      %1289 = vrot.lane.b32.xlu0 %v1195, 8
      %v1290 = vpop.permute.xlu0 %1289
      %1291 = vrot.lane.b32.xlu0 %v1196, 8
      %v1292 = vpop.permute.xlu0 %1291
      %1293 = vrot.lane.b32.xlu0 %v1197, 8
      %v1294 = vpop.permute.xlu0 %1293
      %1295 = vrot.lane.b32.xlu0 %v1198, 8
      %v1296 = vpop.permute.xlu0 %1295
      %1297 = vrot.lane.b32.xlu0 %v1199, 8
      %v1298 = vpop.permute.xlu0 %1297
      %1299 = vrot.lane.b32.xlu0 %v1200, 8
      %v1300 = vpop.permute.xlu0 %1299
      %1301 = vrot.lane.b32.xlu0 %v1201, 8
      %v1302 = vpop.permute.xlu0 %1301
      %1303 = vrot.lane.b32.xlu0 %v1202, 8
      %v1304 = vpop.permute.xlu0 %1303
      %1305 = vrot.lane.b32.xlu0 %v1203, 8
      %v1306 = vpop.permute.xlu0 %1305
      %1307 = vrot.lane.b32.xlu0 %v1204, 8
      %v1308 = vpop.permute.xlu0 %1307
      %1309 = vrot.lane.b32.xlu0 %v1205, 8
      %v1310 = vpop.permute.xlu0 %1309
      %1311 = vrot.lane.b32.xlu0 %v1206, 8
      %v1312 = vpop.permute.xlu0 %1311
      %1313 = vrot.lane.b32.xlu0 %v1207, 8
      %v1314 = vpop.permute.xlu0 %1313
      %1315 = vrot.lane.b32.xlu0 %v1208, 8
      %v1316 = vpop.permute.xlu0 %1315
      %vm1353 = vcmask 130112
      %1354 = vst.msk [vmem:[#allocation3] sm:$0xff] %vm1353, %v1246
      %1355 = vst.msk [vmem:[#allocation3 + $0x8] sm:$0xff] %vm1353, %v1248
      %1356 = vst.msk [vmem:[#allocation3 + $0x10] sm:$0xff] %vm1353, %v1250
      %1357 = vst.msk [vmem:[#allocation3 + $0x18] sm:$0xff] %vm1353, %v1252
      %1358 = vst.msk [vmem:[#allocation3 + $0x20] sm:$0xff] %vm1353, %v1254
      %1359 = vst.msk [vmem:[#allocation3 + $0x28] sm:$0xff] %vm1353, %v1256
      %1360 = vst.msk [vmem:[#allocation3 + $0x30] sm:$0xff] %vm1353, %v1258
      %1361 = vst.msk [vmem:[#allocation3 + $0x38] sm:$0xff] %vm1353, %v1260
      %1362 = vst.msk [vmem:[#allocation3 + $0x40] sm:$0xff] %vm1353, %v1262
      %1363 = vst.msk [vmem:[#allocation3 + $0x48] sm:$0xff] %vm1353, %v1264
      %1364 = vst.msk [vmem:[#allocation3 + $0x50] sm:$0xff] %vm1353, %v1266
      %1365 = vst.msk [vmem:[#allocation3 + $0x58] sm:$0xff] %vm1353, %v1268
      %1366 = vst.msk [vmem:[#allocation3 + $0x60] sm:$0xff] %vm1353, %v1270
      %1367 = vst.msk [vmem:[#allocation3 + $0x68] sm:$0xff] %vm1353, %v1272
      %1368 = vst.msk [vmem:[#allocation3 + $0x70] sm:$0xff] %vm1353, %v1274
      %1369 = vst.msk [vmem:[#allocation3 + $0x78] sm:$0xff] %vm1353, %v1276
      %1370 = vst.msk [vmem:[#allocation3 + $0x80] sm:$0xff] %vm1353, %v1278
      %1371 = vst.msk [vmem:[#allocation3 + $0x88] sm:$0xff] %vm1353, %v1280
      %1372 = vst.msk [vmem:[#allocation3 + $0x90] sm:$0xff] %vm1353, %v1282
      %1373 = vst.msk [vmem:[#allocation3 + $0x98] sm:$0xff] %vm1353, %v1284
      %1374 = vst.msk [vmem:[#allocation3 + $0xa0] sm:$0xff] %vm1353, %v1286
      %1375 = vst.msk [vmem:[#allocation3 + $0xa8] sm:$0xff] %vm1353, %v1288
      %1376 = vst.msk [vmem:[#allocation3 + $0xb0] sm:$0xff] %vm1353, %v1290
      %1377 = vst.msk [vmem:[#allocation3 + $0xb8] sm:$0xff] %vm1353, %v1292
      %1378 = vst.msk [vmem:[#allocation3 + $0xc0] sm:$0xff] %vm1353, %v1294
      %1379 = vst.msk [vmem:[#allocation3 + $0xc8] sm:$0xff] %vm1353, %v1296
      %1380 = vst.msk [vmem:[#allocation3 + $0xd0] sm:$0xff] %vm1353, %v1298
      %1381 = vst.msk [vmem:[#allocation3 + $0xd8] sm:$0xff] %vm1353, %v1300
      %1382 = vst.msk [vmem:[#allocation3 + $0xe0] sm:$0xff] %vm1353, %v1302
      %1383 = vst.msk [vmem:[#allocation3 + $0xe8] sm:$0xff] %vm1353, %v1304
      %1384 = vst.msk [vmem:[#allocation3 + $0xf0] sm:$0xff] %vm1353, %v1306
      %1385 = vst.msk [vmem:[#allocation3 + $0xf8] sm:$0xff] %vm1353, %v1308
      %1386 = vst.msk [vmem:[#allocation3 + $0x100] sm:$0xff] %vm1353, %v1310
      %1387 = vst.msk [vmem:[#allocation3 + $0x108] sm:$0xff] %vm1353, %v1312
      %1388 = vst.msk [vmem:[#allocation3 + $0x110] sm:$0xff] %vm1353, %v1314
      %1389 = vst.msk [vmem:[#allocation3 + $0x118] sm:$0xff] %vm1353, %v1316
      %v1390 = vld [vmem:[#allocation2 + $0x2] sm:$0xff]
      %v1391 = vld [vmem:[#allocation2 + $0xa] sm:$0xff]
      %v1392 = vld [vmem:[#allocation2 + $0x12] sm:$0xff]
      %v1393 = vld [vmem:[#allocation2 + $0x1a] sm:$0xff]
      %v1394 = vld [vmem:[#allocation2 + $0x22] sm:$0xff]
      %v1395 = vld [vmem:[#allocation2 + $0x2a] sm:$0xff]
      %v1396 = vld [vmem:[#allocation2 + $0x32] sm:$0xff]
      %v1397 = vld [vmem:[#allocation2 + $0x3a] sm:$0xff]
      %v1398 = vld [vmem:[#allocation2 + $0x42] sm:$0xff]
      %v1399 = vld [vmem:[#allocation2 + $0x4a] sm:$0xff]
      %v1400 = vld [vmem:[#allocation2 + $0x52] sm:$0xff]
      %v1401 = vld [vmem:[#allocation2 + $0x5a] sm:$0xff]
      %v1402 = vld [vmem:[#allocation2 + $0x62] sm:$0xff]
      %v1403 = vld [vmem:[#allocation2 + $0x6a] sm:$0xff]
      %v1404 = vld [vmem:[#allocation2 + $0x72] sm:$0xff]
      %v1405 = vld [vmem:[#allocation2 + $0x7a] sm:$0xff]
      %v1406 = vld [vmem:[#allocation2 + $0x82] sm:$0xff]
      %v1407 = vld [vmem:[#allocation2 + $0x8a] sm:$0xff]
      %v1408 = vld [vmem:[#allocation2 + $0x92] sm:$0xff]
      %v1409 = vld [vmem:[#allocation2 + $0x9a] sm:$0xff]
      %v1410 = vld [vmem:[#allocation2 + $0xa2] sm:$0xff]
      %v1411 = vld [vmem:[#allocation2 + $0xaa] sm:$0xff]
      %v1412 = vld [vmem:[#allocation2 + $0xb2] sm:$0xff]
      %v1413 = vld [vmem:[#allocation2 + $0xba] sm:$0xff]
      %v1414 = vld [vmem:[#allocation2 + $0xc2] sm:$0xff]
      %v1415 = vld [vmem:[#allocation2 + $0xca] sm:$0xff]
      %v1416 = vld [vmem:[#allocation2 + $0xd2] sm:$0xff]
      %v1417 = vld [vmem:[#allocation2 + $0xda] sm:$0xff]
      %v1418 = vld [vmem:[#allocation2 + $0xe2] sm:$0xff]
      %v1419 = vld [vmem:[#allocation2 + $0xea] sm:$0xff]
      %v1420 = vld [vmem:[#allocation2 + $0xf2] sm:$0xff]
      %v1421 = vld [vmem:[#allocation2 + $0xfa] sm:$0xff]
      %v1422 = vld [vmem:[#allocation2 + $0x102] sm:$0xff]
      %v1423 = vld [vmem:[#allocation2 + $0x10a] sm:$0xff]
      %v1424 = vld [vmem:[#allocation2 + $0x112] sm:$0xff]
      %v1425 = vld [vmem:[#allocation2 + $0x11a] sm:$0xff]
      %1462 = vrot.lane.b32.xlu0 %v1390, 16
      %v1463 = vpop.permute.xlu0 %1462
      %1464 = vrot.lane.b32.xlu0 %v1391, 16
      %v1465 = vpop.permute.xlu0 %1464
      %1466 = vrot.lane.b32.xlu0 %v1392, 16
      %v1467 = vpop.permute.xlu0 %1466
      %1468 = vrot.lane.b32.xlu0 %v1393, 16
      %v1469 = vpop.permute.xlu0 %1468
      %1470 = vrot.lane.b32.xlu0 %v1394, 16
      %v1471 = vpop.permute.xlu0 %1470
      %1472 = vrot.lane.b32.xlu0 %v1395, 16
      %v1473 = vpop.permute.xlu0 %1472
      %1474 = vrot.lane.b32.xlu0 %v1396, 16
      %v1475 = vpop.permute.xlu0 %1474
      %1476 = vrot.lane.b32.xlu0 %v1397, 16
      %v1477 = vpop.permute.xlu0 %1476
      %1478 = vrot.lane.b32.xlu0 %v1398, 16
      %v1479 = vpop.permute.xlu0 %1478
      %1480 = vrot.lane.b32.xlu0 %v1399, 16
      %v1481 = vpop.permute.xlu0 %1480
      %1482 = vrot.lane.b32.xlu0 %v1400, 16
      %v1483 = vpop.permute.xlu0 %1482
      %1484 = vrot.lane.b32.xlu0 %v1401, 16
      %v1485 = vpop.permute.xlu0 %1484
      %1486 = vrot.lane.b32.xlu0 %v1402, 16
      %v1487 = vpop.permute.xlu0 %1486
      %1488 = vrot.lane.b32.xlu0 %v1403, 16
      %v1489 = vpop.permute.xlu0 %1488
      %1490 = vrot.lane.b32.xlu0 %v1404, 16
      %v1491 = vpop.permute.xlu0 %1490
      %1492 = vrot.lane.b32.xlu0 %v1405, 16
      %v1493 = vpop.permute.xlu0 %1492
      %1494 = vrot.lane.b32.xlu0 %v1406, 16
      %v1495 = vpop.permute.xlu0 %1494
      %1496 = vrot.lane.b32.xlu0 %v1407, 16
      %v1497 = vpop.permute.xlu0 %1496
      %1498 = vrot.lane.b32.xlu0 %v1408, 16
      %v1499 = vpop.permute.xlu0 %1498
      %1500 = vrot.lane.b32.xlu0 %v1409, 16
      %v1501 = vpop.permute.xlu0 %1500
      %1502 = vrot.lane.b32.xlu0 %v1410, 16
      %v1503 = vpop.permute.xlu0 %1502
      %1504 = vrot.lane.b32.xlu0 %v1411, 16
      %v1505 = vpop.permute.xlu0 %1504
      %1506 = vrot.lane.b32.xlu0 %v1412, 16
      %v1507 = vpop.permute.xlu0 %1506
      %1508 = vrot.lane.b32.xlu0 %v1413, 16
      %v1509 = vpop.permute.xlu0 %1508
      %1510 = vrot.lane.b32.xlu0 %v1414, 16
      %v1511 = vpop.permute.xlu0 %1510
      %1512 = vrot.lane.b32.xlu0 %v1415, 16
      %v1513 = vpop.permute.xlu0 %1512
      %1514 = vrot.lane.b32.xlu0 %v1416, 16
      %v1515 = vpop.permute.xlu0 %1514
      %1516 = vrot.lane.b32.xlu0 %v1417, 16
      %v1517 = vpop.permute.xlu0 %1516
      %1518 = vrot.lane.b32.xlu0 %v1418, 16
      %v1519 = vpop.permute.xlu0 %1518
      %1520 = vrot.lane.b32.xlu0 %v1419, 16
      %v1521 = vpop.permute.xlu0 %1520
      %1522 = vrot.lane.b32.xlu0 %v1420, 16
      %v1523 = vpop.permute.xlu0 %1522
      %1524 = vrot.lane.b32.xlu0 %v1421, 16
      %v1525 = vpop.permute.xlu0 %1524
      %1526 = vrot.lane.b32.xlu0 %v1422, 16
      %v1527 = vpop.permute.xlu0 %1526
      %1528 = vrot.lane.b32.xlu0 %v1423, 16
      %v1529 = vpop.permute.xlu0 %1528
      %1530 = vrot.lane.b32.xlu0 %v1424, 16
      %v1531 = vpop.permute.xlu0 %1530
      %1532 = vrot.lane.b32.xlu0 %v1425, 16
      %v1533 = vpop.permute.xlu0 %1532
      %vm1570 = vcmask 195712
      %1571 = vst.msk [vmem:[#allocation3] sm:$0xff] %vm1570, %v1463
      %1572 = vst.msk [vmem:[#allocation3 + $0x8] sm:$0xff] %vm1570, %v1465
      %1573 = vst.msk [vmem:[#allocation3 + $0x10] sm:$0xff] %vm1570, %v1467
      %1574 = vst.msk [vmem:[#allocation3 + $0x18] sm:$0xff] %vm1570, %v1469
      %1575 = vst.msk [vmem:[#allocation3 + $0x20] sm:$0xff] %vm1570, %v1471
      %1576 = vst.msk [vmem:[#allocation3 + $0x28] sm:$0xff] %vm1570, %v1473
      %1577 = vst.msk [vmem:[#allocation3 + $0x30] sm:$0xff] %vm1570, %v1475
      %1578 = vst.msk [vmem:[#allocation3 + $0x38] sm:$0xff] %vm1570, %v1477
      %1579 = vst.msk [vmem:[#allocation3 + $0x40] sm:$0xff] %vm1570, %v1479
      %1580 = vst.msk [vmem:[#allocation3 + $0x48] sm:$0xff] %vm1570, %v1481
      %1581 = vst.msk [vmem:[#allocation3 + $0x50] sm:$0xff] %vm1570, %v1483
      %1582 = vst.msk [vmem:[#allocation3 + $0x58] sm:$0xff] %vm1570, %v1485
      %1583 = vst.msk [vmem:[#allocation3 + $0x60] sm:$0xff] %vm1570, %v1487
      %1584 = vst.msk [vmem:[#allocation3 + $0x68] sm:$0xff] %vm1570, %v1489
      %1585 = vst.msk [vmem:[#allocation3 + $0x70] sm:$0xff] %vm1570, %v1491
      %1586 = vst.msk [vmem:[#allocation3 + $0x78] sm:$0xff] %vm1570, %v1493
      %1587 = vst.msk [vmem:[#allocation3 + $0x80] sm:$0xff] %vm1570, %v1495
      %1588 = vst.msk [vmem:[#allocation3 + $0x88] sm:$0xff] %vm1570, %v1497
      %1589 = vst.msk [vmem:[#allocation3 + $0x90] sm:$0xff] %vm1570, %v1499
      %1590 = vst.msk [vmem:[#allocation3 + $0x98] sm:$0xff] %vm1570, %v1501
      %1591 = vst.msk [vmem:[#allocation3 + $0xa0] sm:$0xff] %vm1570, %v1503
      %1592 = vst.msk [vmem:[#allocation3 + $0xa8] sm:$0xff] %vm1570, %v1505
      %1593 = vst.msk [vmem:[#allocation3 + $0xb0] sm:$0xff] %vm1570, %v1507
      %1594 = vst.msk [vmem:[#allocation3 + $0xb8] sm:$0xff] %vm1570, %v1509
      %1595 = vst.msk [vmem:[#allocation3 + $0xc0] sm:$0xff] %vm1570, %v1511
      %1596 = vst.msk [vmem:[#allocation3 + $0xc8] sm:$0xff] %vm1570, %v1513
      %1597 = vst.msk [vmem:[#allocation3 + $0xd0] sm:$0xff] %vm1570, %v1515
      %1598 = vst.msk [vmem:[#allocation3 + $0xd8] sm:$0xff] %vm1570, %v1517
      %1599 = vst.msk [vmem:[#allocation3 + $0xe0] sm:$0xff] %vm1570, %v1519
      %1600 = vst.msk [vmem:[#allocation3 + $0xe8] sm:$0xff] %vm1570, %v1521
      %1601 = vst.msk [vmem:[#allocation3 + $0xf0] sm:$0xff] %vm1570, %v1523
      %1602 = vst.msk [vmem:[#allocation3 + $0xf8] sm:$0xff] %vm1570, %v1525
      %1603 = vst.msk [vmem:[#allocation3 + $0x100] sm:$0xff] %vm1570, %v1527
      %1604 = vst.msk [vmem:[#allocation3 + $0x108] sm:$0xff] %vm1570, %v1529
      %1605 = vst.msk [vmem:[#allocation3 + $0x110] sm:$0xff] %vm1570, %v1531
      %1606 = vst.msk [vmem:[#allocation3 + $0x118] sm:$0xff] %vm1570, %v1533
      %v1607 = vld [vmem:[#allocation2 + $0x12] sm:$0xff]
      %v1608 = vld [vmem:[#allocation2 + $0x1a] sm:$0xff]
      %v1609 = vld [vmem:[#allocation2 + $0x22] sm:$0xff]
      %v1610 = vld [vmem:[#allocation2 + $0x2a] sm:$0xff]
      %v1611 = vld [vmem:[#allocation2 + $0x32] sm:$0xff]
      %v1612 = vld [vmem:[#allocation2 + $0x3a] sm:$0xff]
      %v1613 = vld [vmem:[#allocation2 + $0x42] sm:$0xff]
      %v1614 = vld [vmem:[#allocation2 + $0x4a] sm:$0xff]
      %v1615 = vld [vmem:[#allocation2 + $0x52] sm:$0xff]
      %v1616 = vld [vmem:[#allocation2 + $0x5a] sm:$0xff]
      %v1617 = vld [vmem:[#allocation2 + $0x62] sm:$0xff]
      %v1618 = vld [vmem:[#allocation2 + $0x6a] sm:$0xff]
      %v1619 = vld [vmem:[#allocation2 + $0x72] sm:$0xff]
      %v1620 = vld [vmem:[#allocation2 + $0x7a] sm:$0xff]
      %v1621 = vld [vmem:[#allocation2 + $0x82] sm:$0xff]
      %v1622 = vld [vmem:[#allocation2 + $0x8a] sm:$0xff]
      %v1623 = vld [vmem:[#allocation2 + $0x92] sm:$0xff]
      %v1624 = vld [vmem:[#allocation2 + $0x9a] sm:$0xff]
      %v1625 = vld [vmem:[#allocation2 + $0xa2] sm:$0xff]
      %v1626 = vld [vmem:[#allocation2 + $0xaa] sm:$0xff]
      %v1627 = vld [vmem:[#allocation2 + $0xb2] sm:$0xff]
      %v1628 = vld [vmem:[#allocation2 + $0xba] sm:$0xff]
      %v1629 = vld [vmem:[#allocation2 + $0xc2] sm:$0xff]
      %v1630 = vld [vmem:[#allocation2 + $0xca] sm:$0xff]
      %v1631 = vld [vmem:[#allocation2 + $0xd2] sm:$0xff]
      %v1632 = vld [vmem:[#allocation2 + $0xda] sm:$0xff]
      %v1633 = vld [vmem:[#allocation2 + $0xe2] sm:$0xff]
      %v1634 = vld [vmem:[#allocation2 + $0xea] sm:$0xff]
      %v1635 = vld [vmem:[#allocation2 + $0xf2] sm:$0xff]
      %v1636 = vld [vmem:[#allocation2 + $0xfa] sm:$0xff]
      %v1637 = vld [vmem:[#allocation2 + $0x102] sm:$0xff]
      %v1638 = vld [vmem:[#allocation2 + $0x10a] sm:$0xff]
      %v1639 = vld [vmem:[#allocation2 + $0x112] sm:$0xff]
      %v1640 = vld [vmem:[#allocation2 + $0x11a] sm:$0xff]
      %v1641 = vld [vmem:[#allocation2 + $0x122] sm:$0xff]
      %v1642 = vld [vmem:[#allocation2 + $0x12a] sm:$0xff]
      %1679 = vrot.lane.b32.xlu0 %v1607, 24
      %v1680 = vpop.permute.xlu0 %1679
      %1681 = vrot.lane.b32.xlu0 %v1608, 24
      %v1682 = vpop.permute.xlu0 %1681
      %1683 = vrot.lane.b32.xlu0 %v1609, 24
      %v1684 = vpop.permute.xlu0 %1683
      %1685 = vrot.lane.b32.xlu0 %v1610, 24
      %v1686 = vpop.permute.xlu0 %1685
      %1687 = vrot.lane.b32.xlu0 %v1611, 24
      %v1688 = vpop.permute.xlu0 %1687
      %1689 = vrot.lane.b32.xlu0 %v1612, 24
      %v1690 = vpop.permute.xlu0 %1689
      %1691 = vrot.lane.b32.xlu0 %v1613, 24
      %v1692 = vpop.permute.xlu0 %1691
      %1693 = vrot.lane.b32.xlu0 %v1614, 24
      %v1694 = vpop.permute.xlu0 %1693
      %1695 = vrot.lane.b32.xlu0 %v1615, 24
      %v1696 = vpop.permute.xlu0 %1695
      %1697 = vrot.lane.b32.xlu0 %v1616, 24
      %v1698 = vpop.permute.xlu0 %1697
      %1699 = vrot.lane.b32.xlu0 %v1617, 24
      %v1700 = vpop.permute.xlu0 %1699
      %1701 = vrot.lane.b32.xlu0 %v1618, 24
      %v1702 = vpop.permute.xlu0 %1701
      %1703 = vrot.lane.b32.xlu0 %v1619, 24
      %v1704 = vpop.permute.xlu0 %1703
      %1705 = vrot.lane.b32.xlu0 %v1620, 24
      %v1706 = vpop.permute.xlu0 %1705
      %1707 = vrot.lane.b32.xlu0 %v1621, 24
      %v1708 = vpop.permute.xlu0 %1707
      %1709 = vrot.lane.b32.xlu0 %v1622, 24
      %v1710 = vpop.permute.xlu0 %1709
      %1711 = vrot.lane.b32.xlu0 %v1623, 24
      %v1712 = vpop.permute.xlu0 %1711
      %1713 = vrot.lane.b32.xlu0 %v1624, 24
      %v1714 = vpop.permute.xlu0 %1713
      %1715 = vrot.lane.b32.xlu0 %v1625, 24
      %v1716 = vpop.permute.xlu0 %1715
      %1717 = vrot.lane.b32.xlu0 %v1626, 24
      %v1718 = vpop.permute.xlu0 %1717
      %1719 = vrot.lane.b32.xlu0 %v1627, 24
      %v1720 = vpop.permute.xlu0 %1719
      %1721 = vrot.lane.b32.xlu0 %v1628, 24
      %v1722 = vpop.permute.xlu0 %1721
      %1723 = vrot.lane.b32.xlu0 %v1629, 24
      %v1724 = vpop.permute.xlu0 %1723
      %1725 = vrot.lane.b32.xlu0 %v1630, 24
      %v1726 = vpop.permute.xlu0 %1725
      %1727 = vrot.lane.b32.xlu0 %v1631, 24
      %v1728 = vpop.permute.xlu0 %1727
      %1729 = vrot.lane.b32.xlu0 %v1632, 24
      %v1730 = vpop.permute.xlu0 %1729
      %1731 = vrot.lane.b32.xlu0 %v1633, 24
      %v1732 = vpop.permute.xlu0 %1731
      %1733 = vrot.lane.b32.xlu0 %v1634, 24
      %v1734 = vpop.permute.xlu0 %1733
      %1735 = vrot.lane.b32.xlu0 %v1635, 24
      %v1736 = vpop.permute.xlu0 %1735
      %1737 = vrot.lane.b32.xlu0 %v1636, 24
      %v1738 = vpop.permute.xlu0 %1737
      %1739 = vrot.lane.b32.xlu0 %v1637, 24
      %v1740 = vpop.permute.xlu0 %1739
      %1741 = vrot.lane.b32.xlu0 %v1638, 24
      %v1742 = vpop.permute.xlu0 %1741
      %1743 = vrot.lane.b32.xlu0 %v1639, 24
      %v1744 = vpop.permute.xlu0 %1743
      %1745 = vrot.lane.b32.xlu0 %v1640, 24
      %v1746 = vpop.permute.xlu0 %1745
      %1747 = vrot.lane.b32.xlu0 %v1641, 24
      %v1748 = vpop.permute.xlu0 %1747
      %1749 = vrot.lane.b32.xlu0 %v1642, 24
      %v1750 = vpop.permute.xlu0 %1749
      %vm1787 = vcmask 261312
      %1788 = vst.msk [vmem:[#allocation3] sm:$0xff] %vm1787, %v1680
      %1789 = vst.msk [vmem:[#allocation3 + $0x8] sm:$0xff] %vm1787, %v1682
      %1790 = vst.msk [vmem:[#allocation3 + $0x10] sm:$0xff] %vm1787, %v1684
      %1791 = vst.msk [vmem:[#allocation3 + $0x18] sm:$0xff] %vm1787, %v1686
      %1792 = vst.msk [vmem:[#allocation3 + $0x20] sm:$0xff] %vm1787, %v1688
      %1793 = vst.msk [vmem:[#allocation3 + $0x28] sm:$0xff] %vm1787, %v1690
      %1794 = vst.msk [vmem:[#allocation3 + $0x30] sm:$0xff] %vm1787, %v1692
      %1795 = vst.msk [vmem:[#allocation3 + $0x38] sm:$0xff] %vm1787, %v1694
      %1796 = vst.msk [vmem:[#allocation3 + $0x40] sm:$0xff] %vm1787, %v1696
      %1797 = vst.msk [vmem:[#allocation3 + $0x48] sm:$0xff] %vm1787, %v1698
      %1798 = vst.msk [vmem:[#allocation3 + $0x50] sm:$0xff] %vm1787, %v1700
      %1799 = vst.msk [vmem:[#allocation3 + $0x58] sm:$0xff] %vm1787, %v1702
      %1800 = vst.msk [vmem:[#allocation3 + $0x60] sm:$0xff] %vm1787, %v1704
      %1801 = vst.msk [vmem:[#allocation3 + $0x68] sm:$0xff] %vm1787, %v1706
      %1802 = vst.msk [vmem:[#allocation3 + $0x70] sm:$0xff] %vm1787, %v1708
      %1803 = vst.msk [vmem:[#allocation3 + $0x78] sm:$0xff] %vm1787, %v1710
      %1804 = vst.msk [vmem:[#allocation3 + $0x80] sm:$0xff] %vm1787, %v1712
      %1805 = vst.msk [vmem:[#allocation3 + $0x88] sm:$0xff] %vm1787, %v1714
      %1806 = vst.msk [vmem:[#allocation3 + $0x90] sm:$0xff] %vm1787, %v1716
      %1807 = vst.msk [vmem:[#allocation3 + $0x98] sm:$0xff] %vm1787, %v1718
      %1808 = vst.msk [vmem:[#allocation3 + $0xa0] sm:$0xff] %vm1787, %v1720
      %1809 = vst.msk [vmem:[#allocation3 + $0xa8] sm:$0xff] %vm1787, %v1722
      %1810 = vst.msk [vmem:[#allocation3 + $0xb0] sm:$0xff] %vm1787, %v1724
      %1811 = vst.msk [vmem:[#allocation3 + $0xb8] sm:$0xff] %vm1787, %v1726
      %1812 = vst.msk [vmem:[#allocation3 + $0xc0] sm:$0xff] %vm1787, %v1728
      %1813 = vst.msk [vmem:[#allocation3 + $0xc8] sm:$0xff] %vm1787, %v1730
      %1814 = vst.msk [vmem:[#allocation3 + $0xd0] sm:$0xff] %vm1787, %v1732
      %1815 = vst.msk [vmem:[#allocation3 + $0xd8] sm:$0xff] %vm1787, %v1734
      %1816 = vst.msk [vmem:[#allocation3 + $0xe0] sm:$0xff] %vm1787, %v1736
      %1817 = vst.msk [vmem:[#allocation3 + $0xe8] sm:$0xff] %vm1787, %v1738
      %1818 = vst.msk [vmem:[#allocation3 + $0xf0] sm:$0xff] %vm1787, %v1740
      %1819 = vst.msk [vmem:[#allocation3 + $0xf8] sm:$0xff] %vm1787, %v1742
      %1820 = vst.msk [vmem:[#allocation3 + $0x100] sm:$0xff] %vm1787, %v1744
      %1821 = vst.msk [vmem:[#allocation3 + $0x108] sm:$0xff] %vm1787, %v1746
      %1822 = vst.msk [vmem:[#allocation3 + $0x110] sm:$0xff] %vm1787, %v1748
      %1823 = vst.msk [vmem:[#allocation3 + $0x118] sm:$0xff] %vm1787, %v1750
      %v1824 = vld [vmem:[#allocation2 + $0x13] sm:$0xff]
      %v1825 = vld [vmem:[#allocation2 + $0x1b] sm:$0xff]
      %v1826 = vld [vmem:[#allocation2 + $0x23] sm:$0xff]
      %v1827 = vld [vmem:[#allocation2 + $0x2b] sm:$0xff]
      %v1828 = vld [vmem:[#allocation2 + $0x33] sm:$0xff]
      %v1829 = vld [vmem:[#allocation2 + $0x3b] sm:$0xff]
      %v1830 = vld [vmem:[#allocation2 + $0x43] sm:$0xff]
      %v1831 = vld [vmem:[#allocation2 + $0x4b] sm:$0xff]
      %v1832 = vld [vmem:[#allocation2 + $0x53] sm:$0xff]
      %v1833 = vld [vmem:[#allocation2 + $0x5b] sm:$0xff]
      %v1834 = vld [vmem:[#allocation2 + $0x63] sm:$0xff]
      %v1835 = vld [vmem:[#allocation2 + $0x6b] sm:$0xff]
      %v1836 = vld [vmem:[#allocation2 + $0x73] sm:$0xff]
      %v1837 = vld [vmem:[#allocation2 + $0x7b] sm:$0xff]
      %v1838 = vld [vmem:[#allocation2 + $0x83] sm:$0xff]
      %v1839 = vld [vmem:[#allocation2 + $0x8b] sm:$0xff]
      %v1840 = vld [vmem:[#allocation2 + $0x93] sm:$0xff]
      %v1841 = vld [vmem:[#allocation2 + $0x9b] sm:$0xff]
      %v1842 = vld [vmem:[#allocation2 + $0xa3] sm:$0xff]
      %v1843 = vld [vmem:[#allocation2 + $0xab] sm:$0xff]
      %v1844 = vld [vmem:[#allocation2 + $0xb3] sm:$0xff]
      %v1845 = vld [vmem:[#allocation2 + $0xbb] sm:$0xff]
      %v1846 = vld [vmem:[#allocation2 + $0xc3] sm:$0xff]
      %v1847 = vld [vmem:[#allocation2 + $0xcb] sm:$0xff]
      %v1848 = vld [vmem:[#allocation2 + $0xd3] sm:$0xff]
      %v1849 = vld [vmem:[#allocation2 + $0xdb] sm:$0xff]
      %v1850 = vld [vmem:[#allocation2 + $0xe3] sm:$0xff]
      %v1851 = vld [vmem:[#allocation2 + $0xeb] sm:$0xff]
      %v1852 = vld [vmem:[#allocation2 + $0xf3] sm:$0xff]
      %v1853 = vld [vmem:[#allocation2 + $0xfb] sm:$0xff]
      %v1854 = vld [vmem:[#allocation2 + $0x103] sm:$0xff]
      %v1855 = vld [vmem:[#allocation2 + $0x10b] sm:$0xff]
      %v1856 = vld [vmem:[#allocation2 + $0x113] sm:$0xff]
      %v1857 = vld [vmem:[#allocation2 + $0x11b] sm:$0xff]
      %v1858 = vld [vmem:[#allocation2 + $0x123] sm:$0xff]
      %v1859 = vld [vmem:[#allocation2 + $0x12b] sm:$0xff]
      %1896 = vrot.lane.b32.xlu0 %v1824, 32
      %v1897 = vpop.permute.xlu0 %1896
      %1898 = vrot.lane.b32.xlu0 %v1825, 32
      %v1899 = vpop.permute.xlu0 %1898
      %1900 = vrot.lane.b32.xlu0 %v1826, 32
      %v1901 = vpop.permute.xlu0 %1900
      %1902 = vrot.lane.b32.xlu0 %v1827, 32
      %v1903 = vpop.permute.xlu0 %1902
      %1904 = vrot.lane.b32.xlu0 %v1828, 32
      %v1905 = vpop.permute.xlu0 %1904
      %1906 = vrot.lane.b32.xlu0 %v1829, 32
      %v1907 = vpop.permute.xlu0 %1906
      %1908 = vrot.lane.b32.xlu0 %v1830, 32
      %v1909 = vpop.permute.xlu0 %1908
      %1910 = vrot.lane.b32.xlu0 %v1831, 32
      %v1911 = vpop.permute.xlu0 %1910
      %1912 = vrot.lane.b32.xlu0 %v1832, 32
      %v1913 = vpop.permute.xlu0 %1912
      %1914 = vrot.lane.b32.xlu0 %v1833, 32
      %v1915 = vpop.permute.xlu0 %1914
      %1916 = vrot.lane.b32.xlu0 %v1834, 32
      %v1917 = vpop.permute.xlu0 %1916
      %1918 = vrot.lane.b32.xlu0 %v1835, 32
      %v1919 = vpop.permute.xlu0 %1918
      %1920 = vrot.lane.b32.xlu0 %v1836, 32
      %v1921 = vpop.permute.xlu0 %1920
      %1922 = vrot.lane.b32.xlu0 %v1837, 32
      %v1923 = vpop.permute.xlu0 %1922
      %1924 = vrot.lane.b32.xlu0 %v1838, 32
      %v1925 = vpop.permute.xlu0 %1924
      %1926 = vrot.lane.b32.xlu0 %v1839, 32
      %v1927 = vpop.permute.xlu0 %1926
      %1928 = vrot.lane.b32.xlu0 %v1840, 32
      %v1929 = vpop.permute.xlu0 %1928
      %1930 = vrot.lane.b32.xlu0 %v1841, 32
      %v1931 = vpop.permute.xlu0 %1930
      %1932 = vrot.lane.b32.xlu0 %v1842, 32
      %v1933 = vpop.permute.xlu0 %1932
      %1934 = vrot.lane.b32.xlu0 %v1843, 32
      %v1935 = vpop.permute.xlu0 %1934
      %1936 = vrot.lane.b32.xlu0 %v1844, 32
      %v1937 = vpop.permute.xlu0 %1936
      %1938 = vrot.lane.b32.xlu0 %v1845, 32
      %v1939 = vpop.permute.xlu0 %1938
      %1940 = vrot.lane.b32.xlu0 %v1846, 32
      %v1941 = vpop.permute.xlu0 %1940
      %1942 = vrot.lane.b32.xlu0 %v1847, 32
      %v1943 = vpop.permute.xlu0 %1942
      %1944 = vrot.lane.b32.xlu0 %v1848, 32
      %v1945 = vpop.permute.xlu0 %1944
      %1946 = vrot.lane.b32.xlu0 %v1849, 32
      %v1947 = vpop.permute.xlu0 %1946
      %1948 = vrot.lane.b32.xlu0 %v1850, 32
      %v1949 = vpop.permute.xlu0 %1948
      %1950 = vrot.lane.b32.xlu0 %v1851, 32
      %v1951 = vpop.permute.xlu0 %1950
      %1952 = vrot.lane.b32.xlu0 %v1852, 32
      %v1953 = vpop.permute.xlu0 %1952
      %1954 = vrot.lane.b32.xlu0 %v1853, 32
      %v1955 = vpop.permute.xlu0 %1954
      %1956 = vrot.lane.b32.xlu0 %v1854, 32
      %v1957 = vpop.permute.xlu0 %1956
      %1958 = vrot.lane.b32.xlu0 %v1855, 32
      %v1959 = vpop.permute.xlu0 %1958
      %1960 = vrot.lane.b32.xlu0 %v1856, 32
      %v1961 = vpop.permute.xlu0 %1960
      %1962 = vrot.lane.b32.xlu0 %v1857, 32
      %v1963 = vpop.permute.xlu0 %1962
      %1964 = vrot.lane.b32.xlu0 %v1858, 32
      %v1965 = vpop.permute.xlu0 %1964
      %1966 = vrot.lane.b32.xlu0 %v1859, 32
      %v1967 = vpop.permute.xlu0 %1966
      %vm2004 = vcmask 326912
      %2005 = vst.msk [vmem:[#allocation3] sm:$0xff] %vm2004, %v1897
      %2006 = vst.msk [vmem:[#allocation3 + $0x8] sm:$0xff] %vm2004, %v1899
      %2007 = vst.msk [vmem:[#allocation3 + $0x10] sm:$0xff] %vm2004, %v1901
      %2008 = vst.msk [vmem:[#allocation3 + $0x18] sm:$0xff] %vm2004, %v1903
      %2009 = vst.msk [vmem:[#allocation3 + $0x20] sm:$0xff] %vm2004, %v1905
      %2010 = vst.msk [vmem:[#allocation3 + $0x28] sm:$0xff] %vm2004, %v1907
      %2011 = vst.msk [vmem:[#allocation3 + $0x30] sm:$0xff] %vm2004, %v1909
      %2012 = vst.msk [vmem:[#allocation3 + $0x38] sm:$0xff] %vm2004, %v1911
      %2013 = vst.msk [vmem:[#allocation3 + $0x40] sm:$0xff] %vm2004, %v1913
      %2014 = vst.msk [vmem:[#allocation3 + $0x48] sm:$0xff] %vm2004, %v1915
      %2015 = vst.msk [vmem:[#allocation3 + $0x50] sm:$0xff] %vm2004, %v1917
      %2016 = vst.msk [vmem:[#allocation3 + $0x58] sm:$0xff] %vm2004, %v1919
      %2017 = vst.msk [vmem:[#allocation3 + $0x60] sm:$0xff] %vm2004, %v1921
      %2018 = vst.msk [vmem:[#allocation3 + $0x68] sm:$0xff] %vm2004, %v1923
      %2019 = vst.msk [vmem:[#allocation3 + $0x70] sm:$0xff] %vm2004, %v1925
      %2020 = vst.msk [vmem:[#allocation3 + $0x78] sm:$0xff] %vm2004, %v1927
      %2021 = vst.msk [vmem:[#allocation3 + $0x80] sm:$0xff] %vm2004, %v1929
      %2022 = vst.msk [vmem:[#allocation3 + $0x88] sm:$0xff] %vm2004, %v1931
      %2023 = vst.msk [vmem:[#allocation3 + $0x90] sm:$0xff] %vm2004, %v1933
      %2024 = vst.msk [vmem:[#allocation3 + $0x98] sm:$0xff] %vm2004, %v1935
      %2025 = vst.msk [vmem:[#allocation3 + $0xa0] sm:$0xff] %vm2004, %v1937
      %2026 = vst.msk [vmem:[#allocation3 + $0xa8] sm:$0xff] %vm2004, %v1939
      %2027 = vst.msk [vmem:[#allocation3 + $0xb0] sm:$0xff] %vm2004, %v1941
      %2028 = vst.msk [vmem:[#allocation3 + $0xb8] sm:$0xff] %vm2004, %v1943
      %2029 = vst.msk [vmem:[#allocation3 + $0xc0] sm:$0xff] %vm2004, %v1945
      %2030 = vst.msk [vmem:[#allocation3 + $0xc8] sm:$0xff] %vm2004, %v1947
      %2031 = vst.msk [vmem:[#allocation3 + $0xd0] sm:$0xff] %vm2004, %v1949
      %2032 = vst.msk [vmem:[#allocation3 + $0xd8] sm:$0xff] %vm2004, %v1951
      %2033 = vst.msk [vmem:[#allocation3 + $0xe0] sm:$0xff] %vm2004, %v1953
      %2034 = vst.msk [vmem:[#allocation3 + $0xe8] sm:$0xff] %vm2004, %v1955
      %2035 = vst.msk [vmem:[#allocation3 + $0xf0] sm:$0xff] %vm2004, %v1957
      %2036 = vst.msk [vmem:[#allocation3 + $0xf8] sm:$0xff] %vm2004, %v1959
      %2037 = vst.msk [vmem:[#allocation3 + $0x100] sm:$0xff] %vm2004, %v1961
      %2038 = vst.msk [vmem:[#allocation3 + $0x108] sm:$0xff] %vm2004, %v1963
      %2039 = vst.msk [vmem:[#allocation3 + $0x110] sm:$0xff] %vm2004, %v1965
      %2040 = vst.msk [vmem:[#allocation3 + $0x118] sm:$0xff] %vm2004, %v1967
      %v2041 = vld [vmem:[#allocation2 + $0x14] sm:$0xff]
      %v2042 = vld [vmem:[#allocation2 + $0x1c] sm:$0xff]
      %v2043 = vld [vmem:[#allocation2 + $0x24] sm:$0xff]
      %v2044 = vld [vmem:[#allocation2 + $0x2c] sm:$0xff]
      %v2045 = vld [vmem:[#allocation2 + $0x34] sm:$0xff]
      %v2046 = vld [vmem:[#allocation2 + $0x3c] sm:$0xff]
      %v2047 = vld [vmem:[#allocation2 + $0x44] sm:$0xff]
      %v2048 = vld [vmem:[#allocation2 + $0x4c] sm:$0xff]
      %v2049 = vld [vmem:[#allocation2 + $0x54] sm:$0xff]
      %v2050 = vld [vmem:[#allocation2 + $0x5c] sm:$0xff]
      %v2051 = vld [vmem:[#allocation2 + $0x64] sm:$0xff]
      %v2052 = vld [vmem:[#allocation2 + $0x6c] sm:$0xff]
      %v2053 = vld [vmem:[#allocation2 + $0x74] sm:$0xff]
      %v2054 = vld [vmem:[#allocation2 + $0x7c] sm:$0xff]
      %v2055 = vld [vmem:[#allocation2 + $0x84] sm:$0xff]
      %v2056 = vld [vmem:[#allocation2 + $0x8c] sm:$0xff]
      %v2057 = vld [vmem:[#allocation2 + $0x94] sm:$0xff]
      %v2058 = vld [vmem:[#allocation2 + $0x9c] sm:$0xff]
      %v2059 = vld [vmem:[#allocation2 + $0xa4] sm:$0xff]
      %v2060 = vld [vmem:[#allocation2 + $0xac] sm:$0xff]
      %v2061 = vld [vmem:[#allocation2 + $0xb4] sm:$0xff]
      %v2062 = vld [vmem:[#allocation2 + $0xbc] sm:$0xff]
      %v2063 = vld [vmem:[#allocation2 + $0xc4] sm:$0xff]
      %v2064 = vld [vmem:[#allocation2 + $0xcc] sm:$0xff]
      %v2065 = vld [vmem:[#allocation2 + $0xd4] sm:$0xff]
      %v2066 = vld [vmem:[#allocation2 + $0xdc] sm:$0xff]
      %v2067 = vld [vmem:[#allocation2 + $0xe4] sm:$0xff]
      %v2068 = vld [vmem:[#allocation2 + $0xec] sm:$0xff]
      %v2069 = vld [vmem:[#allocation2 + $0xf4] sm:$0xff]
      %v2070 = vld [vmem:[#allocation2 + $0xfc] sm:$0xff]
      %v2071 = vld [vmem:[#allocation2 + $0x104] sm:$0xff]
      %v2072 = vld [vmem:[#allocation2 + $0x10c] sm:$0xff]
      %v2073 = vld [vmem:[#allocation2 + $0x114] sm:$0xff]
      %v2074 = vld [vmem:[#allocation2 + $0x11c] sm:$0xff]
      %v2075 = vld [vmem:[#allocation2 + $0x124] sm:$0xff]
      %v2076 = vld [vmem:[#allocation2 + $0x12c] sm:$0xff]
      %2113 = vrot.lane.b32.xlu0 %v2041, 40
      %v2114 = vpop.permute.xlu0 %2113
      %2115 = vrot.lane.b32.xlu0 %v2042, 40
      %v2116 = vpop.permute.xlu0 %2115
      %2117 = vrot.lane.b32.xlu0 %v2043, 40
      %v2118 = vpop.permute.xlu0 %2117
      %2119 = vrot.lane.b32.xlu0 %v2044, 40
      %v2120 = vpop.permute.xlu0 %2119
      %2121 = vrot.lane.b32.xlu0 %v2045, 40
      %v2122 = vpop.permute.xlu0 %2121
      %2123 = vrot.lane.b32.xlu0 %v2046, 40
      %v2124 = vpop.permute.xlu0 %2123
      %2125 = vrot.lane.b32.xlu0 %v2047, 40
      %v2126 = vpop.permute.xlu0 %2125
      %2127 = vrot.lane.b32.xlu0 %v2048, 40
      %v2128 = vpop.permute.xlu0 %2127
      %2129 = vrot.lane.b32.xlu0 %v2049, 40
      %v2130 = vpop.permute.xlu0 %2129
      %2131 = vrot.lane.b32.xlu0 %v2050, 40
      %v2132 = vpop.permute.xlu0 %2131
      %2133 = vrot.lane.b32.xlu0 %v2051, 40
      %v2134 = vpop.permute.xlu0 %2133
      %2135 = vrot.lane.b32.xlu0 %v2052, 40
      %v2136 = vpop.permute.xlu0 %2135
      %2137 = vrot.lane.b32.xlu0 %v2053, 40
      %v2138 = vpop.permute.xlu0 %2137
      %2139 = vrot.lane.b32.xlu0 %v2054, 40
      %v2140 = vpop.permute.xlu0 %2139
      %2141 = vrot.lane.b32.xlu0 %v2055, 40
      %v2142 = vpop.permute.xlu0 %2141
      %2143 = vrot.lane.b32.xlu0 %v2056, 40
      %v2144 = vpop.permute.xlu0 %2143
      %2145 = vrot.lane.b32.xlu0 %v2057, 40
      %v2146 = vpop.permute.xlu0 %2145
      %2147 = vrot.lane.b32.xlu0 %v2058, 40
      %v2148 = vpop.permute.xlu0 %2147
      %2149 = vrot.lane.b32.xlu0 %v2059, 40
      %v2150 = vpop.permute.xlu0 %2149
      %2151 = vrot.lane.b32.xlu0 %v2060, 40
      %v2152 = vpop.permute.xlu0 %2151
      %2153 = vrot.lane.b32.xlu0 %v2061, 40
      %v2154 = vpop.permute.xlu0 %2153
      %2155 = vrot.lane.b32.xlu0 %v2062, 40
      %v2156 = vpop.permute.xlu0 %2155
      %2157 = vrot.lane.b32.xlu0 %v2063, 40
      %v2158 = vpop.permute.xlu0 %2157
      %2159 = vrot.lane.b32.xlu0 %v2064, 40
      %v2160 = vpop.permute.xlu0 %2159
      %2161 = vrot.lane.b32.xlu0 %v2065, 40
      %v2162 = vpop.permute.xlu0 %2161
      %2163 = vrot.lane.b32.xlu0 %v2066, 40
      %v2164 = vpop.permute.xlu0 %2163
      %2165 = vrot.lane.b32.xlu0 %v2067, 40
      %v2166 = vpop.permute.xlu0 %2165
      %2167 = vrot.lane.b32.xlu0 %v2068, 40
      %v2168 = vpop.permute.xlu0 %2167
      %2169 = vrot.lane.b32.xlu0 %v2069, 40
      %v2170 = vpop.permute.xlu0 %2169
      %2171 = vrot.lane.b32.xlu0 %v2070, 40
      %v2172 = vpop.permute.xlu0 %2171
      %2173 = vrot.lane.b32.xlu0 %v2071, 40
      %v2174 = vpop.permute.xlu0 %2173
      %2175 = vrot.lane.b32.xlu0 %v2072, 40
      %v2176 = vpop.permute.xlu0 %2175
      %2177 = vrot.lane.b32.xlu0 %v2073, 40
      %v2178 = vpop.permute.xlu0 %2177
      %2179 = vrot.lane.b32.xlu0 %v2074, 40
      %v2180 = vpop.permute.xlu0 %2179
      %2181 = vrot.lane.b32.xlu0 %v2075, 40
      %v2182 = vpop.permute.xlu0 %2181
      %2183 = vrot.lane.b32.xlu0 %v2076, 40
      %v2184 = vpop.permute.xlu0 %2183
      %vm2221 = vcmask 392512
      %2222 = vst.msk [vmem:[#allocation3] sm:$0xff] %vm2221, %v2114
      %2223 = vst.msk [vmem:[#allocation3 + $0x8] sm:$0xff] %vm2221, %v2116
      %2224 = vst.msk [vmem:[#allocation3 + $0x10] sm:$0xff] %vm2221, %v2118
      %2225 = vst.msk [vmem:[#allocation3 + $0x18] sm:$0xff] %vm2221, %v2120
      %2226 = vst.msk [vmem:[#allocation3 + $0x20] sm:$0xff] %vm2221, %v2122
      %2227 = vst.msk [vmem:[#allocation3 + $0x28] sm:$0xff] %vm2221, %v2124
      %2228 = vst.msk [vmem:[#allocation3 + $0x30] sm:$0xff] %vm2221, %v2126
      %2229 = vst.msk [vmem:[#allocation3 + $0x38] sm:$0xff] %vm2221, %v2128
      %2230 = vst.msk [vmem:[#allocation3 + $0x40] sm:$0xff] %vm2221, %v2130
      %2231 = vst.msk [vmem:[#allocation3 + $0x48] sm:$0xff] %vm2221, %v2132
      %2232 = vst.msk [vmem:[#allocation3 + $0x50] sm:$0xff] %vm2221, %v2134
      %2233 = vst.msk [vmem:[#allocation3 + $0x58] sm:$0xff] %vm2221, %v2136
      %2234 = vst.msk [vmem:[#allocation3 + $0x60] sm:$0xff] %vm2221, %v2138
      %2235 = vst.msk [vmem:[#allocation3 + $0x68] sm:$0xff] %vm2221, %v2140
      %2236 = vst.msk [vmem:[#allocation3 + $0x70] sm:$0xff] %vm2221, %v2142
      %2237 = vst.msk [vmem:[#allocation3 + $0x78] sm:$0xff] %vm2221, %v2144
      %2238 = vst.msk [vmem:[#allocation3 + $0x80] sm:$0xff] %vm2221, %v2146
      %2239 = vst.msk [vmem:[#allocation3 + $0x88] sm:$0xff] %vm2221, %v2148
      %2240 = vst.msk [vmem:[#allocation3 + $0x90] sm:$0xff] %vm2221, %v2150
      %2241 = vst.msk [vmem:[#allocation3 + $0x98] sm:$0xff] %vm2221, %v2152
      %2242 = vst.msk [vmem:[#allocation3 + $0xa0] sm:$0xff] %vm2221, %v2154
      %2243 = vst.msk [vmem:[#allocation3 + $0xa8] sm:$0xff] %vm2221, %v2156
      %2244 = vst.msk [vmem:[#allocation3 + $0xb0] sm:$0xff] %vm2221, %v2158
      %2245 = vst.msk [vmem:[#allocation3 + $0xb8] sm:$0xff] %vm2221, %v2160
      %2246 = vst.msk [vmem:[#allocation3 + $0xc0] sm:$0xff] %vm2221, %v2162
      %2247 = vst.msk [vmem:[#allocation3 + $0xc8] sm:$0xff] %vm2221, %v2164
      %2248 = vst.msk [vmem:[#allocation3 + $0xd0] sm:$0xff] %vm2221, %v2166
      %2249 = vst.msk [vmem:[#allocation3 + $0xd8] sm:$0xff] %vm2221, %v2168
      %2250 = vst.msk [vmem:[#allocation3 + $0xe0] sm:$0xff] %vm2221, %v2170
      %2251 = vst.msk [vmem:[#allocation3 + $0xe8] sm:$0xff] %vm2221, %v2172
      %2252 = vst.msk [vmem:[#allocation3 + $0xf0] sm:$0xff] %vm2221, %v2174
      %2253 = vst.msk [vmem:[#allocation3 + $0xf8] sm:$0xff] %vm2221, %v2176
      %2254 = vst.msk [vmem:[#allocation3 + $0x100] sm:$0xff] %vm2221, %v2178
      %2255 = vst.msk [vmem:[#allocation3 + $0x108] sm:$0xff] %vm2221, %v2180
      %2256 = vst.msk [vmem:[#allocation3 + $0x110] sm:$0xff] %vm2221, %v2182
      %2257 = vst.msk [vmem:[#allocation3 + $0x118] sm:$0xff] %vm2221, %v2184
      %v2258 = vld [vmem:[#allocation2 + $0x24] sm:$0xff]
      %v2259 = vld [vmem:[#allocation2 + $0x2c] sm:$0xff]
      %v2260 = vld [vmem:[#allocation2 + $0x34] sm:$0xff]
      %v2261 = vld [vmem:[#allocation2 + $0x3c] sm:$0xff]
      %v2262 = vld [vmem:[#allocation2 + $0x44] sm:$0xff]
      %v2263 = vld [vmem:[#allocation2 + $0x4c] sm:$0xff]
      %v2264 = vld [vmem:[#allocation2 + $0x54] sm:$0xff]
      %v2265 = vld [vmem:[#allocation2 + $0x5c] sm:$0xff]
      %v2266 = vld [vmem:[#allocation2 + $0x64] sm:$0xff]
      %v2267 = vld [vmem:[#allocation2 + $0x6c] sm:$0xff]
      %v2268 = vld [vmem:[#allocation2 + $0x74] sm:$0xff]
      %v2269 = vld [vmem:[#allocation2 + $0x7c] sm:$0xff]
      %v2270 = vld [vmem:[#allocation2 + $0x84] sm:$0xff]
      %v2271 = vld [vmem:[#allocation2 + $0x8c] sm:$0xff]
      %v2272 = vld [vmem:[#allocation2 + $0x94] sm:$0xff]
      %v2273 = vld [vmem:[#allocation2 + $0x9c] sm:$0xff]
      %v2274 = vld [vmem:[#allocation2 + $0xa4] sm:$0xff]
      %v2275 = vld [vmem:[#allocation2 + $0xac] sm:$0xff]
      %v2276 = vld [vmem:[#allocation2 + $0xb4] sm:$0xff]
      %v2277 = vld [vmem:[#allocation2 + $0xbc] sm:$0xff]
      %v2278 = vld [vmem:[#allocation2 + $0xc4] sm:$0xff]
      %v2279 = vld [vmem:[#allocation2 + $0xcc] sm:$0xff]
      %v2280 = vld [vmem:[#allocation2 + $0xd4] sm:$0xff]
      %v2281 = vld [vmem:[#allocation2 + $0xdc] sm:$0xff]
      %v2282 = vld [vmem:[#allocation2 + $0xe4] sm:$0xff]
      %v2283 = vld [vmem:[#allocation2 + $0xec] sm:$0xff]
      %v2284 = vld [vmem:[#allocation2 + $0xf4] sm:$0xff]
      %v2285 = vld [vmem:[#allocation2 + $0xfc] sm:$0xff]
      %v2286 = vld [vmem:[#allocation2 + $0x104] sm:$0xff]
      %v2287 = vld [vmem:[#allocation2 + $0x10c] sm:$0xff]
      %v2288 = vld [vmem:[#allocation2 + $0x114] sm:$0xff]
      %v2289 = vld [vmem:[#allocation2 + $0x11c] sm:$0xff]
      %v2290 = vld [vmem:[#allocation2 + $0x124] sm:$0xff]
      %v2291 = vld [vmem:[#allocation2 + $0x12c] sm:$0xff]
      %v2292 = vld [vmem:[#allocation2 + $0x134] sm:$0xff]
      %v2293 = vld [vmem:[#allocation2 + $0x13c] sm:$0xff]
      %2330 = vrot.lane.b32.xlu0 %v2258, 48
      %v2331 = vpop.permute.xlu0 %2330
      %2332 = vrot.lane.b32.xlu0 %v2259, 48
      %v2333 = vpop.permute.xlu0 %2332
      %2334 = vrot.lane.b32.xlu0 %v2260, 48
      %v2335 = vpop.permute.xlu0 %2334
      %2336 = vrot.lane.b32.xlu0 %v2261, 48
      %v2337 = vpop.permute.xlu0 %2336
      %2338 = vrot.lane.b32.xlu0 %v2262, 48
      %v2339 = vpop.permute.xlu0 %2338
      %2340 = vrot.lane.b32.xlu0 %v2263, 48
      %v2341 = vpop.permute.xlu0 %2340
      %2342 = vrot.lane.b32.xlu0 %v2264, 48
      %v2343 = vpop.permute.xlu0 %2342
      %2344 = vrot.lane.b32.xlu0 %v2265, 48
      %v2345 = vpop.permute.xlu0 %2344
      %2346 = vrot.lane.b32.xlu0 %v2266, 48
      %v2347 = vpop.permute.xlu0 %2346
      %2348 = vrot.lane.b32.xlu0 %v2267, 48
      %v2349 = vpop.permute.xlu0 %2348
      %2350 = vrot.lane.b32.xlu0 %v2268, 48
      %v2351 = vpop.permute.xlu0 %2350
      %2352 = vrot.lane.b32.xlu0 %v2269, 48
      %v2353 = vpop.permute.xlu0 %2352
      %2354 = vrot.lane.b32.xlu0 %v2270, 48
      %v2355 = vpop.permute.xlu0 %2354
      %2356 = vrot.lane.b32.xlu0 %v2271, 48
      %v2357 = vpop.permute.xlu0 %2356
      %2358 = vrot.lane.b32.xlu0 %v2272, 48
      %v2359 = vpop.permute.xlu0 %2358
      %2360 = vrot.lane.b32.xlu0 %v2273, 48
      %v2361 = vpop.permute.xlu0 %2360
      %2362 = vrot.lane.b32.xlu0 %v2274, 48
      %v2363 = vpop.permute.xlu0 %2362
      %2364 = vrot.lane.b32.xlu0 %v2275, 48
      %v2365 = vpop.permute.xlu0 %2364
      %2366 = vrot.lane.b32.xlu0 %v2276, 48
      %v2367 = vpop.permute.xlu0 %2366
      %2368 = vrot.lane.b32.xlu0 %v2277, 48
      %v2369 = vpop.permute.xlu0 %2368
      %2370 = vrot.lane.b32.xlu0 %v2278, 48
      %v2371 = vpop.permute.xlu0 %2370
      %2372 = vrot.lane.b32.xlu0 %v2279, 48
      %v2373 = vpop.permute.xlu0 %2372
      %2374 = vrot.lane.b32.xlu0 %v2280, 48
      %v2375 = vpop.permute.xlu0 %2374
      %2376 = vrot.lane.b32.xlu0 %v2281, 48
      %v2377 = vpop.permute.xlu0 %2376
      %2378 = vrot.lane.b32.xlu0 %v2282, 48
      %v2379 = vpop.permute.xlu0 %2378
      %2380 = vrot.lane.b32.xlu0 %v2283, 48
      %v2381 = vpop.permute.xlu0 %2380
      %2382 = vrot.lane.b32.xlu0 %v2284, 48
      %v2383 = vpop.permute.xlu0 %2382
      %2384 = vrot.lane.b32.xlu0 %v2285, 48
      %v2385 = vpop.permute.xlu0 %2384
      %2386 = vrot.lane.b32.xlu0 %v2286, 48
      %v2387 = vpop.permute.xlu0 %2386
      %2388 = vrot.lane.b32.xlu0 %v2287, 48
      %v2389 = vpop.permute.xlu0 %2388
      %2390 = vrot.lane.b32.xlu0 %v2288, 48
      %v2391 = vpop.permute.xlu0 %2390
      %2392 = vrot.lane.b32.xlu0 %v2289, 48
      %v2393 = vpop.permute.xlu0 %2392
      %2394 = vrot.lane.b32.xlu0 %v2290, 48
      %v2395 = vpop.permute.xlu0 %2394
      %2396 = vrot.lane.b32.xlu0 %v2291, 48
      %v2397 = vpop.permute.xlu0 %2396
      %2398 = vrot.lane.b32.xlu0 %v2292, 48
      %v2399 = vpop.permute.xlu0 %2398
      %2400 = vrot.lane.b32.xlu0 %v2293, 48
      %v2401 = vpop.permute.xlu0 %2400
      %vm2438 = vcmask 458112
      %2439 = vst.msk [vmem:[#allocation3] sm:$0xff] %vm2438, %v2331
      %2440 = vst.msk [vmem:[#allocation3 + $0x8] sm:$0xff] %vm2438, %v2333
      %2441 = vst.msk [vmem:[#allocation3 + $0x10] sm:$0xff] %vm2438, %v2335
      %2442 = vst.msk [vmem:[#allocation3 + $0x18] sm:$0xff] %vm2438, %v2337
      %2443 = vst.msk [vmem:[#allocation3 + $0x20] sm:$0xff] %vm2438, %v2339
      %2444 = vst.msk [vmem:[#allocation3 + $0x28] sm:$0xff] %vm2438, %v2341
      %2445 = vst.msk [vmem:[#allocation3 + $0x30] sm:$0xff] %vm2438, %v2343
      %2446 = vst.msk [vmem:[#allocation3 + $0x38] sm:$0xff] %vm2438, %v2345
      %2447 = vst.msk [vmem:[#allocation3 + $0x40] sm:$0xff] %vm2438, %v2347
      %2448 = vst.msk [vmem:[#allocation3 + $0x48] sm:$0xff] %vm2438, %v2349
      %2449 = vst.msk [vmem:[#allocation3 + $0x50] sm:$0xff] %vm2438, %v2351
      %2450 = vst.msk [vmem:[#allocation3 + $0x58] sm:$0xff] %vm2438, %v2353
      %2451 = vst.msk [vmem:[#allocation3 + $0x60] sm:$0xff] %vm2438, %v2355
      %2452 = vst.msk [vmem:[#allocation3 + $0x68] sm:$0xff] %vm2438, %v2357
      %2453 = vst.msk [vmem:[#allocation3 + $0x70] sm:$0xff] %vm2438, %v2359
      %2454 = vst.msk [vmem:[#allocation3 + $0x78] sm:$0xff] %vm2438, %v2361
      %2455 = vst.msk [vmem:[#allocation3 + $0x80] sm:$0xff] %vm2438, %v2363
      %2456 = vst.msk [vmem:[#allocation3 + $0x88] sm:$0xff] %vm2438, %v2365
      %2457 = vst.msk [vmem:[#allocation3 + $0x90] sm:$0xff] %vm2438, %v2367
      %2458 = vst.msk [vmem:[#allocation3 + $0x98] sm:$0xff] %vm2438, %v2369
      %2459 = vst.msk [vmem:[#allocation3 + $0xa0] sm:$0xff] %vm2438, %v2371
      %2460 = vst.msk [vmem:[#allocation3 + $0xa8] sm:$0xff] %vm2438, %v2373
      %2461 = vst.msk [vmem:[#allocation3 + $0xb0] sm:$0xff] %vm2438, %v2375
      %2462 = vst.msk [vmem:[#allocation3 + $0xb8] sm:$0xff] %vm2438, %v2377
      %2463 = vst.msk [vmem:[#allocation3 + $0xc0] sm:$0xff] %vm2438, %v2379
      %2464 = vst.msk [vmem:[#allocation3 + $0xc8] sm:$0xff] %vm2438, %v2381
      %2465 = vst.msk [vmem:[#allocation3 + $0xd0] sm:$0xff] %vm2438, %v2383
      %2466 = vst.msk [vmem:[#allocation3 + $0xd8] sm:$0xff] %vm2438, %v2385
      %2467 = vst.msk [vmem:[#allocation3 + $0xe0] sm:$0xff] %vm2438, %v2387
      %2468 = vst.msk [vmem:[#allocation3 + $0xe8] sm:$0xff] %vm2438, %v2389
      %2469 = vst.msk [vmem:[#allocation3 + $0xf0] sm:$0xff] %vm2438, %v2391
      %2470 = vst.msk [vmem:[#allocation3 + $0xf8] sm:$0xff] %vm2438, %v2393
      %2471 = vst.msk [vmem:[#allocation3 + $0x100] sm:$0xff] %vm2438, %v2395
      %2472 = vst.msk [vmem:[#allocation3 + $0x108] sm:$0xff] %vm2438, %v2397
      %2473 = vst.msk [vmem:[#allocation3 + $0x110] sm:$0xff] %vm2438, %v2399
      %2474 = vst.msk [vmem:[#allocation3 + $0x118] sm:$0xff] %vm2438, %v2401
      %v2475 = vld [vmem:[#allocation2 + $0x25] sm:$0xff]
      %v2476 = vld [vmem:[#allocation2 + $0x2d] sm:$0xff]
      %v2477 = vld [vmem:[#allocation2 + $0x35] sm:$0xff]
      %v2478 = vld [vmem:[#allocation2 + $0x3d] sm:$0xff]
      %v2479 = vld [vmem:[#allocation2 + $0x45] sm:$0xff]
      %v2480 = vld [vmem:[#allocation2 + $0x4d] sm:$0xff]
      %v2481 = vld [vmem:[#allocation2 + $0x55] sm:$0xff]
      %v2482 = vld [vmem:[#allocation2 + $0x5d] sm:$0xff]
      %v2483 = vld [vmem:[#allocation2 + $0x65] sm:$0xff]
      %v2484 = vld [vmem:[#allocation2 + $0x6d] sm:$0xff]
      %v2485 = vld [vmem:[#allocation2 + $0x75] sm:$0xff]
      %v2486 = vld [vmem:[#allocation2 + $0x7d] sm:$0xff]
      %v2487 = vld [vmem:[#allocation2 + $0x85] sm:$0xff]
      %v2488 = vld [vmem:[#allocation2 + $0x8d] sm:$0xff]
      %v2489 = vld [vmem:[#allocation2 + $0x95] sm:$0xff]
      %v2490 = vld [vmem:[#allocation2 + $0x9d] sm:$0xff]
      %v2491 = vld [vmem:[#allocation2 + $0xa5] sm:$0xff]
      %v2492 = vld [vmem:[#allocation2 + $0xad] sm:$0xff]
      %v2493 = vld [vmem:[#allocation2 + $0xb5] sm:$0xff]
      %v2494 = vld [vmem:[#allocation2 + $0xbd] sm:$0xff]
      %v2495 = vld [vmem:[#allocation2 + $0xc5] sm:$0xff]
      %v2496 = vld [vmem:[#allocation2 + $0xcd] sm:$0xff]
      %v2497 = vld [vmem:[#allocation2 + $0xd5] sm:$0xff]
      %v2498 = vld [vmem:[#allocation2 + $0xdd] sm:$0xff]
      %v2499 = vld [vmem:[#allocation2 + $0xe5] sm:$0xff]
      %v2500 = vld [vmem:[#allocation2 + $0xed] sm:$0xff]
      %v2501 = vld [vmem:[#allocation2 + $0xf5] sm:$0xff]
      %v2502 = vld [vmem:[#allocation2 + $0xfd] sm:$0xff]
      %v2503 = vld [vmem:[#allocation2 + $0x105] sm:$0xff]
      %v2504 = vld [vmem:[#allocation2 + $0x10d] sm:$0xff]
      %v2505 = vld [vmem:[#allocation2 + $0x115] sm:$0xff]
      %v2506 = vld [vmem:[#allocation2 + $0x11d] sm:$0xff]
      %v2507 = vld [vmem:[#allocation2 + $0x125] sm:$0xff]
      %v2508 = vld [vmem:[#allocation2 + $0x12d] sm:$0xff]
      %v2509 = vld [vmem:[#allocation2 + $0x135] sm:$0xff]
      %v2510 = vld [vmem:[#allocation2 + $0x13d] sm:$0xff]
      %2547 = vrot.lane.b32.xlu0 %v2475, 56
      %v2548 = vpop.permute.xlu0 %2547
      %2549 = vrot.lane.b32.xlu0 %v2476, 56
      %v2550 = vpop.permute.xlu0 %2549
      %2551 = vrot.lane.b32.xlu0 %v2477, 56
      %v2552 = vpop.permute.xlu0 %2551
      %2553 = vrot.lane.b32.xlu0 %v2478, 56
      %v2554 = vpop.permute.xlu0 %2553
      %2555 = vrot.lane.b32.xlu0 %v2479, 56
      %v2556 = vpop.permute.xlu0 %2555
      %2557 = vrot.lane.b32.xlu0 %v2480, 56
      %v2558 = vpop.permute.xlu0 %2557
      %2559 = vrot.lane.b32.xlu0 %v2481, 56
      %v2560 = vpop.permute.xlu0 %2559
      %2561 = vrot.lane.b32.xlu0 %v2482, 56
      %v2562 = vpop.permute.xlu0 %2561
      %2563 = vrot.lane.b32.xlu0 %v2483, 56
      %v2564 = vpop.permute.xlu0 %2563
      %2565 = vrot.lane.b32.xlu0 %v2484, 56
      %v2566 = vpop.permute.xlu0 %2565
      %2567 = vrot.lane.b32.xlu0 %v2485, 56
      %v2568 = vpop.permute.xlu0 %2567
      %2569 = vrot.lane.b32.xlu0 %v2486, 56
      %v2570 = vpop.permute.xlu0 %2569
      %2571 = vrot.lane.b32.xlu0 %v2487, 56
      %v2572 = vpop.permute.xlu0 %2571
      %2573 = vrot.lane.b32.xlu0 %v2488, 56
      %v2574 = vpop.permute.xlu0 %2573
      %2575 = vrot.lane.b32.xlu0 %v2489, 56
      %v2576 = vpop.permute.xlu0 %2575
      %2577 = vrot.lane.b32.xlu0 %v2490, 56
      %v2578 = vpop.permute.xlu0 %2577
      %2579 = vrot.lane.b32.xlu0 %v2491, 56
      %v2580 = vpop.permute.xlu0 %2579
      %2581 = vrot.lane.b32.xlu0 %v2492, 56
      %v2582 = vpop.permute.xlu0 %2581
      %2583 = vrot.lane.b32.xlu0 %v2493, 56
      %v2584 = vpop.permute.xlu0 %2583
      %2585 = vrot.lane.b32.xlu0 %v2494, 56
      %v2586 = vpop.permute.xlu0 %2585
      %2587 = vrot.lane.b32.xlu0 %v2495, 56
      %v2588 = vpop.permute.xlu0 %2587
      %2589 = vrot.lane.b32.xlu0 %v2496, 56
      %v2590 = vpop.permute.xlu0 %2589
      %2591 = vrot.lane.b32.xlu0 %v2497, 56
      %v2592 = vpop.permute.xlu0 %2591
      %2593 = vrot.lane.b32.xlu0 %v2498, 56
      %v2594 = vpop.permute.xlu0 %2593
      %2595 = vrot.lane.b32.xlu0 %v2499, 56
      %v2596 = vpop.permute.xlu0 %2595
      %2597 = vrot.lane.b32.xlu0 %v2500, 56
      %v2598 = vpop.permute.xlu0 %2597
      %2599 = vrot.lane.b32.xlu0 %v2501, 56
      %v2600 = vpop.permute.xlu0 %2599
      %2601 = vrot.lane.b32.xlu0 %v2502, 56
      %v2602 = vpop.permute.xlu0 %2601
      %2603 = vrot.lane.b32.xlu0 %v2503, 56
      %v2604 = vpop.permute.xlu0 %2603
      %2605 = vrot.lane.b32.xlu0 %v2504, 56
      %v2606 = vpop.permute.xlu0 %2605
      %2607 = vrot.lane.b32.xlu0 %v2505, 56
      %v2608 = vpop.permute.xlu0 %2607
      %2609 = vrot.lane.b32.xlu0 %v2506, 56
      %v2610 = vpop.permute.xlu0 %2609
      %2611 = vrot.lane.b32.xlu0 %v2507, 56
      %v2612 = vpop.permute.xlu0 %2611
      %2613 = vrot.lane.b32.xlu0 %v2508, 56
      %v2614 = vpop.permute.xlu0 %2613
      %2615 = vrot.lane.b32.xlu0 %v2509, 56
      %v2616 = vpop.permute.xlu0 %2615
      %2617 = vrot.lane.b32.xlu0 %v2510, 56
      %v2618 = vpop.permute.xlu0 %2617
      %vm2655 = vcmask 523712
      %2656 = vst.msk [vmem:[#allocation3] sm:$0xff] %vm2655, %v2548
      %2657 = vst.msk [vmem:[#allocation3 + $0x8] sm:$0xff] %vm2655, %v2550
      %2658 = vst.msk [vmem:[#allocation3 + $0x10] sm:$0xff] %vm2655, %v2552
      %2659 = vst.msk [vmem:[#allocation3 + $0x18] sm:$0xff] %vm2655, %v2554
      %2660 = vst.msk [vmem:[#allocation3 + $0x20] sm:$0xff] %vm2655, %v2556
      %2661 = vst.msk [vmem:[#allocation3 + $0x28] sm:$0xff] %vm2655, %v2558
      %2662 = vst.msk [vmem:[#allocation3 + $0x30] sm:$0xff] %vm2655, %v2560
      %2663 = vst.msk [vmem:[#allocation3 + $0x38] sm:$0xff] %vm2655, %v2562
      %2664 = vst.msk [vmem:[#allocation3 + $0x40] sm:$0xff] %vm2655, %v2564
      %2665 = vst.msk [vmem:[#allocation3 + $0x48] sm:$0xff] %vm2655, %v2566
      %2666 = vst.msk [vmem:[#allocation3 + $0x50] sm:$0xff] %vm2655, %v2568
      %2667 = vst.msk [vmem:[#allocation3 + $0x58] sm:$0xff] %vm2655, %v2570
      %2668 = vst.msk [vmem:[#allocation3 + $0x60] sm:$0xff] %vm2655, %v2572
      %2669 = vst.msk [vmem:[#allocation3 + $0x68] sm:$0xff] %vm2655, %v2574
      %2670 = vst.msk [vmem:[#allocation3 + $0x70] sm:$0xff] %vm2655, %v2576
      %2671 = vst.msk [vmem:[#allocation3 + $0x78] sm:$0xff] %vm2655, %v2578
      %2672 = vst.msk [vmem:[#allocation3 + $0x80] sm:$0xff] %vm2655, %v2580
      %2673 = vst.msk [vmem:[#allocation3 + $0x88] sm:$0xff] %vm2655, %v2582
      %2674 = vst.msk [vmem:[#allocation3 + $0x90] sm:$0xff] %vm2655, %v2584
      %2675 = vst.msk [vmem:[#allocation3 + $0x98] sm:$0xff] %vm2655, %v2586
      %2676 = vst.msk [vmem:[#allocation3 + $0xa0] sm:$0xff] %vm2655, %v2588
      %2677 = vst.msk [vmem:[#allocation3 + $0xa8] sm:$0xff] %vm2655, %v2590
      %2678 = vst.msk [vmem:[#allocation3 + $0xb0] sm:$0xff] %vm2655, %v2592
      %2679 = vst.msk [vmem:[#allocation3 + $0xb8] sm:$0xff] %vm2655, %v2594
      %2680 = vst.msk [vmem:[#allocation3 + $0xc0] sm:$0xff] %vm2655, %v2596
      %2681 = vst.msk [vmem:[#allocation3 + $0xc8] sm:$0xff] %vm2655, %v2598
      %2682 = vst.msk [vmem:[#allocation3 + $0xd0] sm:$0xff] %vm2655, %v2600
      %2683 = vst.msk [vmem:[#allocation3 + $0xd8] sm:$0xff] %vm2655, %v2602
      %2684 = vst.msk [vmem:[#allocation3 + $0xe0] sm:$0xff] %vm2655, %v2604
      %2685 = vst.msk [vmem:[#allocation3 + $0xe8] sm:$0xff] %vm2655, %v2606
      %2686 = vst.msk [vmem:[#allocation3 + $0xf0] sm:$0xff] %vm2655, %v2608
      %2687 = vst.msk [vmem:[#allocation3 + $0xf8] sm:$0xff] %vm2655, %v2610
      %2688 = vst.msk [vmem:[#allocation3 + $0x100] sm:$0xff] %vm2655, %v2612
      %2689 = vst.msk [vmem:[#allocation3 + $0x108] sm:$0xff] %vm2655, %v2614
      %2690 = vst.msk [vmem:[#allocation3 + $0x110] sm:$0xff] %vm2655, %v2616
      %2691 = vst.msk [vmem:[#allocation3 + $0x118] sm:$0xff] %vm2655, %v2618
      %v2692 = vld [vmem:[#allocation2 + $0x26] sm:$0xff]
      %v2693 = vld [vmem:[#allocation2 + $0x2e] sm:$0xff]
      %v2694 = vld [vmem:[#allocation2 + $0x36] sm:$0xff]
      %v2695 = vld [vmem:[#allocation2 + $0x3e] sm:$0xff]
      %v2696 = vld [vmem:[#allocation2 + $0x46] sm:$0xff]
      %v2697 = vld [vmem:[#allocation2 + $0x4e] sm:$0xff]
      %v2698 = vld [vmem:[#allocation2 + $0x56] sm:$0xff]
      %v2699 = vld [vmem:[#allocation2 + $0x5e] sm:$0xff]
      %v2700 = vld [vmem:[#allocation2 + $0x66] sm:$0xff]
      %v2701 = vld [vmem:[#allocation2 + $0x6e] sm:$0xff]
      %v2702 = vld [vmem:[#allocation2 + $0x76] sm:$0xff]
      %v2703 = vld [vmem:[#allocation2 + $0x7e] sm:$0xff]
      %v2704 = vld [vmem:[#allocation2 + $0x86] sm:$0xff]
      %v2705 = vld [vmem:[#allocation2 + $0x8e] sm:$0xff]
      %v2706 = vld [vmem:[#allocation2 + $0x96] sm:$0xff]
      %v2707 = vld [vmem:[#allocation2 + $0x9e] sm:$0xff]
      %v2708 = vld [vmem:[#allocation2 + $0xa6] sm:$0xff]
      %v2709 = vld [vmem:[#allocation2 + $0xae] sm:$0xff]
      %v2710 = vld [vmem:[#allocation2 + $0xb6] sm:$0xff]
      %v2711 = vld [vmem:[#allocation2 + $0xbe] sm:$0xff]
      %v2712 = vld [vmem:[#allocation2 + $0xc6] sm:$0xff]
      %v2713 = vld [vmem:[#allocation2 + $0xce] sm:$0xff]
      %v2714 = vld [vmem:[#allocation2 + $0xd6] sm:$0xff]
      %v2715 = vld [vmem:[#allocation2 + $0xde] sm:$0xff]
      %v2716 = vld [vmem:[#allocation2 + $0xe6] sm:$0xff]
      %v2717 = vld [vmem:[#allocation2 + $0xee] sm:$0xff]
      %v2718 = vld [vmem:[#allocation2 + $0xf6] sm:$0xff]
      %v2719 = vld [vmem:[#allocation2 + $0xfe] sm:$0xff]
      %v2720 = vld [vmem:[#allocation2 + $0x106] sm:$0xff]
      %v2721 = vld [vmem:[#allocation2 + $0x10e] sm:$0xff]
      %v2722 = vld [vmem:[#allocation2 + $0x116] sm:$0xff]
      %v2723 = vld [vmem:[#allocation2 + $0x11e] sm:$0xff]
      %v2724 = vld [vmem:[#allocation2 + $0x126] sm:$0xff]
      %v2725 = vld [vmem:[#allocation2 + $0x12e] sm:$0xff]
      %v2726 = vld [vmem:[#allocation2 + $0x136] sm:$0xff]
      %v2727 = vld [vmem:[#allocation2 + $0x13e] sm:$0xff]
      %2764 = vrot.lane.b32.xlu0 %v2692, 64
      %v2765 = vpop.permute.xlu0 %2764
      %2766 = vrot.lane.b32.xlu0 %v2693, 64
      %v2767 = vpop.permute.xlu0 %2766
      %2768 = vrot.lane.b32.xlu0 %v2694, 64
      %v2769 = vpop.permute.xlu0 %2768
      %2770 = vrot.lane.b32.xlu0 %v2695, 64
      %v2771 = vpop.permute.xlu0 %2770
      %2772 = vrot.lane.b32.xlu0 %v2696, 64
      %v2773 = vpop.permute.xlu0 %2772
      %2774 = vrot.lane.b32.xlu0 %v2697, 64
      %v2775 = vpop.permute.xlu0 %2774
      %2776 = vrot.lane.b32.xlu0 %v2698, 64
      %v2777 = vpop.permute.xlu0 %2776
      %2778 = vrot.lane.b32.xlu0 %v2699, 64
      %v2779 = vpop.permute.xlu0 %2778
      %2780 = vrot.lane.b32.xlu0 %v2700, 64
      %v2781 = vpop.permute.xlu0 %2780
      %2782 = vrot.lane.b32.xlu0 %v2701, 64
      %v2783 = vpop.permute.xlu0 %2782
      %2784 = vrot.lane.b32.xlu0 %v2702, 64
      %v2785 = vpop.permute.xlu0 %2784
      %2786 = vrot.lane.b32.xlu0 %v2703, 64
      %v2787 = vpop.permute.xlu0 %2786
      %2788 = vrot.lane.b32.xlu0 %v2704, 64
      %v2789 = vpop.permute.xlu0 %2788
      %2790 = vrot.lane.b32.xlu0 %v2705, 64
      %v2791 = vpop.permute.xlu0 %2790
      %2792 = vrot.lane.b32.xlu0 %v2706, 64
      %v2793 = vpop.permute.xlu0 %2792
      %2794 = vrot.lane.b32.xlu0 %v2707, 64
      %v2795 = vpop.permute.xlu0 %2794
      %2796 = vrot.lane.b32.xlu0 %v2708, 64
      %v2797 = vpop.permute.xlu0 %2796
      %2798 = vrot.lane.b32.xlu0 %v2709, 64
      %v2799 = vpop.permute.xlu0 %2798
      %2800 = vrot.lane.b32.xlu0 %v2710, 64
      %v2801 = vpop.permute.xlu0 %2800
      %2802 = vrot.lane.b32.xlu0 %v2711, 64
      %v2803 = vpop.permute.xlu0 %2802
      %2804 = vrot.lane.b32.xlu0 %v2712, 64
      %v2805 = vpop.permute.xlu0 %2804
      %2806 = vrot.lane.b32.xlu0 %v2713, 64
      %v2807 = vpop.permute.xlu0 %2806
      %2808 = vrot.lane.b32.xlu0 %v2714, 64
      %v2809 = vpop.permute.xlu0 %2808
      %2810 = vrot.lane.b32.xlu0 %v2715, 64
      %v2811 = vpop.permute.xlu0 %2810
      %2812 = vrot.lane.b32.xlu0 %v2716, 64
      %v2813 = vpop.permute.xlu0 %2812
      %2814 = vrot.lane.b32.xlu0 %v2717, 64
      %v2815 = vpop.permute.xlu0 %2814
      %2816 = vrot.lane.b32.xlu0 %v2718, 64
      %v2817 = vpop.permute.xlu0 %2816
      %2818 = vrot.lane.b32.xlu0 %v2719, 64
      %v2819 = vpop.permute.xlu0 %2818
      %2820 = vrot.lane.b32.xlu0 %v2720, 64
      %v2821 = vpop.permute.xlu0 %2820
      %2822 = vrot.lane.b32.xlu0 %v2721, 64
      %v2823 = vpop.permute.xlu0 %2822
      %2824 = vrot.lane.b32.xlu0 %v2722, 64
      %v2825 = vpop.permute.xlu0 %2824
      %2826 = vrot.lane.b32.xlu0 %v2723, 64
      %v2827 = vpop.permute.xlu0 %2826
      %2828 = vrot.lane.b32.xlu0 %v2724, 64
      %v2829 = vpop.permute.xlu0 %2828
      %2830 = vrot.lane.b32.xlu0 %v2725, 64
      %v2831 = vpop.permute.xlu0 %2830
      %2832 = vrot.lane.b32.xlu0 %v2726, 64
      %v2833 = vpop.permute.xlu0 %2832
      %2834 = vrot.lane.b32.xlu0 %v2727, 64
      %v2835 = vpop.permute.xlu0 %2834
      %vm2872 = vcmask 589312
      %2873 = vst.msk [vmem:[#allocation3] sm:$0xff] %vm2872, %v2765
      %2874 = vst.msk [vmem:[#allocation3 + $0x8] sm:$0xff] %vm2872, %v2767
      %2875 = vst.msk [vmem:[#allocation3 + $0x10] sm:$0xff] %vm2872, %v2769
      %2876 = vst.msk [vmem:[#allocation3 + $0x18] sm:$0xff] %vm2872, %v2771
      %2877 = vst.msk [vmem:[#allocation3 + $0x20] sm:$0xff] %vm2872, %v2773
      %2878 = vst.msk [vmem:[#allocation3 + $0x28] sm:$0xff] %vm2872, %v2775
      %2879 = vst.msk [vmem:[#allocation3 + $0x30] sm:$0xff] %vm2872, %v2777
      %2880 = vst.msk [vmem:[#allocation3 + $0x38] sm:$0xff] %vm2872, %v2779
      %2881 = vst.msk [vmem:[#allocation3 + $0x40] sm:$0xff] %vm2872, %v2781
      %2882 = vst.msk [vmem:[#allocation3 + $0x48] sm:$0xff] %vm2872, %v2783
      %2883 = vst.msk [vmem:[#allocation3 + $0x50] sm:$0xff] %vm2872, %v2785
      %2884 = vst.msk [vmem:[#allocation3 + $0x58] sm:$0xff] %vm2872, %v2787
      %2885 = vst.msk [vmem:[#allocation3 + $0x60] sm:$0xff] %vm2872, %v2789
      %2886 = vst.msk [vmem:[#allocation3 + $0x68] sm:$0xff] %vm2872, %v2791
      %2887 = vst.msk [vmem:[#allocation3 + $0x70] sm:$0xff] %vm2872, %v2793
      %2888 = vst.msk [vmem:[#allocation3 + $0x78] sm:$0xff] %vm2872, %v2795
      %2889 = vst.msk [vmem:[#allocation3 + $0x80] sm:$0xff] %vm2872, %v2797
      %2890 = vst.msk [vmem:[#allocation3 + $0x88] sm:$0xff] %vm2872, %v2799
      %2891 = vst.msk [vmem:[#allocation3 + $0x90] sm:$0xff] %vm2872, %v2801
      %2892 = vst.msk [vmem:[#allocation3 + $0x98] sm:$0xff] %vm2872, %v2803
      %2893 = vst.msk [vmem:[#allocation3 + $0xa0] sm:$0xff] %vm2872, %v2805
      %2894 = vst.msk [vmem:[#allocation3 + $0xa8] sm:$0xff] %vm2872, %v2807
      %2895 = vst.msk [vmem:[#allocation3 + $0xb0] sm:$0xff] %vm2872, %v2809
      %2896 = vst.msk [vmem:[#allocation3 + $0xb8] sm:$0xff] %vm2872, %v2811
      %2897 = vst.msk [vmem:[#allocation3 + $0xc0] sm:$0xff] %vm2872, %v2813
      %2898 = vst.msk [vmem:[#allocation3 + $0xc8] sm:$0xff] %vm2872, %v2815
      %2899 = vst.msk [vmem:[#allocation3 + $0xd0] sm:$0xff] %vm2872, %v2817
      %2900 = vst.msk [vmem:[#allocation3 + $0xd8] sm:$0xff] %vm2872, %v2819
      %2901 = vst.msk [vmem:[#allocation3 + $0xe0] sm:$0xff] %vm2872, %v2821
      %2902 = vst.msk [vmem:[#allocation3 + $0xe8] sm:$0xff] %vm2872, %v2823
      %2903 = vst.msk [vmem:[#allocation3 + $0xf0] sm:$0xff] %vm2872, %v2825
      %2904 = vst.msk [vmem:[#allocation3 + $0xf8] sm:$0xff] %vm2872, %v2827
      %2905 = vst.msk [vmem:[#allocation3 + $0x100] sm:$0xff] %vm2872, %v2829
      %2906 = vst.msk [vmem:[#allocation3 + $0x108] sm:$0xff] %vm2872, %v2831
      %2907 = vst.msk [vmem:[#allocation3 + $0x110] sm:$0xff] %vm2872, %v2833
      %2908 = vst.msk [vmem:[#allocation3 + $0x118] sm:$0xff] %vm2872, %v2835
      %v2909 = vld [vmem:[#allocation3] sm:$0xff]
      %v2910 = vld [vmem:[#allocation3 + $0x8] sm:$0xff]
      %v2911 = vld [vmem:[#allocation3 + $0x10] sm:$0xff]
      %v2912 = vld [vmem:[#allocation3 + $0x18] sm:$0xff]
      %v2913 = vld [vmem:[#allocation3 + $0x20] sm:$0xff]
      %v2914 = vld [vmem:[#allocation3 + $0x28] sm:$0xff]
      %v2915 = vld [vmem:[#allocation3 + $0x30] sm:$0xff]
      %v2916 = vld [vmem:[#allocation3 + $0x38] sm:$0xff]
      %v2917 = vld [vmem:[#allocation3 + $0x40] sm:$0xff]
      %v2918 = vld [vmem:[#allocation3 + $0x48] sm:$0xff]
      %v2919 = vld [vmem:[#allocation3 + $0x50] sm:$0xff]
      %v2920 = vld [vmem:[#allocation3 + $0x58] sm:$0xff]
      %v2921 = vld [vmem:[#allocation3 + $0x60] sm:$0xff]
      %v2922 = vld [vmem:[#allocation3 + $0x68] sm:$0xff]
      %v2923 = vld [vmem:[#allocation3 + $0x70] sm:$0xff]
      %v2924 = vld [vmem:[#allocation3 + $0x78] sm:$0xff]
      %v2925 = vld [vmem:[#allocation3 + $0x80] sm:$0xff]
      %v2926 = vld [vmem:[#allocation3 + $0x88] sm:$0xff]
      %v2927 = vld [vmem:[#allocation3 + $0x90] sm:$0xff]
      %v2928 = vld [vmem:[#allocation3 + $0x98] sm:$0xff]
      %v2929 = vld [vmem:[#allocation3 + $0xa0] sm:$0xff]
      %v2930 = vld [vmem:[#allocation3 + $0xa8] sm:$0xff]
      %v2931 = vld [vmem:[#allocation3 + $0xb0] sm:$0xff]
      %v2932 = vld [vmem:[#allocation3 + $0xb8] sm:$0xff]
      %v2933 = vld [vmem:[#allocation3 + $0xc0] sm:$0xff]
      %v2934 = vld [vmem:[#allocation3 + $0xc8] sm:$0xff]
      %v2935 = vld [vmem:[#allocation3 + $0xd0] sm:$0xff]
      %v2936 = vld [vmem:[#allocation3 + $0xd8] sm:$0xff]
      %v2937 = vld [vmem:[#allocation3 + $0xe0] sm:$0xff]
      %v2938 = vld [vmem:[#allocation3 + $0xe8] sm:$0xff]
      %v2939 = vld [vmem:[#allocation3 + $0xf0] sm:$0xff]
      %v2940 = vld [vmem:[#allocation3 + $0xf8] sm:$0xff]
      %v2941 = vld [vmem:[#allocation3 + $0x100] sm:$0xff]
      %v2942 = vld [vmem:[#allocation3 + $0x108] sm:$0xff]
      %v2943 = vld [vmem:[#allocation3 + $0x110] sm:$0xff]
      %v2944 = vld [vmem:[#allocation3 + $0x118] sm:$0xff]
      %v2945 = vpack.c.bf16 %v2910, %v2909
      %v2946 = vpack.c.bf16 %v2912, %v2911
      %v2947 = vpack.c.bf16 %v2914, %v2913
      %v2948 = vpack.c.bf16 %v2916, %v2915
      %v2949 = vpack.c.bf16 %v2918, %v2917
      %v2950 = vpack.c.bf16 %v2920, %v2919
      %v2951 = vpack.c.bf16 %v2922, %v2921
      %v2952 = vpack.c.bf16 %v2924, %v2923
      %v2953 = vpack.c.bf16 %v2926, %v2925
      %v2954 = vpack.c.bf16 %v2928, %v2927
      %v2955 = vpack.c.bf16 %v2930, %v2929
      %v2956 = vpack.c.bf16 %v2932, %v2931
      %v2957 = vpack.c.bf16 %v2934, %v2933
      %v2958 = vpack.c.bf16 %v2936, %v2935
      %v2959 = vpack.c.bf16 %v2938, %v2937
      %v2960 = vpack.c.bf16 %v2940, %v2939
      %v2961 = vpack.c.bf16 %v2942, %v2941
      %v2962 = vpack.c.bf16 %v2944, %v2943
      %v2963 = vld [vmem:[%s4] sm:$0xf]
      %v2964 = vld [vmem:[%s5] sm:$0x1]
      %v2966 = vlaneseq
      %v2967 = vshrl.u32 %v2966, 7
      %v2968 = vsub.s32 0, %v2967
      %v2969 = vrot.slane %v2964, %v2968
      %2989 = vrot.lane.b32.xlu0 %v2945, 96
      %v2990 = vpop.permute.xlu0 %2989
      %2991 = vrot.lane.b32.xlu0 %v2946, 96
      %v2992 = vpop.permute.xlu0 %2991
      %2993 = vrot.lane.b32.xlu0 %v2947, 96
      %v2994 = vpop.permute.xlu0 %2993
      %2995 = vrot.lane.b32.xlu0 %v2948, 96
      %v2996 = vpop.permute.xlu0 %2995
      %2997 = vrot.lane.b32.xlu0 %v2949, 96
      %v2998 = vpop.permute.xlu0 %2997
      %2999 = vrot.lane.b32.xlu0 %v2950, 96
      %v3000 = vpop.permute.xlu0 %2999
      %3001 = vrot.lane.b32.xlu0 %v2951, 96
      %v3002 = vpop.permute.xlu0 %3001
      %3003 = vrot.lane.b32.xlu0 %v2952, 96
      %v3004 = vpop.permute.xlu0 %3003
      %3005 = vrot.lane.b32.xlu0 %v2953, 96
      %v3006 = vpop.permute.xlu0 %3005
      %3007 = vrot.lane.b32.xlu0 %v2954, 96
      %v3008 = vpop.permute.xlu0 %3007
      %3009 = vrot.lane.b32.xlu0 %v2955, 96
      %v3010 = vpop.permute.xlu0 %3009
      %3011 = vrot.lane.b32.xlu0 %v2956, 96
      %v3012 = vpop.permute.xlu0 %3011
      %3013 = vrot.lane.b32.xlu0 %v2957, 96
      %v3014 = vpop.permute.xlu0 %3013
      %3015 = vrot.lane.b32.xlu0 %v2958, 96
      %v3016 = vpop.permute.xlu0 %3015
      %3017 = vrot.lane.b32.xlu0 %v2959, 96
      %v3018 = vpop.permute.xlu0 %3017
      %3019 = vrot.lane.b32.xlu0 %v2960, 96
      %v3020 = vpop.permute.xlu0 %3019
      %3021 = vrot.lane.b32.xlu0 %v2961, 96
      %v3022 = vpop.permute.xlu0 %3021
      %3023 = vrot.lane.b32.xlu0 %v2962, 96
      %v3024 = vpop.permute.xlu0 %3023
      %v3026 = vsel %vm459, %v2990, 0
      %v3029 = vsel %vm459, %v2992, 0
      %v3032 = vsel %vm459, %v2994, 0
      %v3035 = vsel %vm459, %v2996, 0
      %v3038 = vsel %vm459, %v2998, 0
      %v3041 = vsel %vm459, %v3000, 0
      %v3044 = vsel %vm459, %v3002, 0
      %v3047 = vsel %vm459, %v3004, 0
      %v3050 = vsel %vm459, %v3006, 0
      %v3053 = vsel %vm459, %v3008, 0
      %v3056 = vsel %vm459, %v3010, 0
      %v3059 = vsel %vm459, %v3012, 0
      %v3062 = vsel %vm459, %v3014, 0
      %v3065 = vsel %vm459, %v3016, 0
      %v3068 = vsel %vm459, %v3018, 0
      %v3071 = vsel %vm459, %v3020, 0
      %v3074 = vsel %vm459, %v3022, 0
      %v3077 = vsel %vm459, %v3024, 0
      %v3080 = vsel %vm523, %v2963, 0
      %3082 = vmatprep.subr.bf16.mxu0 0
      %3083 = vmatpush1.bf16.msra.mxu0 0
      %3084 = vmatprep.subr.bf16.mxu0 0
      %3085 = vmatpush1.bf16.msra.mxu0 0
      %3086 = vmatprep.subr.bf16.mxu0 0
      %3087 = vmatpush1.bf16.msra.mxu0 0
      %3088 = vmatprep.subr.bf16.mxu0 0
      %3089 = vmatpush1.bf16.msra.mxu0 0
      %3090 = vmatprep.subr.bf16.mxu0 0
      %3091 = vmatpush1.bf16.msra.mxu0 0
      %3092 = vmatprep.subr.bf16.mxu0 0
      %3093 = vmatpush1.bf16.msra.mxu0 0
      %3094 = vmatprep.subr.bf16.mxu0 0
      %3095 = vmatpush1.bf16.msra.mxu0 0
      %3096 = vmatprep.subr.bf16.mxu0 0
      %3097 = vmatpush1.bf16.msra.mxu0 %v3080
      %3098 = vmatprep.subr.bf16.mxu0 0
      %3099 = vmatpush2.bf16.msra.mxu0 0
      %3100 = vmatprep.subr.bf16.mxu0 0
      %3101 = vmatpush2.bf16.msra.mxu0 0
      %3102 = vmatprep.subr.bf16.mxu0 0
      %3103 = vmatpush2.bf16.msra.mxu0 0
      %3104 = vmatprep.subr.bf16.mxu0 0
      %3105 = vmatpush2.bf16.msra.mxu0 0
      %3106 = vmatprep.subr.bf16.mxu0 0
      %3107 = vmatpush2.bf16.msra.mxu0 0
      %3108 = vmatprep.subr.bf16.mxu0 0
      %3109 = vmatpush2.bf16.msra.mxu0 0
      %3110 = vmatprep.subr.bf16.mxu0 0
      %3111 = vmatpush2.bf16.msra.mxu0 0
      %3112 = vmatprep.subr.bf16.mxu0 0
      %3113 = vmatpush2.bf16.msra.mxu0 0
      %3114 = vmatprep.mubr.bf16.mxu0 0
      %3115 = vmatmul.mubr.bf16.gmra.mxu0 %v3026
      %v3116 = vpop.f32.mrf.mxu0
      %v3117 = vadd.f32 %v2969, %v3116
      %v3118 = vpop.f32.mrf.mxu0
      %v3119 = vpop.f32.mrf.mxu0
      %v3120 = vadd.f32 %v2969, %v3119
      %v3121 = vpop.f32.mrf.mxu0
      %3122 = vmatprep.mubr.bf16.mxu0 0
      %3123 = vmatmul.mubr.bf16.gmra.mxu0 %v3029
      %v3124 = vpop.f32.mrf.mxu0
      %v3125 = vadd.f32 %v2969, %v3124
      %v3126 = vpop.f32.mrf.mxu0
      %v3127 = vpop.f32.mrf.mxu0
      %v3128 = vadd.f32 %v2969, %v3127
      %v3129 = vpop.f32.mrf.mxu0
      %3130 = vmatprep.mubr.bf16.mxu0 0
      %3131 = vmatmul.mubr.bf16.gmra.mxu0 %v3032
      %v3132 = vpop.f32.mrf.mxu0
      %v3133 = vadd.f32 %v2969, %v3132
      %v3134 = vpop.f32.mrf.mxu0
      %v3135 = vpop.f32.mrf.mxu0
      %v3136 = vadd.f32 %v2969, %v3135
      %v3137 = vpop.f32.mrf.mxu0
      %3138 = vmatprep.mubr.bf16.mxu0 0
      %3139 = vmatmul.mubr.bf16.gmra.mxu0 %v3035
      %v3140 = vpop.f32.mrf.mxu0
      %v3141 = vadd.f32 %v2969, %v3140
      %v3142 = vpop.f32.mrf.mxu0
      %v3143 = vpop.f32.mrf.mxu0
      %v3144 = vadd.f32 %v2969, %v3143
      %v3145 = vpop.f32.mrf.mxu0
      %3146 = vmatprep.mubr.bf16.mxu0 0
      %3147 = vmatmul.mubr.bf16.gmra.mxu0 %v3038
      %v3148 = vpop.f32.mrf.mxu0
      %v3149 = vadd.f32 %v2969, %v3148
      %v3150 = vpop.f32.mrf.mxu0
      %v3151 = vpop.f32.mrf.mxu0
      %v3152 = vadd.f32 %v2969, %v3151
      %v3153 = vpop.f32.mrf.mxu0
      %3154 = vmatprep.mubr.bf16.mxu0 0
      %3155 = vmatmul.mubr.bf16.gmra.mxu0 %v3041
      %v3156 = vpop.f32.mrf.mxu0
      %v3157 = vadd.f32 %v2969, %v3156
      %v3158 = vpop.f32.mrf.mxu0
      %v3159 = vpop.f32.mrf.mxu0
      %v3160 = vadd.f32 %v2969, %v3159
      %v3161 = vpop.f32.mrf.mxu0
      %3162 = vmatprep.mubr.bf16.mxu0 0
      %3163 = vmatmul.mubr.bf16.gmra.mxu0 %v3044
      %v3164 = vpop.f32.mrf.mxu0
      %v3165 = vadd.f32 %v2969, %v3164
      %v3166 = vpop.f32.mrf.mxu0
      %v3167 = vpop.f32.mrf.mxu0
      %v3168 = vadd.f32 %v2969, %v3167
      %v3169 = vpop.f32.mrf.mxu0
      %3170 = vmatprep.mubr.bf16.mxu0 0
      %3171 = vmatmul.mubr.bf16.gmra.mxu0 %v3047
      %v3172 = vpop.f32.mrf.mxu0
      %v3173 = vadd.f32 %v2969, %v3172
      %v3174 = vpop.f32.mrf.mxu0
      %v3175 = vpop.f32.mrf.mxu0
      %v3176 = vadd.f32 %v2969, %v3175
      %v3177 = vpop.f32.mrf.mxu0
      %3178 = vmatprep.mubr.bf16.mxu0 0
      %3179 = vmatmul.mubr.bf16.gmra.mxu0 %v3050
      %v3180 = vpop.f32.mrf.mxu0
      %v3181 = vadd.f32 %v2969, %v3180
      %v3182 = vpop.f32.mrf.mxu0
      %v3183 = vpop.f32.mrf.mxu0
      %v3184 = vadd.f32 %v2969, %v3183
      %v3185 = vpop.f32.mrf.mxu0
      %3186 = vmatprep.mubr.bf16.mxu0 0
      %3187 = vmatmul.mubr.bf16.gmra.mxu0 %v3053
      %v3188 = vpop.f32.mrf.mxu0
      %v3189 = vadd.f32 %v2969, %v3188
      %v3190 = vpop.f32.mrf.mxu0
      %v3191 = vpop.f32.mrf.mxu0
      %v3192 = vadd.f32 %v2969, %v3191
      %v3193 = vpop.f32.mrf.mxu0
      %3194 = vmatprep.mubr.bf16.mxu0 0
      %3195 = vmatmul.mubr.bf16.gmra.mxu0 %v3056
      %v3196 = vpop.f32.mrf.mxu0
      %v3197 = vadd.f32 %v2969, %v3196
      %v3198 = vpop.f32.mrf.mxu0
      %v3199 = vpop.f32.mrf.mxu0
      %v3200 = vadd.f32 %v2969, %v3199
      %v3201 = vpop.f32.mrf.mxu0
      %3202 = vmatprep.mubr.bf16.mxu0 0
      %3203 = vmatmul.mubr.bf16.gmra.mxu0 %v3059
      %v3204 = vpop.f32.mrf.mxu0
      %v3205 = vadd.f32 %v2969, %v3204
      %v3206 = vpop.f32.mrf.mxu0
      %v3207 = vpop.f32.mrf.mxu0
      %v3208 = vadd.f32 %v2969, %v3207
      %v3209 = vpop.f32.mrf.mxu0
      %3210 = vmatprep.mubr.bf16.mxu0 0
      %3211 = vmatmul.mubr.bf16.gmra.mxu0 %v3062
      %v3212 = vpop.f32.mrf.mxu0
      %v3213 = vadd.f32 %v2969, %v3212
      %v3214 = vpop.f32.mrf.mxu0
      %v3215 = vpop.f32.mrf.mxu0
      %v3216 = vadd.f32 %v2969, %v3215
      %v3217 = vpop.f32.mrf.mxu0
      %3218 = vmatprep.mubr.bf16.mxu0 0
      %3219 = vmatmul.mubr.bf16.gmra.mxu0 %v3065
      %v3220 = vpop.f32.mrf.mxu0
      %v3221 = vadd.f32 %v2969, %v3220
      %v3222 = vpop.f32.mrf.mxu0
      %v3223 = vpop.f32.mrf.mxu0
      %v3224 = vadd.f32 %v2969, %v3223
      %v3225 = vpop.f32.mrf.mxu0
      %3226 = vmatprep.mubr.bf16.mxu0 0
      %3227 = vmatmul.mubr.bf16.gmra.mxu0 %v3068
      %v3228 = vpop.f32.mrf.mxu0
      %v3229 = vadd.f32 %v2969, %v3228
      %v3230 = vpop.f32.mrf.mxu0
      %v3231 = vpop.f32.mrf.mxu0
      %v3232 = vadd.f32 %v2969, %v3231
      %v3233 = vpop.f32.mrf.mxu0
      %3234 = vmatprep.mubr.bf16.mxu0 0
      %3235 = vmatmul.mubr.bf16.gmra.mxu0 %v3071
      %v3236 = vpop.f32.mrf.mxu0
      %v3237 = vadd.f32 %v2969, %v3236
      %v3238 = vpop.f32.mrf.mxu0
      %v3239 = vpop.f32.mrf.mxu0
      %v3240 = vadd.f32 %v2969, %v3239
      %v3241 = vpop.f32.mrf.mxu0
      %3242 = vmatprep.mubr.bf16.mxu0 0
      %3243 = vmatmul.mubr.bf16.gmra.mxu0 %v3074
      %v3244 = vpop.f32.mrf.mxu0
      %v3245 = vadd.f32 %v2969, %v3244
      %v3246 = vpop.f32.mrf.mxu0
      %v3247 = vpop.f32.mrf.mxu0
      %v3248 = vadd.f32 %v2969, %v3247
      %v3249 = vpop.f32.mrf.mxu0
      %3250 = vmatprep.mubr.bf16.mxu0 0
      %3251 = vmatmul.mubr.bf16.gmra.mxu0 %v3077
      %v3252 = vpop.f32.mrf.mxu0
      %v3253 = vadd.f32 %v2969, %v3252
      %v3254 = vpop.f32.mrf.mxu0
      %v3255 = vpop.f32.mrf.mxu0
      %v3256 = vadd.f32 %v2969, %v3255
      %v3257 = vpop.f32.mrf.mxu0
      %3258 = vdwg.mxu0
      %v3259 = vmax.f32 %v3117, 0.0
      %v3260 = vmax.f32 %v3120, 0.0
      %v3261 = vmax.f32 %v3125, 0.0
      %v3262 = vmax.f32 %v3128, 0.0
      %v3263 = vmax.f32 %v3133, 0.0
      %v3264 = vmax.f32 %v3136, 0.0
      %v3265 = vmax.f32 %v3141, 0.0
      %v3266 = vmax.f32 %v3144, 0.0
      %v3267 = vmax.f32 %v3149, 0.0
      %v3268 = vmax.f32 %v3152, 0.0
      %v3269 = vmax.f32 %v3157, 0.0
      %v3270 = vmax.f32 %v3160, 0.0
      %v3271 = vmax.f32 %v3165, 0.0
      %v3272 = vmax.f32 %v3168, 0.0
      %v3273 = vmax.f32 %v3173, 0.0
      %v3274 = vmax.f32 %v3176, 0.0
      %v3275 = vmax.f32 %v3181, 0.0
      %v3276 = vmax.f32 %v3184, 0.0
      %v3277 = vmax.f32 %v3189, 0.0
      %v3278 = vmax.f32 %v3192, 0.0
      %v3279 = vmax.f32 %v3197, 0.0
      %v3280 = vmax.f32 %v3200, 0.0
      %v3281 = vmax.f32 %v3205, 0.0
      %v3282 = vmax.f32 %v3208, 0.0
      %v3283 = vmax.f32 %v3213, 0.0
      %v3284 = vmax.f32 %v3216, 0.0
      %v3285 = vmax.f32 %v3221, 0.0
      %v3286 = vmax.f32 %v3224, 0.0
      %v3287 = vmax.f32 %v3229, 0.0
      %v3288 = vmax.f32 %v3232, 0.0
      %v3289 = vmax.f32 %v3237, 0.0
      %v3290 = vmax.f32 %v3240, 0.0
      %v3291 = vmax.f32 %v3245, 0.0
      %v3292 = vmax.f32 %v3248, 0.0
      %v3293 = vmax.f32 %v3253, 0.0
      %v3294 = vmax.f32 %v3256, 0.0
      %v3295 = vld [vmem:[%s6] sm:$0xf]
      %v3296 = vld [vmem:[%s6 + $0x4] sm:$0xf]
      %v3297 = vld [vmem:[%s6 + $0x8] sm:$0xf]
      %v3298 = vld [vmem:[%s6 + $0xc] sm:$0xf]
      %v3299 = vld [vmem:[%s6 + $0x10] sm:$0xf]
      %v3300 = vld [vmem:[%s6 + $0x14] sm:$0xf]
      %v3301 = vld [vmem:[%s6 + $0x18] sm:$0xf]
      %v3302 = vld [vmem:[%s6 + $0x1c] sm:$0xf]
      %v3303 = vld [vmem:[%s6 + $0x20] sm:$0xf]
      %v3304 = vld [vmem:[%s7] sm:$0x1]
      %v3306 = vlaneseq
      %v3307 = vshrl.u32 %v3306, 7
      %v3308 = vsub.s32 0, %v3307
      %v3309 = vrot.slane %v3304, %v3308
      %v3320 = vunpack.c.l.b16 %v3295
      %v3321 = vunpack.c.l.b16 %v3296
      %v3322 = vunpack.c.l.b16 %v3297
      %v3323 = vunpack.c.l.b16 %v3298
      %v3324 = vunpack.c.l.b16 %v3299
      %v3325 = vunpack.c.l.b16 %v3300
      %v3326 = vunpack.c.l.b16 %v3301
      %v3327 = vunpack.c.l.b16 %v3302
      %v3328 = vunpack.c.l.b16 %v3303
      %v3329 = vpack.c.b16 %v3321, %v3320
      %v3330 = vpack.c.b16 %v3323, %v3322
      %v3331 = vpack.c.b16 %v3325, %v3324
      %v3332 = vpack.c.b16 %v3327, %v3326
      %v3333 = vpack.c.b16 %v3328, %v3328
      %vm3338 = vcmask 588800
      %v3340 = vsel %vm3338, %v2945, 0
      %v3343 = vsel %vm3338, %v2946, 0
      %v3346 = vsel %vm3338, %v2947, 0
      %v3349 = vsel %vm3338, %v2948, 0
      %v3352 = vsel %vm3338, %v2949, 0
      %v3355 = vsel %vm3338, %v2950, 0
      %v3358 = vsel %vm3338, %v2951, 0
      %v3361 = vsel %vm3338, %v2952, 0
      %v3364 = vsel %vm3338, %v2953, 0
      %v3367 = vsel %vm3338, %v2954, 0
      %v3370 = vsel %vm3338, %v2955, 0
      %v3373 = vsel %vm3338, %v2956, 0
      %v3376 = vsel %vm3338, %v2957, 0
      %v3379 = vsel %vm3338, %v2958, 0
      %v3382 = vsel %vm3338, %v2959, 0
      %v3385 = vsel %vm3338, %v2960, 0
      %v3388 = vsel %vm3338, %v2961, 0
      %v3391 = vsel %vm3338, %v2962, 0
      %v3394 = vsel %vm523, %v3333, 0
      %3396 = vmatprep.subr.bf16.mxu0 0
      %3397 = vmatpush1.bf16.msra.mxu0 0
      %3398 = vmatprep.subr.bf16.mxu0 0
      %3399 = vmatpush1.bf16.msra.mxu0 0
      %3400 = vmatprep.subr.bf16.mxu0 0
      %3401 = vmatpush1.bf16.msra.mxu0 0
      %3402 = vmatprep.subr.bf16.mxu0 0
      %3403 = vmatpush1.bf16.msra.mxu0 %v3394
      %3404 = vmatprep.subr.bf16.mxu0 0
      %3405 = vmatpush1.bf16.msra.mxu0 %v3332
      %3406 = vmatprep.subr.bf16.mxu0 0
      %3407 = vmatpush1.bf16.msra.mxu0 %v3331
      %3408 = vmatprep.subr.bf16.mxu0 0
      %3409 = vmatpush1.bf16.msra.mxu0 %v3330
      %3410 = vmatprep.subr.bf16.mxu0 0
      %3411 = vmatpush1.bf16.msra.mxu0 %v3329
      %3412 = vmatprep.subr.bf16.mxu0 0
      %3413 = vmatpush2.bf16.msra.mxu0 0
      %3414 = vmatprep.subr.bf16.mxu0 0
      %3415 = vmatpush2.bf16.msra.mxu0 0
      %3416 = vmatprep.subr.bf16.mxu0 0
      %3417 = vmatpush2.bf16.msra.mxu0 0
      %3418 = vmatprep.subr.bf16.mxu0 0
      %3419 = vmatpush2.bf16.msra.mxu0 0
      %3420 = vmatprep.subr.bf16.mxu0 0
      %3421 = vmatpush2.bf16.msra.mxu0 0
      %3422 = vmatprep.subr.bf16.mxu0 0
      %3423 = vmatpush2.bf16.msra.mxu0 0
      %3424 = vmatprep.subr.bf16.mxu0 0
      %3425 = vmatpush2.bf16.msra.mxu0 0
      %3426 = vmatprep.subr.bf16.mxu0 0
      %3427 = vmatpush2.bf16.msra.mxu0 0
      %3428 = vmatprep.mubr.bf16.mxu0 0
      %3429 = vmatmul.mubr.bf16.gmra.mxu0 %v3340
      %v3430 = vpop.f32.mrf.mxu0
      %v3431 = vadd.f32 %v3309, %v3430
      %v3432 = vpop.f32.mrf.mxu0
      %v3433 = vpop.f32.mrf.mxu0
      %v3434 = vadd.f32 %v3309, %v3433
      %v3435 = vpop.f32.mrf.mxu0
      %3436 = vmatprep.mubr.bf16.mxu0 0
      %3437 = vmatmul.mubr.bf16.gmra.mxu0 %v3343
      %v3438 = vpop.f32.mrf.mxu0
      %v3439 = vadd.f32 %v3309, %v3438
      %v3440 = vpop.f32.mrf.mxu0
      %v3441 = vpop.f32.mrf.mxu0
      %v3442 = vadd.f32 %v3309, %v3441
      %v3443 = vpop.f32.mrf.mxu0
      %3444 = vmatprep.mubr.bf16.mxu0 0
      %3445 = vmatmul.mubr.bf16.gmra.mxu0 %v3346
      %v3446 = vpop.f32.mrf.mxu0
      %v3447 = vadd.f32 %v3309, %v3446
      %v3448 = vpop.f32.mrf.mxu0
      %v3449 = vpop.f32.mrf.mxu0
      %v3450 = vadd.f32 %v3309, %v3449
      %v3451 = vpop.f32.mrf.mxu0
      %3452 = vmatprep.mubr.bf16.mxu0 0
      %3453 = vmatmul.mubr.bf16.gmra.mxu0 %v3349
      %v3454 = vpop.f32.mrf.mxu0
      %v3455 = vadd.f32 %v3309, %v3454
      %v3456 = vpop.f32.mrf.mxu0
      %v3457 = vpop.f32.mrf.mxu0
      %v3458 = vadd.f32 %v3309, %v3457
      %v3459 = vpop.f32.mrf.mxu0
      %3460 = vmatprep.mubr.bf16.mxu0 0
      %3461 = vmatmul.mubr.bf16.gmra.mxu0 %v3352
      %v3462 = vpop.f32.mrf.mxu0
      %v3463 = vadd.f32 %v3309, %v3462
      %v3464 = vpop.f32.mrf.mxu0
      %v3465 = vpop.f32.mrf.mxu0
      %v3466 = vadd.f32 %v3309, %v3465
      %v3467 = vpop.f32.mrf.mxu0
      %3468 = vmatprep.mubr.bf16.mxu0 0
      %3469 = vmatmul.mubr.bf16.gmra.mxu0 %v3355
      %v3470 = vpop.f32.mrf.mxu0
      %v3471 = vadd.f32 %v3309, %v3470
      %v3472 = vpop.f32.mrf.mxu0
      %v3473 = vpop.f32.mrf.mxu0
      %v3474 = vadd.f32 %v3309, %v3473
      %v3475 = vpop.f32.mrf.mxu0
      %3476 = vmatprep.mubr.bf16.mxu0 0
      %3477 = vmatmul.mubr.bf16.gmra.mxu0 %v3358
      %v3478 = vpop.f32.mrf.mxu0
      %v3479 = vadd.f32 %v3309, %v3478
      %v3480 = vpop.f32.mrf.mxu0
      %v3481 = vpop.f32.mrf.mxu0
      %v3482 = vadd.f32 %v3309, %v3481
      %v3483 = vpop.f32.mrf.mxu0
      %3484 = vmatprep.mubr.bf16.mxu0 0
      %3485 = vmatmul.mubr.bf16.gmra.mxu0 %v3361
      %v3486 = vpop.f32.mrf.mxu0
      %v3487 = vadd.f32 %v3309, %v3486
      %v3488 = vpop.f32.mrf.mxu0
      %v3489 = vpop.f32.mrf.mxu0
      %v3490 = vadd.f32 %v3309, %v3489
      %v3491 = vpop.f32.mrf.mxu0
      %3492 = vmatprep.mubr.bf16.mxu0 0
      %3493 = vmatmul.mubr.bf16.gmra.mxu0 %v3364
      %v3494 = vpop.f32.mrf.mxu0
      %v3495 = vadd.f32 %v3309, %v3494
      %v3496 = vpop.f32.mrf.mxu0
      %v3497 = vpop.f32.mrf.mxu0
      %v3498 = vadd.f32 %v3309, %v3497
      %v3499 = vpop.f32.mrf.mxu0
      %3500 = vmatprep.mubr.bf16.mxu0 0
      %3501 = vmatmul.mubr.bf16.gmra.mxu0 %v3367
      %v3502 = vpop.f32.mrf.mxu0
      %v3503 = vadd.f32 %v3309, %v3502
      %v3504 = vpop.f32.mrf.mxu0
      %v3505 = vpop.f32.mrf.mxu0
      %v3506 = vadd.f32 %v3309, %v3505
      %v3507 = vpop.f32.mrf.mxu0
      %3508 = vmatprep.mubr.bf16.mxu0 0
      %3509 = vmatmul.mubr.bf16.gmra.mxu0 %v3370
      %v3510 = vpop.f32.mrf.mxu0
      %v3511 = vadd.f32 %v3309, %v3510
      %v3512 = vpop.f32.mrf.mxu0
      %v3513 = vpop.f32.mrf.mxu0
      %v3514 = vadd.f32 %v3309, %v3513
      %v3515 = vpop.f32.mrf.mxu0
      %3516 = vmatprep.mubr.bf16.mxu0 0
      %3517 = vmatmul.mubr.bf16.gmra.mxu0 %v3373
      %v3518 = vpop.f32.mrf.mxu0
      %v3519 = vadd.f32 %v3309, %v3518
      %v3520 = vpop.f32.mrf.mxu0
      %v3521 = vpop.f32.mrf.mxu0
      %v3522 = vadd.f32 %v3309, %v3521
      %v3523 = vpop.f32.mrf.mxu0
      %3524 = vmatprep.mubr.bf16.mxu0 0
      %3525 = vmatmul.mubr.bf16.gmra.mxu0 %v3376
      %v3526 = vpop.f32.mrf.mxu0
      %v3527 = vadd.f32 %v3309, %v3526
      %v3528 = vpop.f32.mrf.mxu0
      %v3529 = vpop.f32.mrf.mxu0
      %v3530 = vadd.f32 %v3309, %v3529
      %v3531 = vpop.f32.mrf.mxu0
      %3532 = vmatprep.mubr.bf16.mxu0 0
      %3533 = vmatmul.mubr.bf16.gmra.mxu0 %v3379
      %v3534 = vpop.f32.mrf.mxu0
      %v3535 = vadd.f32 %v3309, %v3534
      %v3536 = vpop.f32.mrf.mxu0
      %v3537 = vpop.f32.mrf.mxu0
      %v3538 = vadd.f32 %v3309, %v3537
      %v3539 = vpop.f32.mrf.mxu0
      %3540 = vmatprep.mubr.bf16.mxu0 0
      %3541 = vmatmul.mubr.bf16.gmra.mxu0 %v3382
      %v3542 = vpop.f32.mrf.mxu0
      %v3543 = vadd.f32 %v3309, %v3542
      %v3544 = vpop.f32.mrf.mxu0
      %v3545 = vpop.f32.mrf.mxu0
      %v3546 = vadd.f32 %v3309, %v3545
      %v3547 = vpop.f32.mrf.mxu0
      %3548 = vmatprep.mubr.bf16.mxu0 0
      %3549 = vmatmul.mubr.bf16.gmra.mxu0 %v3385
      %v3550 = vpop.f32.mrf.mxu0
      %v3551 = vadd.f32 %v3309, %v3550
      %v3552 = vpop.f32.mrf.mxu0
      %v3553 = vpop.f32.mrf.mxu0
      %v3554 = vadd.f32 %v3309, %v3553
      %v3555 = vpop.f32.mrf.mxu0
      %3556 = vmatprep.mubr.bf16.mxu0 0
      %3557 = vmatmul.mubr.bf16.gmra.mxu0 %v3388
      %v3558 = vpop.f32.mrf.mxu0
      %v3559 = vadd.f32 %v3309, %v3558
      %v3560 = vpop.f32.mrf.mxu0
      %v3561 = vpop.f32.mrf.mxu0
      %v3562 = vadd.f32 %v3309, %v3561
      %v3563 = vpop.f32.mrf.mxu0
      %3564 = vmatprep.mubr.bf16.mxu0 0
      %3565 = vmatmul.mubr.bf16.gmra.mxu0 %v3391
      %v3566 = vpop.f32.mrf.mxu0
      %v3567 = vadd.f32 %v3309, %v3566
      %v3568 = vpop.f32.mrf.mxu0
      %v3569 = vpop.f32.mrf.mxu0
      %v3570 = vadd.f32 %v3309, %v3569
      %v3571 = vpop.f32.mrf.mxu0
      %3572 = vdwg.mxu0
      %v3573 = vmax.f32 %v3431, 0.0
      %v3574 = vmax.f32 %v3434, 0.0
      %v3575 = vmax.f32 %v3439, 0.0
      %v3576 = vmax.f32 %v3442, 0.0
      %v3577 = vmax.f32 %v3447, 0.0
      %v3578 = vmax.f32 %v3450, 0.0
      %v3579 = vmax.f32 %v3455, 0.0
      %v3580 = vmax.f32 %v3458, 0.0
      %v3581 = vmax.f32 %v3463, 0.0
      %v3582 = vmax.f32 %v3466, 0.0
      %v3583 = vmax.f32 %v3471, 0.0
      %v3584 = vmax.f32 %v3474, 0.0
      %v3585 = vmax.f32 %v3479, 0.0
      %v3586 = vmax.f32 %v3482, 0.0
      %v3587 = vmax.f32 %v3487, 0.0
      %v3588 = vmax.f32 %v3490, 0.0
      %v3589 = vmax.f32 %v3495, 0.0
      %v3590 = vmax.f32 %v3498, 0.0
      %v3591 = vmax.f32 %v3503, 0.0
      %v3592 = vmax.f32 %v3506, 0.0
      %v3593 = vmax.f32 %v3511, 0.0
      %v3594 = vmax.f32 %v3514, 0.0
      %v3595 = vmax.f32 %v3519, 0.0
      %v3596 = vmax.f32 %v3522, 0.0
      %v3597 = vmax.f32 %v3527, 0.0
      %v3598 = vmax.f32 %v3530, 0.0
      %v3599 = vmax.f32 %v3535, 0.0
      %v3600 = vmax.f32 %v3538, 0.0
      %v3601 = vmax.f32 %v3543, 0.0
      %v3602 = vmax.f32 %v3546, 0.0
      %v3603 = vmax.f32 %v3551, 0.0
      %v3604 = vmax.f32 %v3554, 0.0
      %v3605 = vmax.f32 %v3559, 0.0
      %v3606 = vmax.f32 %v3562, 0.0
      %v3607 = vmax.f32 %v3567, 0.0
      %v3608 = vmax.f32 %v3570, 0.0
      %vm3609 = vcmask 130048
      %3610 = vst.msk [vmem:[%s305] sm:$0xff] %vm3609, %v3259
      %3611 = vst.msk [vmem:[%s305 + $0x8] sm:$0xff] %vm3609, %v3260
      %3612 = vst.msk [vmem:[%s305 + $0x10] sm:$0xff] %vm3609, %v3261
      %3613 = vst.msk [vmem:[%s305 + $0x18] sm:$0xff] %vm3609, %v3262
      %3614 = vst.msk [vmem:[%s305 + $0x20] sm:$0xff] %vm3609, %v3263
      %3615 = vst.msk [vmem:[%s305 + $0x28] sm:$0xff] %vm3609, %v3264
      %3616 = vst.msk [vmem:[%s305 + $0x30] sm:$0xff] %vm3609, %v3265
      %3617 = vst.msk [vmem:[%s305 + $0x38] sm:$0xff] %vm3609, %v3266
      %3618 = vst.msk [vmem:[%s305 + $0x40] sm:$0xff] %vm3609, %v3267
      %3619 = vst.msk [vmem:[%s305 + $0x48] sm:$0xff] %vm3609, %v3268
      %3620 = vst.msk [vmem:[%s305 + $0x50] sm:$0xff] %vm3609, %v3269
      %3621 = vst.msk [vmem:[%s305 + $0x58] sm:$0xff] %vm3609, %v3270
      %3622 = vst.msk [vmem:[%s305 + $0x60] sm:$0xff] %vm3609, %v3271
      %3623 = vst.msk [vmem:[%s305 + $0x68] sm:$0xff] %vm3609, %v3272
      %3624 = vst.msk [vmem:[%s305 + $0x70] sm:$0xff] %vm3609, %v3273
      %3625 = vst.msk [vmem:[%s305 + $0x78] sm:$0xff] %vm3609, %v3274
      %3626 = vst.msk [vmem:[%s305 + $0x80] sm:$0xff] %vm3609, %v3275
      %3627 = vst.msk [vmem:[%s305 + $0x88] sm:$0xff] %vm3609, %v3276
      %3628 = vst.msk [vmem:[%s305 + $0x90] sm:$0xff] %vm3609, %v3277
      %3629 = vst.msk [vmem:[%s305 + $0x98] sm:$0xff] %vm3609, %v3278
      %3630 = vst.msk [vmem:[%s305 + $0xa0] sm:$0xff] %vm3609, %v3279
      %3631 = vst.msk [vmem:[%s305 + $0xa8] sm:$0xff] %vm3609, %v3280
      %3632 = vst.msk [vmem:[%s305 + $0xb0] sm:$0xff] %vm3609, %v3281
      %3633 = vst.msk [vmem:[%s305 + $0xb8] sm:$0xff] %vm3609, %v3282
      %3634 = vst.msk [vmem:[%s305 + $0xc0] sm:$0xff] %vm3609, %v3283
      %3635 = vst.msk [vmem:[%s305 + $0xc8] sm:$0xff] %vm3609, %v3284
      %3636 = vst.msk [vmem:[%s305 + $0xd0] sm:$0xff] %vm3609, %v3285
      %3637 = vst.msk [vmem:[%s305 + $0xd8] sm:$0xff] %vm3609, %v3286
      %3638 = vst.msk [vmem:[%s305 + $0xe0] sm:$0xff] %vm3609, %v3287
      %3639 = vst.msk [vmem:[%s305 + $0xe8] sm:$0xff] %vm3609, %v3288
      %3640 = vst.msk [vmem:[%s305 + $0xf0] sm:$0xff] %vm3609, %v3289
      %3641 = vst.msk [vmem:[%s305 + $0xf8] sm:$0xff] %vm3609, %v3290
      %3642 = vst.msk [vmem:[%s305 + $0x100] sm:$0xff] %vm3609, %v3291
      %3643 = vst.msk [vmem:[%s305 + $0x108] sm:$0xff] %vm3609, %v3292
      %3644 = vst.msk [vmem:[%s305 + $0x110] sm:$0xff] %vm3609, %v3293
      %3645 = vst.msk [vmem:[%s305 + $0x118] sm:$0xff] %vm3609, %v3294
      %3682 = vrot.lane.b32.xlu0 %v3573, 16
      %v3683 = vpop.permute.xlu0 %3682
      %3684 = vrot.lane.b32.xlu0 %v3574, 16
      %v3685 = vpop.permute.xlu0 %3684
      %3686 = vrot.lane.b32.xlu0 %v3575, 16
      %v3687 = vpop.permute.xlu0 %3686
      %3688 = vrot.lane.b32.xlu0 %v3576, 16
      %v3689 = vpop.permute.xlu0 %3688
      %3690 = vrot.lane.b32.xlu0 %v3577, 16
      %v3691 = vpop.permute.xlu0 %3690
      %3692 = vrot.lane.b32.xlu0 %v3578, 16
      %v3693 = vpop.permute.xlu0 %3692
      %3694 = vrot.lane.b32.xlu0 %v3579, 16
      %v3695 = vpop.permute.xlu0 %3694
      %3696 = vrot.lane.b32.xlu0 %v3580, 16
      %v3697 = vpop.permute.xlu0 %3696
      %3698 = vrot.lane.b32.xlu0 %v3581, 16
      %v3699 = vpop.permute.xlu0 %3698
      %3700 = vrot.lane.b32.xlu0 %v3582, 16
      %v3701 = vpop.permute.xlu0 %3700
      %3702 = vrot.lane.b32.xlu0 %v3583, 16
      %v3703 = vpop.permute.xlu0 %3702
      %3704 = vrot.lane.b32.xlu0 %v3584, 16
      %v3705 = vpop.permute.xlu0 %3704
      %3706 = vrot.lane.b32.xlu0 %v3585, 16
      %v3707 = vpop.permute.xlu0 %3706
      %3708 = vrot.lane.b32.xlu0 %v3586, 16
      %v3709 = vpop.permute.xlu0 %3708
      %3710 = vrot.lane.b32.xlu0 %v3587, 16
      %v3711 = vpop.permute.xlu0 %3710
      %3712 = vrot.lane.b32.xlu0 %v3588, 16
      %v3713 = vpop.permute.xlu0 %3712
      %3714 = vrot.lane.b32.xlu0 %v3589, 16
      %v3715 = vpop.permute.xlu0 %3714
      %3716 = vrot.lane.b32.xlu0 %v3590, 16
      %v3717 = vpop.permute.xlu0 %3716
      %3718 = vrot.lane.b32.xlu0 %v3591, 16
      %v3719 = vpop.permute.xlu0 %3718
      %3720 = vrot.lane.b32.xlu0 %v3592, 16
      %v3721 = vpop.permute.xlu0 %3720
      %3722 = vrot.lane.b32.xlu0 %v3593, 16
      %v3723 = vpop.permute.xlu0 %3722
      %3724 = vrot.lane.b32.xlu0 %v3594, 16
      %v3725 = vpop.permute.xlu0 %3724
      %3726 = vrot.lane.b32.xlu0 %v3595, 16
      %v3727 = vpop.permute.xlu0 %3726
      %3728 = vrot.lane.b32.xlu0 %v3596, 16
      %v3729 = vpop.permute.xlu0 %3728
      %3730 = vrot.lane.b32.xlu0 %v3597, 16
      %v3731 = vpop.permute.xlu0 %3730
      %3732 = vrot.lane.b32.xlu0 %v3598, 16
      %v3733 = vpop.permute.xlu0 %3732
      %3734 = vrot.lane.b32.xlu0 %v3599, 16
      %v3735 = vpop.permute.xlu0 %3734
      %3736 = vrot.lane.b32.xlu0 %v3600, 16
      %v3737 = vpop.permute.xlu0 %3736
      %3738 = vrot.lane.b32.xlu0 %v3601, 16
      %v3739 = vpop.permute.xlu0 %3738
      %3740 = vrot.lane.b32.xlu0 %v3602, 16
      %v3741 = vpop.permute.xlu0 %3740
      %3742 = vrot.lane.b32.xlu0 %v3603, 16
      %v3743 = vpop.permute.xlu0 %3742
      %3744 = vrot.lane.b32.xlu0 %v3604, 16
      %v3745 = vpop.permute.xlu0 %3744
      %3746 = vrot.lane.b32.xlu0 %v3605, 16
      %v3747 = vpop.permute.xlu0 %3746
      %3748 = vrot.lane.b32.xlu0 %v3606, 16
      %v3749 = vpop.permute.xlu0 %3748
      %3750 = vrot.lane.b32.xlu0 %v3607, 16
      %v3751 = vpop.permute.xlu0 %3750
      %3752 = vrot.lane.b32.xlu0 %v3608, 16
      %v3753 = vpop.permute.xlu0 %3752
      %vm3790 = vcmask 261248
      %3791 = vst.msk [vmem:[%s305] sm:$0xff] %vm3790, %v3683
      %3792 = vst.msk [vmem:[%s305 + $0x8] sm:$0xff] %vm3790, %v3685
      %3793 = vst.msk [vmem:[%s305 + $0x10] sm:$0xff] %vm3790, %v3687
      %3794 = vst.msk [vmem:[%s305 + $0x18] sm:$0xff] %vm3790, %v3689
      %3795 = vst.msk [vmem:[%s305 + $0x20] sm:$0xff] %vm3790, %v3691
      %3796 = vst.msk [vmem:[%s305 + $0x28] sm:$0xff] %vm3790, %v3693
      %3797 = vst.msk [vmem:[%s305 + $0x30] sm:$0xff] %vm3790, %v3695
      %3798 = vst.msk [vmem:[%s305 + $0x38] sm:$0xff] %vm3790, %v3697
      %3799 = vst.msk [vmem:[%s305 + $0x40] sm:$0xff] %vm3790, %v3699
      %3800 = vst.msk [vmem:[%s305 + $0x48] sm:$0xff] %vm3790, %v3701
      %3801 = vst.msk [vmem:[%s305 + $0x50] sm:$0xff] %vm3790, %v3703
      %3802 = vst.msk [vmem:[%s305 + $0x58] sm:$0xff] %vm3790, %v3705
      %3803 = vst.msk [vmem:[%s305 + $0x60] sm:$0xff] %vm3790, %v3707
      %3804 = vst.msk [vmem:[%s305 + $0x68] sm:$0xff] %vm3790, %v3709
      %3805 = vst.msk [vmem:[%s305 + $0x70] sm:$0xff] %vm3790, %v3711
      %3806 = vst.msk [vmem:[%s305 + $0x78] sm:$0xff] %vm3790, %v3713
      %3807 = vst.msk [vmem:[%s305 + $0x80] sm:$0xff] %vm3790, %v3715
      %3808 = vst.msk [vmem:[%s305 + $0x88] sm:$0xff] %vm3790, %v3717
      %3809 = vst.msk [vmem:[%s305 + $0x90] sm:$0xff] %vm3790, %v3719
      %3810 = vst.msk [vmem:[%s305 + $0x98] sm:$0xff] %vm3790, %v3721
      %3811 = vst.msk [vmem:[%s305 + $0xa0] sm:$0xff] %vm3790, %v3723
      %3812 = vst.msk [vmem:[%s305 + $0xa8] sm:$0xff] %vm3790, %v3725
      %3813 = vst.msk [vmem:[%s305 + $0xb0] sm:$0xff] %vm3790, %v3727
      %3814 = vst.msk [vmem:[%s305 + $0xb8] sm:$0xff] %vm3790, %v3729
      %3815 = vst.msk [vmem:[%s305 + $0xc0] sm:$0xff] %vm3790, %v3731
      %3816 = vst.msk [vmem:[%s305 + $0xc8] sm:$0xff] %vm3790, %v3733
      %3817 = vst.msk [vmem:[%s305 + $0xd0] sm:$0xff] %vm3790, %v3735
      %3818 = vst.msk [vmem:[%s305 + $0xd8] sm:$0xff] %vm3790, %v3737
      %3819 = vst.msk [vmem:[%s305 + $0xe0] sm:$0xff] %vm3790, %v3739
      %3820 = vst.msk [vmem:[%s305 + $0xe8] sm:$0xff] %vm3790, %v3741
      %3821 = vst.msk [vmem:[%s305 + $0xf0] sm:$0xff] %vm3790, %v3743
      %3822 = vst.msk [vmem:[%s305 + $0xf8] sm:$0xff] %vm3790, %v3745
      %3823 = vst.msk [vmem:[%s305 + $0x100] sm:$0xff] %vm3790, %v3747
      %3824 = vst.msk [vmem:[%s305 + $0x108] sm:$0xff] %vm3790, %v3749
      %3825 = vst.msk [vmem:[%s305 + $0x110] sm:$0xff] %vm3790, %v3751
      %3826 = vst.msk [vmem:[%s305 + $0x118] sm:$0xff] %vm3790, %v3753
      %p3827 = scmp.lt.s32.totalorder %s19, 1
      %s3828 = scalar_select %p3827, %s19, 1
      %s3829 = smul.addr %s3828, 36
      %s3830 = smul.addr %s3829, 8
      %s3831 = scalar_lea.vmem %s8, %s3830
      // Predicated region
      $region53: #{tpu_custom_call.1} parent=51 // pred_check
        %p3832 = pneg %p210
      $region54: #{tpu_custom_call.1} parent=51 // pred_check_branch
        %3834 = sbr.rel (%p3832) target = $region56
      $region55: #{tpu_custom_call.1} parent=51 // pred_region
        _
      $region56: #{tpu_custom_call.1} parent=51 // pred_fallthru
        _
    $region52: #{tpu_custom_call.1} parent=5 // pred_fallthru
      _
    %p3835 = scmp.le.s32.totalorder 2, %s14
    // Predicated region
    $region57: #{tpu_custom_call.1} parent=5 // pred_check
      %p3836 = pneg %p3835
    $region58: #{tpu_custom_call.1} parent=5 // pred_check_branch
      %3838 = sbr.rel (%p3836) target = $region60
    $region59: #{tpu_custom_call.1} parent=5 // pred_region
      %s3839 = ssub.s32 %s14, 2
      // Predicated region
      $region61: #{tpu_custom_call.1} parent=59 // pred_check
        %p3840 = pneg %p216
      $region62: #{tpu_custom_call.1} parent=59 // pred_check_branch
        %3842 = sbr.rel (%p3840) target = $region64
      $region63: #{tpu_custom_call.1} parent=59 // pred_region
        %p3843 = scmp.lt.s32.totalorder %s20, 1
        %s3844 = scalar_select %p3843, %s20, 1
        %s3845 = smul.addr %s3844, 36
        %s3846 = smul.addr %s3845, 8
        %s3847 = scalar_lea.vmem %s8, %s3846
      $region64: #{tpu_custom_call.1} parent=59 // pred_fallthru
        _
    $region60: #{tpu_custom_call.1} parent=5 // pred_fallthru
      _
  $region6: #{tpu_custom_call.1} parent=0 // loop_footer
    %s18 = sadd.s32 1, %s14
  $region7: #{tpu_custom_call.1} parent=0 // loop_footer_branch
    %13 = sbr.rel target = $region3
  $region8: #{tpu_custom_call.1} parent=0 // loop_exit
    _

</llo_original>
